<compile_context>
chip_gen: v7x
topology: tpu7x:2x2x1
jax: 0.10.0
libtpu: 0.0.40
codegen_flags: <defaults>
</compile_context>

<pallas_src>
import jax
import jax.numpy as jnp
import numpy as np
from jax import lax
from jax.experimental import pallas as pl
from jax.experimental.pallas import tpu as pltpu

# ---- model dimensions (input_shape = (C_IN, L_IN)) ----
C_IN = 4
L_IN = 127
K = 64                        # conv kernel size
C_OUT = 64                    # conv output channels
T_CONV = L_IN - K + 1         # 64  (valid conv output length)
T_POOL = T_CONV // 2          # 32  (after MaxPool1d(2))
FC1_IN = C_OUT * T_POOL       # 2048
FC1_OUT = 64
FC2_OUT = 1
KC = K * C_IN                 # 256 : im2col contraction (one time step)
PKC = (K + 1) * C_IN + 4      # 264 : packed patch width (260 real + 4 zero pad)
X_RAW = L_IN * C_IN           # 508 : raw flattened sample width
X_PAD = 512                   # lane-padded raw sample width


def conv1d_model_kernel(x_ref, wp_ref, bc_ref, w1_ref, b1_ref, w2_ref, b2_ref,
                        o_ref, patch_scr):
    # x_ref    : (B, 512)      bf16  raw samples, x_flat[n, 4*t + c] = x[n, c, t]
    # wp_ref   : (264, 128)    bf16  packed conv weight (even | odd time step)
    # bc_ref   : (1, 64)       f32   conv bias
    # w1_ref   : (32, 64, 64)  bf16  fc1 weight, [tp, c, j] = w1[j, c*32 + tp]
    # b1_ref   : (1, 64)       f32
    # w2_ref   : (1, 64)       f32   fc2 weight row
    # b2_ref   : (1, 1)        f32
    # o_ref    : (1, 1, B)     f32   lane-dense output (batch on lanes)
    # patch_scr: (32*B, 264)   bf16  packed im2col patches, rows ordered (tp, n)
    B = x_ref.shape[0]

    # --- in-kernel im2col: 32 static lane slices, 2 conv time steps per row ---
    xt = x_ref[...]
    for tp in range(T_POOL):
        patch_scr[tp * B:(tp + 1) * B, :] = xt[:, 8 * tp:8 * tp + PKC]

    # --- Conv1d: ONE (32B, 264) @ (264, 128) bf16 matmul, f32 accumulation ---
    conv = jnp.dot(patch_scr[...], wp_ref[...],
                   preferred_element_type=jnp.float32)          # (32B, 128)
    # lanes [0:64] = conv at time 2*tp, lanes [64:128] = conv at time 2*tp + 1
    pooled = jnp.maximum(conv[:, :C_OUT], conv[:, C_OUT:])      # MaxPool1d(2)
    pooled = jnp.maximum(pooled + bc_ref[...], 0.0)             # bias + ReLU

    # --- fc1: channel-major Flatten folded into a 32-step MXU accumulation ---
    h = jnp.zeros((B, FC1_OUT), jnp.float32)
    for tp in range(T_POOL):
        blk = pooled[tp * B:(tp + 1) * B, :].astype(jnp.bfloat16)   # (B, 64)
        h = h + jnp.dot(blk, w1_ref[tp], preferred_element_type=jnp.float32)
    h = jnp.maximum(h + b1_ref[...], 0.0)

    # --- fc2 + sigmoid; dot_general puts the result directly in (1, B) lanes ---
    z = lax.dot_general(w2_ref[...], h, (((1,), (1,)), ((), ())),
                        preferred_element_type=jnp.float32)     # (1, B)
    o_ref[0] = 1.0 / (1.0 + jnp.exp(-(z + b2_ref[...])))


def _round_up(n, m):
    return -(-n // m) * m


def conv1d_model_pallas(x_ncl, params, *, batch_tile=128):
    """x_ncl: (N, C_IN, L_IN) float32; params: torch-shaped weights/biases.

    batch_tile: retune per generation.  With the raw-x (no HBM im2col) input
    the per-sample VMEM footprint is tiny, so 128 fits everywhere (including
    v5e's 16 MiB scoped default); raise it on v6e (and bump vmem_limit_bytes),
    and on v7x keep batch_tile <= N/2 so the "parallel" axis feeds both cores.
    """
    wc, bc, w1, b1, w2, b2 = params
    N = x_ncl.shape[0]

    B_TILE = min(batch_tile, _round_up(N, 8))       # multiple of 8 (sublane aligned)
    n_tiles = -(-N // B_TILE)
    N_pad = n_tiles * B_TILE

    # --- raw input: flatten time-major/channel-minor, lane-pad 508->512, bf16 ---
    x_tm = jnp.transpose(x_ncl, (0, 2, 1)).reshape(N, X_RAW)    # x_tm[n, 4t+c] = x[n,c,t]
    x_flat = jnp.zeros((N_pad, X_PAD), jnp.bfloat16)
    x_flat = x_flat.at[:N, :X_RAW].set(x_tm.astype(jnp.bfloat16))

    # --- packed conv weight: cols [0:64] even time step, cols [64:128] odd ---
    wc_flat = jnp.transpose(wc, (2, 1, 0)).reshape(KC, C_OUT)   # [4k+c, o] = wc[o,c,k]
    wp = jnp.zeros((PKC, 2 * C_OUT), jnp.float32)
    wp = wp.at[0:KC, 0:C_OUT].set(wc_flat)                      # even: rows 0..255
    wp = wp.at[C_IN:KC + C_IN, C_OUT:2 * C_OUT].set(wc_flat)    # odd : rows 4..259
    wp_k = wp.astype(jnp.bfloat16)

    bc_k = bc.reshape(1, C_OUT)
    # fc1 weight blocks: w1_k[tp, c, j] = w1[j, c*T_POOL + tp]  (channel-major flatten)
    w1_k = jnp.transpose(w1.reshape(FC1_OUT, C_OUT, T_POOL), (2, 1, 0)).astype(jnp.bfloat16)
    b1_k = b1.reshape(1, FC1_OUT)
    w2_k = w2.reshape(1, FC1_OUT)
    b2_k = b2.reshape(1, 1)

    out = pl.pallas_call(
        conv1d_model_kernel,
        out_shape=jax.ShapeDtypeStruct((n_tiles, 1, B_TILE), jnp.float32),
        grid=(n_tiles,),
        in_specs=[
            pl.BlockSpec((B_TILE, X_PAD), lambda i: (i, 0)),        # raw x tile
            pl.BlockSpec((PKC, 2 * C_OUT), lambda i: (0, 0)),       # resident weights
            pl.BlockSpec((1, C_OUT), lambda i: (0, 0)),
            pl.BlockSpec((T_POOL, C_OUT, FC1_OUT), lambda i: (0, 0, 0)),
            pl.BlockSpec((1, FC1_OUT), lambda i: (0, 0)),
            pl.BlockSpec((1, FC1_OUT), lambda i: (0, 0)),
            pl.BlockSpec((1, 1), lambda i: (0, 0)),
        ],
        out_specs=pl.BlockSpec((1, 1, B_TILE), lambda i: (i, 0, 0)),
        scratch_shapes=[
            pltpu.VMEM((T_POOL * B_TILE, PKC), jnp.bfloat16),       # packed patches
        ],
        compiler_params=pltpu.CompilerParams(
            dimension_semantics=("parallel",)),
    )(x_flat, wp_k, bc_k, w1_k, b1_k, w2_k, b2_k)

    return out.reshape(N_pad, 1)[:N]


def reference(x_ncl, params):
    """Pure-JAX reference matching the PyTorch forward (HIGHEST precision, f32)."""
    wc, bc, w1, b1, w2, b2 = params
    N = x_ncl.shape[0]
    patches = jnp.stack([x_ncl[:, :, k:k + T_CONV] for k in range(K)], axis=-1)  # (N,C,T,K)
    conv = jnp.einsum('nctk,ock->not', patches, wc,
                      precision=lax.Precision.HIGHEST) + bc[None, :, None]
    conv = jnp.maximum(conv, 0.0)
    pooled = conv.reshape(N, C_OUT, T_POOL, 2).max(axis=-1)                      # (N,C,T_pool)
    flat = pooled.reshape(N, FC1_IN)                                             # channel-major flatten
    h = jnp.maximum(jnp.dot(flat, w1.T, precision=lax.Precision.HIGHEST) + b1, 0.0)
    z = jnp.dot(h, w2.T, precision=lax.Precision.HIGHEST) + b2
    return jax.nn.sigmoid(z)


if __name__ == "__main__":
    key = jax.random.PRNGKey(0)
    ks = jax.random.split(key, 7)

    # Deterministic synthetic parameters (shapes follow nn.Module __init__)
    wc = 0.05 * jax.random.normal(ks[0], (C_OUT, C_IN, K), jnp.float32)     # Conv1d weight
    bc = 0.05 * jax.random.normal(ks[1], (C_OUT,), jnp.float32)             # Conv1d bias
    w1 = 0.02 * jax.random.normal(ks[2], (FC1_OUT, FC1_IN), jnp.float32)    # fc1 weight
    b1 = 0.02 * jax.random.normal(ks[3], (FC1_OUT,), jnp.float32)           # fc1 bias
    w2 = 0.10 * jax.random.normal(ks[4], (FC2_OUT, FC1_OUT), jnp.float32)   # fc2 weight
    b2 = 0.10 * jax.random.normal(ks[5], (FC2_OUT,), jnp.float32)           # fc2 bias
    params = (wc, bc, w1, b1, w2, b2)

    # Example input in PyTorch NCL convention: (batch=2, channels=4, length=127)
    x = jax.random.normal(ks[6], (2, C_IN, L_IN), jnp.float32)

    out = jax.jit(conv1d_model_pallas)(x, params)
    out = jax.block_until_ready(out)

    ref = jax.block_until_ready(reference(x, params))
    # Kernel uses bf16 MXU operands with f32 accumulation; the reference is
    # full-f32 HIGHEST precision, so use a bf16-appropriate tolerance
    # (post-sigmoid error is a few 1e-3 in practice).
    np.testing.assert_allclose(np.asarray(out), np.asarray(ref),
                               rtol=2e-2, atol=1e-2)
    print("KERNEL_OK")
</pallas_src>

<mosaic_0001>
module attributes {stable_mosaic.version = 11 : i64} {
  func.func @conv1d_model_kernel(%arg0: i32, %arg1: memref<8x512xbf16, #tpu.memory_space<vmem>>, %arg2: memref<264x128xbf16, #tpu.memory_space<vmem>>, %arg3: memref<1x64xf32, #tpu.memory_space<vmem>>, %arg4: memref<32x64x64xbf16, #tpu.memory_space<vmem>>, %arg5: memref<1x64xf32, #tpu.memory_space<vmem>>, %arg6: memref<1x64xf32, #tpu.memory_space<vmem>>, %arg7: memref<1x1xf32, #tpu.memory_space<vmem>>, %arg8: memref<1x1x8xf32, #tpu.memory_space<vmem>>, %arg9: memref<256x264xbf16, #tpu.memory_space<vmem>>) attributes {dimension_semantics = [#tpu.dimension_semantics<parallel>], iteration_bounds = array<i64: 1>, scalar_prefetch = 0 : i64, scratch_operands = 1 : i64, tpu.core_type = #tpu.core_type<tc>, window_params = [{transform_indices = @transform_0, window_bounds = array<i64: 8, 512>}, {pipeline_mode = #tpu.pipeline_mode<synchronous>, transform_indices = @transform_1, window_bounds = array<i64: 264, 128>}, {pipeline_mode = #tpu.pipeline_mode<synchronous>, transform_indices = @transform_2, window_bounds = array<i64: 1, 64>}, {pipeline_mode = #tpu.pipeline_mode<synchronous>, transform_indices = @transform_3, window_bounds = array<i64: 32, 64, 64>}, {pipeline_mode = #tpu.pipeline_mode<synchronous>, transform_indices = @transform_4, window_bounds = array<i64: 1, 64>}, {pipeline_mode = #tpu.pipeline_mode<synchronous>, transform_indices = @transform_5, window_bounds = array<i64: 1, 64>}, {pipeline_mode = #tpu.pipeline_mode<synchronous>, transform_indices = @transform_6, window_bounds = array<i64: 1, 1>}, {transform_indices = @transform_7, window_bounds = array<i64: 1, 1, 8>}]} {
    %c0 = arith.constant 0 : index
    %c0_0 = arith.constant 0 : index
    %0 = vector.load %arg1[%c0, %c0_0] : memref<8x512xbf16, #tpu.memory_space<vmem>>, vector<8x512xbf16>
    %1 = vector.extract_strided_slice %0 {offsets = [0, 0], sizes = [8, 264], strides = [1, 1]} : vector<8x512xbf16> to vector<8x264xbf16>
    %c0_1 = arith.constant 0 : index
    %c0_2 = arith.constant 0 : index
    %2 = vector.load %arg9[%c0_1, %c0_2] : memref<256x264xbf16, #tpu.memory_space<vmem>>, vector<8x264xbf16>
    tpu.vector_store %arg9[%c0_1, %c0_2], %1 {strides = array<i32>} : memref<256x264xbf16, #tpu.memory_space<vmem>>, vector<8x264xbf16>,
    %3 = vector.extract_strided_slice %0 {offsets = [0, 8], sizes = [8, 264], strides = [1, 1]} : vector<8x512xbf16> to vector<8x264xbf16>
    %c8 = arith.constant 8 : index
    %c0_3 = arith.constant 0 : index
    %4 = vector.load %arg9[%c8, %c0_3] : memref<256x264xbf16, #tpu.memory_space<vmem>>, vector<8x264xbf16>
    tpu.vector_store %arg9[%c8, %c0_3], %3 {strides = array<i32>} : memref<256x264xbf16, #tpu.memory_space<vmem>>, vector<8x264xbf16>,
    %5 = vector.extract_strided_slice %0 {offsets = [0, 16], sizes = [8, 264], strides = [1, 1]} : vector<8x512xbf16> to vector<8x264xbf16>
    %c16 = arith.constant 16 : index
    %c0_4 = arith.constant 0 : index
    %6 = vector.load %arg9[%c16, %c0_4] : memref<256x264xbf16, #tpu.memory_space<vmem>>, vector<8x264xbf16>
    tpu.vector_store %arg9[%c16, %c0_4], %5 {strides = array<i32>} : memref<256x264xbf16, #tpu.memory_space<vmem>>, vector<8x264xbf16>,
    %7 = vector.extract_strided_slice %0 {offsets = [0, 24], sizes = [8, 264], strides = [1, 1]} : vector<8x512xbf16> to vector<8x264xbf16>
    %c24 = arith.constant 24 : index
    %c0_5 = arith.constant 0 : index
    %8 = vector.load %arg9[%c24, %c0_5] : memref<256x264xbf16, #tpu.memory_space<vmem>>, vector<8x264xbf16>
    tpu.vector_store %arg9[%c24, %c0_5], %7 {strides = array<i32>} : memref<256x264xbf16, #tpu.memory_space<vmem>>, vector<8x264xbf16>,
    %9 = vector.extract_strided_slice %0 {offsets = [0, 32], sizes = [8, 264], strides = [1, 1]} : vector<8x512xbf16> to vector<8x264xbf16>
    %c32 = arith.constant 32 : index
    %c0_6 = arith.constant 0 : index
    %10 = vector.load %arg9[%c32, %c0_6] : memref<256x264xbf16, #tpu.memory_space<vmem>>, vector<8x264xbf16>
    tpu.vector_store %arg9[%c32, %c0_6], %9 {strides = array<i32>} : memref<256x264xbf16, #tpu.memory_space<vmem>>, vector<8x264xbf16>,
    %11 = vector.extract_strided_slice %0 {offsets = [0, 40], sizes = [8, 264], strides = [1, 1]} : vector<8x512xbf16> to vector<8x264xbf16>
    %c40 = arith.constant 40 : index
    %c0_7 = arith.constant 0 : index
    %12 = vector.load %arg9[%c40, %c0_7] : memref<256x264xbf16, #tpu.memory_space<vmem>>, vector<8x264xbf16>
    tpu.vector_store %arg9[%c40, %c0_7], %11 {strides = array<i32>} : memref<256x264xbf16, #tpu.memory_space<vmem>>, vector<8x264xbf16>,
    %13 = vector.extract_strided_slice %0 {offsets = [0, 48], sizes = [8, 264], strides = [1, 1]} : vector<8x512xbf16> to vector<8x264xbf16>
    %c48 = arith.constant 48 : index
    %c0_8 = arith.constant 0 : index
    %14 = vector.load %arg9[%c48, %c0_8] : memref<256x264xbf16, #tpu.memory_space<vmem>>, vector<8x264xbf16>
    tpu.vector_store %arg9[%c48, %c0_8], %13 {strides = array<i32>} : memref<256x264xbf16, #tpu.memory_space<vmem>>, vector<8x264xbf16>,
    %15 = vector.extract_strided_slice %0 {offsets = [0, 56], sizes = [8, 264], strides = [1, 1]} : vector<8x512xbf16> to vector<8x264xbf16>
    %c56 = arith.constant 56 : index
    %c0_9 = arith.constant 0 : index
    %16 = vector.load %arg9[%c56, %c0_9] : memref<256x264xbf16, #tpu.memory_space<vmem>>, vector<8x264xbf16>
    tpu.vector_store %arg9[%c56, %c0_9], %15 {strides = array<i32>} : memref<256x264xbf16, #tpu.memory_space<vmem>>, vector<8x264xbf16>,
    %17 = vector.extract_strided_slice %0 {offsets = [0, 64], sizes = [8, 264], strides = [1, 1]} : vector<8x512xbf16> to vector<8x264xbf16>
    %c64 = arith.constant 64 : index
    %c0_10 = arith.constant 0 : index
    %18 = vector.load %arg9[%c64, %c0_10] : memref<256x264xbf16, #tpu.memory_space<vmem>>, vector<8x264xbf16>
    tpu.vector_store %arg9[%c64, %c0_10], %17 {strides = array<i32>} : memref<256x264xbf16, #tpu.memory_space<vmem>>, vector<8x264xbf16>,
    %19 = vector.extract_strided_slice %0 {offsets = [0, 72], sizes = [8, 264], strides = [1, 1]} : vector<8x512xbf16> to vector<8x264xbf16>
    %c72 = arith.constant 72 : index
    %c0_11 = arith.constant 0 : index
    %20 = vector.load %arg9[%c72, %c0_11] : memref<256x264xbf16, #tpu.memory_space<vmem>>, vector<8x264xbf16>
    tpu.vector_store %arg9[%c72, %c0_11], %19 {strides = array<i32>} : memref<256x264xbf16, #tpu.memory_space<vmem>>, vector<8x264xbf16>,
    %21 = vector.extract_strided_slice %0 {offsets = [0, 80], sizes = [8, 264], strides = [1, 1]} : vector<8x512xbf16> to vector<8x264xbf16>
    %c80 = arith.constant 80 : index
    %c0_12 = arith.constant 0 : index
    %22 = vector.load %arg9[%c80, %c0_12] : memref<256x264xbf16, #tpu.memory_space<vmem>>, vector<8x264xbf16>
    tpu.vector_store %arg9[%c80, %c0_12], %21 {strides = array<i32>} : memref<256x264xbf16, #tpu.memory_space<vmem>>, vector<8x264xbf16>,
    %23 = vector.extract_strided_slice %0 {offsets = [0, 88], sizes = [8, 264], strides = [1, 1]} : vector<8x512xbf16> to vector<8x264xbf16>
    %c88 = arith.constant 88 : index
    %c0_13 = arith.constant 0 : index
    %24 = vector.load %arg9[%c88, %c0_13] : memref<256x264xbf16, #tpu.memory_space<vmem>>, vector<8x264xbf16>
    tpu.vector_store %arg9[%c88, %c0_13], %23 {strides = array<i32>} : memref<256x264xbf16, #tpu.memory_space<vmem>>, vector<8x264xbf16>,
    %25 = vector.extract_strided_slice %0 {offsets = [0, 96], sizes = [8, 264], strides = [1, 1]} : vector<8x512xbf16> to vector<8x264xbf16>
    %c96 = arith.constant 96 : index
    %c0_14 = arith.constant 0 : index
    %26 = vector.load %arg9[%c96, %c0_14] : memref<256x264xbf16, #tpu.memory_space<vmem>>, vector<8x264xbf16>
    tpu.vector_store %arg9[%c96, %c0_14], %25 {strides = array<i32>} : memref<256x264xbf16, #tpu.memory_space<vmem>>, vector<8x264xbf16>,
    %27 = vector.extract_strided_slice %0 {offsets = [0, 104], sizes = [8, 264], strides = [1, 1]} : vector<8x512xbf16> to vector<8x264xbf16>
    %c104 = arith.constant 104 : index
    %c0_15 = arith.constant 0 : index
    %28 = vector.load %arg9[%c104, %c0_15] : memref<256x264xbf16, #tpu.memory_space<vmem>>, vector<8x264xbf16>
    tpu.vector_store %arg9[%c104, %c0_15], %27 {strides = array<i32>} : memref<256x264xbf16, #tpu.memory_space<vmem>>, vector<8x264xbf16>,
    %29 = vector.extract_strided_slice %0 {offsets = [0, 112], sizes = [8, 264], strides = [1, 1]} : vector<8x512xbf16> to vector<8x264xbf16>
    %c112 = arith.constant 112 : index
    %c0_16 = arith.constant 0 : index
    %30 = vector.load %arg9[%c112, %c0_16] : memref<256x264xbf16, #tpu.memory_space<vmem>>, vector<8x264xbf16>
    tpu.vector_store %arg9[%c112, %c0_16], %29 {strides = array<i32>} : memref<256x264xbf16, #tpu.memory_space<vmem>>, vector<8x264xbf16>,
    %31 = vector.extract_strided_slice %0 {offsets = [0, 120], sizes = [8, 264], strides = [1, 1]} : vector<8x512xbf16> to vector<8x264xbf16>
    %c120 = arith.constant 120 : index
    %c0_17 = arith.constant 0 : index
    %32 = vector.load %arg9[%c120, %c0_17] : memref<256x264xbf16, #tpu.memory_space<vmem>>, vector<8x264xbf16>
    tpu.vector_store %arg9[%c120, %c0_17], %31 {strides = array<i32>} : memref<256x264xbf16, #tpu.memory_space<vmem>>, vector<8x264xbf16>,
    %33 = vector.extract_strided_slice %0 {offsets = [0, 128], sizes = [8, 264], strides = [1, 1]} : vector<8x512xbf16> to vector<8x264xbf16>
    %c128 = arith.constant 128 : index
    %c0_18 = arith.constant 0 : index
    %34 = vector.load %arg9[%c128, %c0_18] : memref<256x264xbf16, #tpu.memory_space<vmem>>, vector<8x264xbf16>
    tpu.vector_store %arg9[%c128, %c0_18], %33 {strides = array<i32>} : memref<256x264xbf16, #tpu.memory_space<vmem>>, vector<8x264xbf16>,
    %35 = vector.extract_strided_slice %0 {offsets = [0, 136], sizes = [8, 264], strides = [1, 1]} : vector<8x512xbf16> to vector<8x264xbf16>
    %c136 = arith.constant 136 : index
    %c0_19 = arith.constant 0 : index
    %36 = vector.load %arg9[%c136, %c0_19] : memref<256x264xbf16, #tpu.memory_space<vmem>>, vector<8x264xbf16>
    tpu.vector_store %arg9[%c136, %c0_19], %35 {strides = array<i32>} : memref<256x264xbf16, #tpu.memory_space<vmem>>, vector<8x264xbf16>,
    %37 = vector.extract_strided_slice %0 {offsets = [0, 144], sizes = [8, 264], strides = [1, 1]} : vector<8x512xbf16> to vector<8x264xbf16>
    %c144 = arith.constant 144 : index
    %c0_20 = arith.constant 0 : index
    %38 = vector.load %arg9[%c144, %c0_20] : memref<256x264xbf16, #tpu.memory_space<vmem>>, vector<8x264xbf16>
    tpu.vector_store %arg9[%c144, %c0_20], %37 {strides = array<i32>} : memref<256x264xbf16, #tpu.memory_space<vmem>>, vector<8x264xbf16>,
    %39 = vector.extract_strided_slice %0 {offsets = [0, 152], sizes = [8, 264], strides = [1, 1]} : vector<8x512xbf16> to vector<8x264xbf16>
    %c152 = arith.constant 152 : index
    %c0_21 = arith.constant 0 : index
    %40 = vector.load %arg9[%c152, %c0_21] : memref<256x264xbf16, #tpu.memory_space<vmem>>, vector<8x264xbf16>
    tpu.vector_store %arg9[%c152, %c0_21], %39 {strides = array<i32>} : memref<256x264xbf16, #tpu.memory_space<vmem>>, vector<8x264xbf16>,
    %41 = vector.extract_strided_slice %0 {offsets = [0, 160], sizes = [8, 264], strides = [1, 1]} : vector<8x512xbf16> to vector<8x264xbf16>
    %c160 = arith.constant 160 : index
    %c0_22 = arith.constant 0 : index
    %42 = vector.load %arg9[%c160, %c0_22] : memref<256x264xbf16, #tpu.memory_space<vmem>>, vector<8x264xbf16>
    tpu.vector_store %arg9[%c160, %c0_22], %41 {strides = array<i32>} : memref<256x264xbf16, #tpu.memory_space<vmem>>, vector<8x264xbf16>,
    %43 = vector.extract_strided_slice %0 {offsets = [0, 168], sizes = [8, 264], strides = [1, 1]} : vector<8x512xbf16> to vector<8x264xbf16>
    %c168 = arith.constant 168 : index
    %c0_23 = arith.constant 0 : index
    %44 = vector.load %arg9[%c168, %c0_23] : memref<256x264xbf16, #tpu.memory_space<vmem>>, vector<8x264xbf16>
    tpu.vector_store %arg9[%c168, %c0_23], %43 {strides = array<i32>} : memref<256x264xbf16, #tpu.memory_space<vmem>>, vector<8x264xbf16>,
    %45 = vector.extract_strided_slice %0 {offsets = [0, 176], sizes = [8, 264], strides = [1, 1]} : vector<8x512xbf16> to vector<8x264xbf16>
    %c176 = arith.constant 176 : index
    %c0_24 = arith.constant 0 : index
    %46 = vector.load %arg9[%c176, %c0_24] : memref<256x264xbf16, #tpu.memory_space<vmem>>, vector<8x264xbf16>
    tpu.vector_store %arg9[%c176, %c0_24], %45 {strides = array<i32>} : memref<256x264xbf16, #tpu.memory_space<vmem>>, vector<8x264xbf16>,
    %47 = vector.extract_strided_slice %0 {offsets = [0, 184], sizes = [8, 264], strides = [1, 1]} : vector<8x512xbf16> to vector<8x264xbf16>
    %c184 = arith.constant 184 : index
    %c0_25 = arith.constant 0 : index
    %48 = vector.load %arg9[%c184, %c0_25] : memref<256x264xbf16, #tpu.memory_space<vmem>>, vector<8x264xbf16>
    tpu.vector_store %arg9[%c184, %c0_25], %47 {strides = array<i32>} : memref<256x264xbf16, #tpu.memory_space<vmem>>, vector<8x264xbf16>,
    %49 = vector.extract_strided_slice %0 {offsets = [0, 192], sizes = [8, 264], strides = [1, 1]} : vector<8x512xbf16> to vector<8x264xbf16>
    %c192 = arith.constant 192 : index
    %c0_26 = arith.constant 0 : index
    %50 = vector.load %arg9[%c192, %c0_26] : memref<256x264xbf16, #tpu.memory_space<vmem>>, vector<8x264xbf16>
    tpu.vector_store %arg9[%c192, %c0_26], %49 {strides = array<i32>} : memref<256x264xbf16, #tpu.memory_space<vmem>>, vector<8x264xbf16>,
    %51 = vector.extract_strided_slice %0 {offsets = [0, 200], sizes = [8, 264], strides = [1, 1]} : vector<8x512xbf16> to vector<8x264xbf16>
    %c200 = arith.constant 200 : index
    %c0_27 = arith.constant 0 : index
    %52 = vector.load %arg9[%c200, %c0_27] : memref<256x264xbf16, #tpu.memory_space<vmem>>, vector<8x264xbf16>
    tpu.vector_store %arg9[%c200, %c0_27], %51 {strides = array<i32>} : memref<256x264xbf16, #tpu.memory_space<vmem>>, vector<8x264xbf16>,
    %53 = vector.extract_strided_slice %0 {offsets = [0, 208], sizes = [8, 264], strides = [1, 1]} : vector<8x512xbf16> to vector<8x264xbf16>
    %c208 = arith.constant 208 : index
    %c0_28 = arith.constant 0 : index
    %54 = vector.load %arg9[%c208, %c0_28] : memref<256x264xbf16, #tpu.memory_space<vmem>>, vector<8x264xbf16>
    tpu.vector_store %arg9[%c208, %c0_28], %53 {strides = array<i32>} : memref<256x264xbf16, #tpu.memory_space<vmem>>, vector<8x264xbf16>,
    %55 = vector.extract_strided_slice %0 {offsets = [0, 216], sizes = [8, 264], strides = [1, 1]} : vector<8x512xbf16> to vector<8x264xbf16>
    %c216 = arith.constant 216 : index
    %c0_29 = arith.constant 0 : index
    %56 = vector.load %arg9[%c216, %c0_29] : memref<256x264xbf16, #tpu.memory_space<vmem>>, vector<8x264xbf16>
    tpu.vector_store %arg9[%c216, %c0_29], %55 {strides = array<i32>} : memref<256x264xbf16, #tpu.memory_space<vmem>>, vector<8x264xbf16>,
    %57 = vector.extract_strided_slice %0 {offsets = [0, 224], sizes = [8, 264], strides = [1, 1]} : vector<8x512xbf16> to vector<8x264xbf16>
    %c224 = arith.constant 224 : index
    %c0_30 = arith.constant 0 : index
    %58 = vector.load %arg9[%c224, %c0_30] : memref<256x264xbf16, #tpu.memory_space<vmem>>, vector<8x264xbf16>
    tpu.vector_store %arg9[%c224, %c0_30], %57 {strides = array<i32>} : memref<256x264xbf16, #tpu.memory_space<vmem>>, vector<8x264xbf16>,
    %59 = vector.extract_strided_slice %0 {offsets = [0, 232], sizes = [8, 264], strides = [1, 1]} : vector<8x512xbf16> to vector<8x264xbf16>
    %c232 = arith.constant 232 : index
    %c0_31 = arith.constant 0 : index
    %60 = vector.load %arg9[%c232, %c0_31] : memref<256x264xbf16, #tpu.memory_space<vmem>>, vector<8x264xbf16>
    tpu.vector_store %arg9[%c232, %c0_31], %59 {strides = array<i32>} : memref<256x264xbf16, #tpu.memory_space<vmem>>, vector<8x264xbf16>,
    %61 = vector.extract_strided_slice %0 {offsets = [0, 240], sizes = [8, 264], strides = [1, 1]} : vector<8x512xbf16> to vector<8x264xbf16>
    %c240 = arith.constant 240 : index
    %c0_32 = arith.constant 0 : index
    %62 = vector.load %arg9[%c240, %c0_32] : memref<256x264xbf16, #tpu.memory_space<vmem>>, vector<8x264xbf16>
    tpu.vector_store %arg9[%c240, %c0_32], %61 {strides = array<i32>} : memref<256x264xbf16, #tpu.memory_space<vmem>>, vector<8x264xbf16>,
    %63 = vector.extract_strided_slice %0 {offsets = [0, 248], sizes = [8, 264], strides = [1, 1]} : vector<8x512xbf16> to vector<8x264xbf16>
    %c248 = arith.constant 248 : index
    %c0_33 = arith.constant 0 : index
    %64 = vector.load %arg9[%c248, %c0_33] : memref<256x264xbf16, #tpu.memory_space<vmem>>, vector<8x264xbf16>
    tpu.vector_store %arg9[%c248, %c0_33], %63 {strides = array<i32>} : memref<256x264xbf16, #tpu.memory_space<vmem>>, vector<8x264xbf16>,
    %c0_34 = arith.constant 0 : index
    %c0_35 = arith.constant 0 : index
    %65 = vector.load %arg9[%c0_34, %c0_35] : memref<256x264xbf16, #tpu.memory_space<vmem>>, vector<256x264xbf16>
    %c0_36 = arith.constant 0 : index
    %c0_37 = arith.constant 0 : index
    %66 = vector.load %arg2[%c0_36, %c0_37] : memref<264x128xbf16, #tpu.memory_space<vmem>>, vector<264x128xbf16>
    %cst = arith.constant dense<0.000000e+00> : vector<256x128xf32>
    %67 = tpu.matmul %65, %66, %cst {dimension_numbers = #tpu.dot_dimension_numbers<[1], [0], [0], [1], [0, 0, 1, 1], [], []>} : vector<256x264xbf16>, vector<264x128xbf16>, vector<256x128xf32> -> vector<256x128xf32>
    %68 = vector.extract_strided_slice %67 {offsets = [0, 0], sizes = [256, 64], strides = [1, 1]} : vector<256x128xf32> to vector<256x64xf32>
    %69 = vector.extract_strided_slice %67 {offsets = [0, 64], sizes = [256, 64], strides = [1, 1]} : vector<256x128xf32> to vector<256x64xf32>
    %70 = arith.maximumf %68, %69 : vector<256x64xf32>
    %c0_38 = arith.constant 0 : index
    %c0_39 = arith.constant 0 : index
    %71 = vector.load %arg3[%c0_38, %c0_39] : memref<1x64xf32, #tpu.memory_space<vmem>>, vector<1x64xf32>
    %72 = vector.broadcast %71 : vector<1x64xf32> to vector<256x64xf32>
    %73 = arith.addf %70, %72 : vector<256x64xf32>
    %cst_40 = arith.constant 0.000000e+00 : f32
    %74 = vector.broadcast %cst_40 : f32 to vector<256x64xf32>
    %75 = arith.maximumf %73, %74 : vector<256x64xf32>
    %cst_41 = arith.constant 0.000000e+00 : f32
    %76 = vector.broadcast %cst_41 : f32 to vector<8x64xf32>
    %77 = vector.extract_strided_slice %75 {offsets = [0, 0], sizes = [8, 64], strides = [1, 1]} : vector<256x64xf32> to vector<8x64xf32>
    %78 = arith.truncf %77 : vector<8x64xf32> to vector<8x64xbf16>
    %c0_42 = arith.constant 0 : index
    %c0_43 = arith.constant 0 : index
    %c0_44 = arith.constant 0 : index
    %79 = vector.load %arg4[%c0_42, %c0_43, %c0_44] : memref<32x64x64xbf16, #tpu.memory_space<vmem>>, vector<1x64x64xbf16>
    %80 = vector.shape_cast %79 : vector<1x64x64xbf16> to vector<64x64xbf16>
    %cst_45 = arith.constant dense<0.000000e+00> : vector<8x64xf32>
    %81 = tpu.matmul %78, %80, %cst_45 {dimension_numbers = #tpu.dot_dimension_numbers<[1], [0], [0], [1], [0, 0, 1, 1], [], []>} : vector<8x64xbf16>, vector<64x64xbf16>, vector<8x64xf32> -> vector<8x64xf32>
    %82 = arith.addf %76, %81 : vector<8x64xf32>
    %83 = vector.extract_strided_slice %75 {offsets = [8, 0], sizes = [8, 64], strides = [1, 1]} : vector<256x64xf32> to vector<8x64xf32>
    %84 = arith.truncf %83 : vector<8x64xf32> to vector<8x64xbf16>
    %c1 = arith.constant 1 : index
    %c0_46 = arith.constant 0 : index
    %c0_47 = arith.constant 0 : index
    %85 = vector.load %arg4[%c1, %c0_46, %c0_47] : memref<32x64x64xbf16, #tpu.memory_space<vmem>>, vector<1x64x64xbf16>
    %86 = vector.shape_cast %85 : vector<1x64x64xbf16> to vector<64x64xbf16>
    %cst_48 = arith.constant dense<0.000000e+00> : vector<8x64xf32>
    %87 = tpu.matmul %84, %86, %cst_48 {dimension_numbers = #tpu.dot_dimension_numbers<[1], [0], [0], [1], [0, 0, 1, 1], [], []>} : vector<8x64xbf16>, vector<64x64xbf16>, vector<8x64xf32> -> vector<8x64xf32>
    %88 = arith.addf %82, %87 : vector<8x64xf32>
    %89 = vector.extract_strided_slice %75 {offsets = [16, 0], sizes = [8, 64], strides = [1, 1]} : vector<256x64xf32> to vector<8x64xf32>
    %90 = arith.truncf %89 : vector<8x64xf32> to vector<8x64xbf16>
    %c2 = arith.constant 2 : index
    %c0_49 = arith.constant 0 : index
    %c0_50 = arith.constant 0 : index
    %91 = vector.load %arg4[%c2, %c0_49, %c0_50] : memref<32x64x64xbf16, #tpu.memory_space<vmem>>, vector<1x64x64xbf16>
    %92 = vector.shape_cast %91 : vector<1x64x64xbf16> to vector<64x64xbf16>
    %cst_51 = arith.constant dense<0.000000e+00> : vector<8x64xf32>
    %93 = tpu.matmul %90, %92, %cst_51 {dimension_numbers = #tpu.dot_dimension_numbers<[1], [0], [0], [1], [0, 0, 1, 1], [], []>} : vector<8x64xbf16>, vector<64x64xbf16>, vector<8x64xf32> -> vector<8x64xf32>
    %94 = arith.addf %88, %93 : vector<8x64xf32>
    %95 = vector.extract_strided_slice %75 {offsets = [24, 0], sizes = [8, 64], strides = [1, 1]} : vector<256x64xf32> to vector<8x64xf32>
    %96 = arith.truncf %95 : vector<8x64xf32> to vector<8x64xbf16>
    %c3 = arith.constant 3 : index
    %c0_52 = arith.constant 0 : index
    %c0_53 = arith.constant 0 : index
    %97 = vector.load %arg4[%c3, %c0_52, %c0_53] : memref<32x64x64xbf16, #tpu.memory_space<vmem>>, vector<1x64x64xbf16>
    %98 = vector.shape_cast %97 : vector<1x64x64xbf16> to vector<64x64xbf16>
    %cst_54 = arith.constant dense<0.000000e+00> : vector<8x64xf32>
    %99 = tpu.matmul %96, %98, %cst_54 {dimension_numbers = #tpu.dot_dimension_numbers<[1], [0], [0], [1], [0, 0, 1, 1], [], []>} : vector<8x64xbf16>, vector<64x64xbf16>, vector<8x64xf32> -> vector<8x64xf32>
    %100 = arith.addf %94, %99 : vector<8x64xf32>
    %101 = vector.extract_strided_slice %75 {offsets = [32, 0], sizes = [8, 64], strides = [1, 1]} : vector<256x64xf32> to vector<8x64xf32>
    %102 = arith.truncf %101 : vector<8x64xf32> to vector<8x64xbf16>
    %c4 = arith.constant 4 : index
    %c0_55 = arith.constant 0 : index
    %c0_56 = arith.constant 0 : index
    %103 = vector.load %arg4[%c4, %c0_55, %c0_56] : memref<32x64x64xbf16, #tpu.memory_space<vmem>>, vector<1x64x64xbf16>
    %104 = vector.shape_cast %103 : vector<1x64x64xbf16> to vector<64x64xbf16>
    %cst_57 = arith.constant dense<0.000000e+00> : vector<8x64xf32>
    %105 = tpu.matmul %102, %104, %cst_57 {dimension_numbers = #tpu.dot_dimension_numbers<[1], [0], [0], [1], [0, 0, 1, 1], [], []>} : vector<8x64xbf16>, vector<64x64xbf16>, vector<8x64xf32> -> vector<8x64xf32>
    %106 = arith.addf %100, %105 : vector<8x64xf32>
    %107 = vector.extract_strided_slice %75 {offsets = [40, 0], sizes = [8, 64], strides = [1, 1]} : vector<256x64xf32> to vector<8x64xf32>
    %108 = arith.truncf %107 : vector<8x64xf32> to vector<8x64xbf16>
    %c5 = arith.constant 5 : index
    %c0_58 = arith.constant 0 : index
    %c0_59 = arith.constant 0 : index
    %109 = vector.load %arg4[%c5, %c0_58, %c0_59] : memref<32x64x64xbf16, #tpu.memory_space<vmem>>, vector<1x64x64xbf16>
    %110 = vector.shape_cast %109 : vector<1x64x64xbf16> to vector<64x64xbf16>
    %cst_60 = arith.constant dense<0.000000e+00> : vector<8x64xf32>
    %111 = tpu.matmul %108, %110, %cst_60 {dimension_numbers = #tpu.dot_dimension_numbers<[1], [0], [0], [1], [0, 0, 1, 1], [], []>} : vector<8x64xbf16>, vector<64x64xbf16>, vector<8x64xf32> -> vector<8x64xf32>
    %112 = arith.addf %106, %111 : vector<8x64xf32>
    %113 = vector.extract_strided_slice %75 {offsets = [48, 0], sizes = [8, 64], strides = [1, 1]} : vector<256x64xf32> to vector<8x64xf32>
    %114 = arith.truncf %113 : vector<8x64xf32> to vector<8x64xbf16>
    %c6 = arith.constant 6 : index
    %c0_61 = arith.constant 0 : index
    %c0_62 = arith.constant 0 : index
    %115 = vector.load %arg4[%c6, %c0_61, %c0_62] : memref<32x64x64xbf16, #tpu.memory_space<vmem>>, vector<1x64x64xbf16>
    %116 = vector.shape_cast %115 : vector<1x64x64xbf16> to vector<64x64xbf16>
    %cst_63 = arith.constant dense<0.000000e+00> : vector<8x64xf32>
    %117 = tpu.matmul %114, %116, %cst_63 {dimension_numbers = #tpu.dot_dimension_numbers<[1], [0], [0], [1], [0, 0, 1, 1], [], []>} : vector<8x64xbf16>, vector<64x64xbf16>, vector<8x64xf32> -> vector<8x64xf32>
    %118 = arith.addf %112, %117 : vector<8x64xf32>
    %119 = vector.extract_strided_slice %75 {offsets = [56, 0], sizes = [8, 64], strides = [1, 1]} : vector<256x64xf32> to vector<8x64xf32>
    %120 = arith.truncf %119 : vector<8x64xf32> to vector<8x64xbf16>
    %c7 = arith.constant 7 : index
    %c0_64 = arith.constant 0 : index
    %c0_65 = arith.constant 0 : index
    %121 = vector.load %arg4[%c7, %c0_64, %c0_65] : memref<32x64x64xbf16, #tpu.memory_space<vmem>>, vector<1x64x64xbf16>
    %122 = vector.shape_cast %121 : vector<1x64x64xbf16> to vector<64x64xbf16>
    %cst_66 = arith.constant dense<0.000000e+00> : vector<8x64xf32>
    %123 = tpu.matmul %120, %122, %cst_66 {dimension_numbers = #tpu.dot_dimension_numbers<[1], [0], [0], [1], [0, 0, 1, 1], [], []>} : vector<8x64xbf16>, vector<64x64xbf16>, vector<8x64xf32> -> vector<8x64xf32>
    %124 = arith.addf %118, %123 : vector<8x64xf32>
    %125 = vector.extract_strided_slice %75 {offsets = [64, 0], sizes = [8, 64], strides = [1, 1]} : vector<256x64xf32> to vector<8x64xf32>
    %126 = arith.truncf %125 : vector<8x64xf32> to vector<8x64xbf16>
    %c8_67 = arith.constant 8 : index
    %c0_68 = arith.constant 0 : index
    %c0_69 = arith.constant 0 : index
    %127 = vector.load %arg4[%c8_67, %c0_68, %c0_69] : memref<32x64x64xbf16, #tpu.memory_space<vmem>>, vector<1x64x64xbf16>
    %128 = vector.shape_cast %127 : vector<1x64x64xbf16> to vector<64x64xbf16>
    %cst_70 = arith.constant dense<0.000000e+00> : vector<8x64xf32>
    %129 = tpu.matmul %126, %128, %cst_70 {dimension_numbers = #tpu.dot_dimension_numbers<[1], [0], [0], [1], [0, 0, 1, 1], [], []>} : vector<8x64xbf16>, vector<64x64xbf16>, vector<8x64xf32> -> vector<8x64xf32>
    %130 = arith.addf %124, %129 : vector<8x64xf32>
    %131 = vector.extract_strided_slice %75 {offsets = [72, 0], sizes = [8, 64], strides = [1, 1]} : vector<256x64xf32> to vector<8x64xf32>
    %132 = arith.truncf %131 : vector<8x64xf32> to vector<8x64xbf16>
    %c9 = arith.constant 9 : index
    %c0_71 = arith.constant 0 : index
    %c0_72 = arith.constant 0 : index
    %133 = vector.load %arg4[%c9, %c0_71, %c0_72] : memref<32x64x64xbf16, #tpu.memory_space<vmem>>, vector<1x64x64xbf16>
    %134 = vector.shape_cast %133 : vector<1x64x64xbf16> to vector<64x64xbf16>
    %cst_73 = arith.constant dense<0.000000e+00> : vector<8x64xf32>
    %135 = tpu.matmul %132, %134, %cst_73 {dimension_numbers = #tpu.dot_dimension_numbers<[1], [0], [0], [1], [0, 0, 1, 1], [], []>} : vector<8x64xbf16>, vector<64x64xbf16>, vector<8x64xf32> -> vector<8x64xf32>
    %136 = arith.addf %130, %135 : vector<8x64xf32>
    %137 = vector.extract_strided_slice %75 {offsets = [80, 0], sizes = [8, 64], strides = [1, 1]} : vector<256x64xf32> to vector<8x64xf32>
    %138 = arith.truncf %137 : vector<8x64xf32> to vector<8x64xbf16>
    %c10 = arith.constant 10 : index
    %c0_74 = arith.constant 0 : index
    %c0_75 = arith.constant 0 : index
    %139 = vector.load %arg4[%c10, %c0_74, %c0_75] : memref<32x64x64xbf16, #tpu.memory_space<vmem>>, vector<1x64x64xbf16>
    %140 = vector.shape_cast %139 : vector<1x64x64xbf16> to vector<64x64xbf16>
    %cst_76 = arith.constant dense<0.000000e+00> : vector<8x64xf32>
    %141 = tpu.matmul %138, %140, %cst_76 {dimension_numbers = #tpu.dot_dimension_numbers<[1], [0], [0], [1], [0, 0, 1, 1], [], []>} : vector<8x64xbf16>, vector<64x64xbf16>, vector<8x64xf32> -> vector<8x64xf32>
    %142 = arith.addf %136, %141 : vector<8x64xf32>
    %143 = vector.extract_strided_slice %75 {offsets = [88, 0], sizes = [8, 64], strides = [1, 1]} : vector<256x64xf32> to vector<8x64xf32>
    %144 = arith.truncf %143 : vector<8x64xf32> to vector<8x64xbf16>
    %c11 = arith.constant 11 : index
    %c0_77 = arith.constant 0 : index
    %c0_78 = arith.constant 0 : index
    %145 = vector.load %arg4[%c11, %c0_77, %c0_78] : memref<32x64x64xbf16, #tpu.memory_space<vmem>>, vector<1x64x64xbf16>
    %146 = vector.shape_cast %145 : vector<1x64x64xbf16> to vector<64x64xbf16>
    %cst_79 = arith.constant dense<0.000000e+00> : vector<8x64xf32>
    %147 = tpu.matmul %144, %146, %cst_79 {dimension_numbers = #tpu.dot_dimension_numbers<[1], [0], [0], [1], [0, 0, 1, 1], [], []>} : vector<8x64xbf16>, vector<64x64xbf16>, vector<8x64xf32> -> vector<8x64xf32>
    %148 = arith.addf %142, %147 : vector<8x64xf32>
    %149 = vector.extract_strided_slice %75 {offsets = [96, 0], sizes = [8, 64], strides = [1, 1]} : vector<256x64xf32> to vector<8x64xf32>
    %150 = arith.truncf %149 : vector<8x64xf32> to vector<8x64xbf16>
    %c12 = arith.constant 12 : index
    %c0_80 = arith.constant 0 : index
    %c0_81 = arith.constant 0 : index
    %151 = vector.load %arg4[%c12, %c0_80, %c0_81] : memref<32x64x64xbf16, #tpu.memory_space<vmem>>, vector<1x64x64xbf16>
    %152 = vector.shape_cast %151 : vector<1x64x64xbf16> to vector<64x64xbf16>
    %cst_82 = arith.constant dense<0.000000e+00> : vector<8x64xf32>
    %153 = tpu.matmul %150, %152, %cst_82 {dimension_numbers = #tpu.dot_dimension_numbers<[1], [0], [0], [1], [0, 0, 1, 1], [], []>} : vector<8x64xbf16>, vector<64x64xbf16>, vector<8x64xf32> -> vector<8x64xf32>
    %154 = arith.addf %148, %153 : vector<8x64xf32>
    %155 = vector.extract_strided_slice %75 {offsets = [104, 0], sizes = [8, 64], strides = [1, 1]} : vector<256x64xf32> to vector<8x64xf32>
    %156 = arith.truncf %155 : vector<8x64xf32> to vector<8x64xbf16>
    %c13 = arith.constant 13 : index
    %c0_83 = arith.constant 0 : index
    %c0_84 = arith.constant 0 : index
    %157 = vector.load %arg4[%c13, %c0_83, %c0_84] : memref<32x64x64xbf16, #tpu.memory_space<vmem>>, vector<1x64x64xbf16>
    %158 = vector.shape_cast %157 : vector<1x64x64xbf16> to vector<64x64xbf16>
    %cst_85 = arith.constant dense<0.000000e+00> : vector<8x64xf32>
    %159 = tpu.matmul %156, %158, %cst_85 {dimension_numbers = #tpu.dot_dimension_numbers<[1], [0], [0], [1], [0, 0, 1, 1], [], []>} : vector<8x64xbf16>, vector<64x64xbf16>, vector<8x64xf32> -> vector<8x64xf32>
    %160 = arith.addf %154, %159 : vector<8x64xf32>
    %161 = vector.extract_strided_slice %75 {offsets = [112, 0], sizes = [8, 64], strides = [1, 1]} : vector<256x64xf32> to vector<8x64xf32>
    %162 = arith.truncf %161 : vector<8x64xf32> to vector<8x64xbf16>
    %c14 = arith.constant 14 : index
    %c0_86 = arith.constant 0 : index
    %c0_87 = arith.constant 0 : index
    %163 = vector.load %arg4[%c14, %c0_86, %c0_87] : memref<32x64x64xbf16, #tpu.memory_space<vmem>>, vector<1x64x64xbf16>
    %164 = vector.shape_cast %163 : vector<1x64x64xbf16> to vector<64x64xbf16>
    %cst_88 = arith.constant dense<0.000000e+00> : vector<8x64xf32>
    %165 = tpu.matmul %162, %164, %cst_88 {dimension_numbers = #tpu.dot_dimension_numbers<[1], [0], [0], [1], [0, 0, 1, 1], [], []>} : vector<8x64xbf16>, vector<64x64xbf16>, vector<8x64xf32> -> vector<8x64xf32>
    %166 = arith.addf %160, %165 : vector<8x64xf32>
    %167 = vector.extract_strided_slice %75 {offsets = [120, 0], sizes = [8, 64], strides = [1, 1]} : vector<256x64xf32> to vector<8x64xf32>
    %168 = arith.truncf %167 : vector<8x64xf32> to vector<8x64xbf16>
    %c15 = arith.constant 15 : index
    %c0_89 = arith.constant 0 : index
    %c0_90 = arith.constant 0 : index
    %169 = vector.load %arg4[%c15, %c0_89, %c0_90] : memref<32x64x64xbf16, #tpu.memory_space<vmem>>, vector<1x64x64xbf16>
    %170 = vector.shape_cast %169 : vector<1x64x64xbf16> to vector<64x64xbf16>
    %cst_91 = arith.constant dense<0.000000e+00> : vector<8x64xf32>
    %171 = tpu.matmul %168, %170, %cst_91 {dimension_numbers = #tpu.dot_dimension_numbers<[1], [0], [0], [1], [0, 0, 1, 1], [], []>} : vector<8x64xbf16>, vector<64x64xbf16>, vector<8x64xf32> -> vector<8x64xf32>
    %172 = arith.addf %166, %171 : vector<8x64xf32>
    %173 = vector.extract_strided_slice %75 {offsets = [128, 0], sizes = [8, 64], strides = [1, 1]} : vector<256x64xf32> to vector<8x64xf32>
    %174 = arith.truncf %173 : vector<8x64xf32> to vector<8x64xbf16>
    %c16_92 = arith.constant 16 : index
    %c0_93 = arith.constant 0 : index
    %c0_94 = arith.constant 0 : index
    %175 = vector.load %arg4[%c16_92, %c0_93, %c0_94] : memref<32x64x64xbf16, #tpu.memory_space<vmem>>, vector<1x64x64xbf16>
    %176 = vector.shape_cast %175 : vector<1x64x64xbf16> to vector<64x64xbf16>
    %cst_95 = arith.constant dense<0.000000e+00> : vector<8x64xf32>
    %177 = tpu.matmul %174, %176, %cst_95 {dimension_numbers = #tpu.dot_dimension_numbers<[1], [0], [0], [1], [0, 0, 1, 1], [], []>} : vector<8x64xbf16>, vector<64x64xbf16>, vector<8x64xf32> -> vector<8x64xf32>
    %178 = arith.addf %172, %177 : vector<8x64xf32>
    %179 = vector.extract_strided_slice %75 {offsets = [136, 0], sizes = [8, 64], strides = [1, 1]} : vector<256x64xf32> to vector<8x64xf32>
    %180 = arith.truncf %179 : vector<8x64xf32> to vector<8x64xbf16>
    %c17 = arith.constant 17 : index
    %c0_96 = arith.constant 0 : index
    %c0_97 = arith.constant 0 : index
    %181 = vector.load %arg4[%c17, %c0_96, %c0_97] : memref<32x64x64xbf16, #tpu.memory_space<vmem>>, vector<1x64x64xbf16>
    %182 = vector.shape_cast %181 : vector<1x64x64xbf16> to vector<64x64xbf16>
    %cst_98 = arith.constant dense<0.000000e+00> : vector<8x64xf32>
    %183 = tpu.matmul %180, %182, %cst_98 {dimension_numbers = #tpu.dot_dimension_numbers<[1], [0], [0], [1], [0, 0, 1, 1], [], []>} : vector<8x64xbf16>, vector<64x64xbf16>, vector<8x64xf32> -> vector<8x64xf32>
    %184 = arith.addf %178, %183 : vector<8x64xf32>
    %185 = vector.extract_strided_slice %75 {offsets = [144, 0], sizes = [8, 64], strides = [1, 1]} : vector<256x64xf32> to vector<8x64xf32>
    %186 = arith.truncf %185 : vector<8x64xf32> to vector<8x64xbf16>
    %c18 = arith.constant 18 : index
    %c0_99 = arith.constant 0 : index
    %c0_100 = arith.constant 0 : index
    %187 = vector.load %arg4[%c18, %c0_99, %c0_100] : memref<32x64x64xbf16, #tpu.memory_space<vmem>>, vector<1x64x64xbf16>
    %188 = vector.shape_cast %187 : vector<1x64x64xbf16> to vector<64x64xbf16>
    %cst_101 = arith.constant dense<0.000000e+00> : vector<8x64xf32>
    %189 = tpu.matmul %186, %188, %cst_101 {dimension_numbers = #tpu.dot_dimension_numbers<[1], [0], [0], [1], [0, 0, 1, 1], [], []>} : vector<8x64xbf16>, vector<64x64xbf16>, vector<8x64xf32> -> vector<8x64xf32>
    %190 = arith.addf %184, %189 : vector<8x64xf32>
    %191 = vector.extract_strided_slice %75 {offsets = [152, 0], sizes = [8, 64], strides = [1, 1]} : vector<256x64xf32> to vector<8x64xf32>
    %192 = arith.truncf %191 : vector<8x64xf32> to vector<8x64xbf16>
    %c19 = arith.constant 19 : index
    %c0_102 = arith.constant 0 : index
    %c0_103 = arith.constant 0 : index
    %193 = vector.load %arg4[%c19, %c0_102, %c0_103] : memref<32x64x64xbf16, #tpu.memory_space<vmem>>, vector<1x64x64xbf16>
    %194 = vector.shape_cast %193 : vector<1x64x64xbf16> to vector<64x64xbf16>
    %cst_104 = arith.constant dense<0.000000e+00> : vector<8x64xf32>
    %195 = tpu.matmul %192, %194, %cst_104 {dimension_numbers = #tpu.dot_dimension_numbers<[1], [0], [0], [1], [0, 0, 1, 1], [], []>} : vector<8x64xbf16>, vector<64x64xbf16>, vector<8x64xf32> -> vector<8x64xf32>
    %196 = arith.addf %190, %195 : vector<8x64xf32>
    %197 = vector.extract_strided_slice %75 {offsets = [160, 0], sizes = [8, 64], strides = [1, 1]} : vector<256x64xf32> to vector<8x64xf32>
    %198 = arith.truncf %197 : vector<8x64xf32> to vector<8x64xbf16>
    %c20 = arith.constant 20 : index
    %c0_105 = arith.constant 0 : index
    %c0_106 = arith.constant 0 : index
    %199 = vector.load %arg4[%c20, %c0_105, %c0_106] : memref<32x64x64xbf16, #tpu.memory_space<vmem>>, vector<1x64x64xbf16>
    %200 = vector.shape_cast %199 : vector<1x64x64xbf16> to vector<64x64xbf16>
    %cst_107 = arith.constant dense<0.000000e+00> : vector<8x64xf32>
    %201 = tpu.matmul %198, %200, %cst_107 {dimension_numbers = #tpu.dot_dimension_numbers<[1], [0], [0], [1], [0, 0, 1, 1], [], []>} : vector<8x64xbf16>, vector<64x64xbf16>, vector<8x64xf32> -> vector<8x64xf32>
    %202 = arith.addf %196, %201 : vector<8x64xf32>
    %203 = vector.extract_strided_slice %75 {offsets = [168, 0], sizes = [8, 64], strides = [1, 1]} : vector<256x64xf32> to vector<8x64xf32>
    %204 = arith.truncf %203 : vector<8x64xf32> to vector<8x64xbf16>
    %c21 = arith.constant 21 : index
    %c0_108 = arith.constant 0 : index
    %c0_109 = arith.constant 0 : index
    %205 = vector.load %arg4[%c21, %c0_108, %c0_109] : memref<32x64x64xbf16, #tpu.memory_space<vmem>>, vector<1x64x64xbf16>
    %206 = vector.shape_cast %205 : vector<1x64x64xbf16> to vector<64x64xbf16>
    %cst_110 = arith.constant dense<0.000000e+00> : vector<8x64xf32>
    %207 = tpu.matmul %204, %206, %cst_110 {dimension_numbers = #tpu.dot_dimension_numbers<[1], [0], [0], [1], [0, 0, 1, 1], [], []>} : vector<8x64xbf16>, vector<64x64xbf16>, vector<8x64xf32> -> vector<8x64xf32>
    %208 = arith.addf %202, %207 : vector<8x64xf32>
    %209 = vector.extract_strided_slice %75 {offsets = [176, 0], sizes = [8, 64], strides = [1, 1]} : vector<256x64xf32> to vector<8x64xf32>
    %210 = arith.truncf %209 : vector<8x64xf32> to vector<8x64xbf16>
    %c22 = arith.constant 22 : index
    %c0_111 = arith.constant 0 : index
    %c0_112 = arith.constant 0 : index
    %211 = vector.load %arg4[%c22, %c0_111, %c0_112] : memref<32x64x64xbf16, #tpu.memory_space<vmem>>, vector<1x64x64xbf16>
    %212 = vector.shape_cast %211 : vector<1x64x64xbf16> to vector<64x64xbf16>
    %cst_113 = arith.constant dense<0.000000e+00> : vector<8x64xf32>
    %213 = tpu.matmul %210, %212, %cst_113 {dimension_numbers = #tpu.dot_dimension_numbers<[1], [0], [0], [1], [0, 0, 1, 1], [], []>} : vector<8x64xbf16>, vector<64x64xbf16>, vector<8x64xf32> -> vector<8x64xf32>
    %214 = arith.addf %208, %213 : vector<8x64xf32>
    %215 = vector.extract_strided_slice %75 {offsets = [184, 0], sizes = [8, 64], strides = [1, 1]} : vector<256x64xf32> to vector<8x64xf32>
    %216 = arith.truncf %215 : vector<8x64xf32> to vector<8x64xbf16>
    %c23 = arith.constant 23 : index
    %c0_114 = arith.constant 0 : index
    %c0_115 = arith.constant 0 : index
    %217 = vector.load %arg4[%c23, %c0_114, %c0_115] : memref<32x64x64xbf16, #tpu.memory_space<vmem>>, vector<1x64x64xbf16>
    %218 = vector.shape_cast %217 : vector<1x64x64xbf16> to vector<64x64xbf16>
    %cst_116 = arith.constant dense<0.000000e+00> : vector<8x64xf32>
    %219 = tpu.matmul %216, %218, %cst_116 {dimension_numbers = #tpu.dot_dimension_numbers<[1], [0], [0], [1], [0, 0, 1, 1], [], []>} : vector<8x64xbf16>, vector<64x64xbf16>, vector<8x64xf32> -> vector<8x64xf32>
    %220 = arith.addf %214, %219 : vector<8x64xf32>
    %221 = vector.extract_strided_slice %75 {offsets = [192, 0], sizes = [8, 64], strides = [1, 1]} : vector<256x64xf32> to vector<8x64xf32>
    %222 = arith.truncf %221 : vector<8x64xf32> to vector<8x64xbf16>
    %c24_117 = arith.constant 24 : index
    %c0_118 = arith.constant 0 : index
    %c0_119 = arith.constant 0 : index
    %223 = vector.load %arg4[%c24_117, %c0_118, %c0_119] : memref<32x64x64xbf16, #tpu.memory_space<vmem>>, vector<1x64x64xbf16>
    %224 = vector.shape_cast %223 : vector<1x64x64xbf16> to vector<64x64xbf16>
    %cst_120 = arith.constant dense<0.000000e+00> : vector<8x64xf32>
    %225 = tpu.matmul %222, %224, %cst_120 {dimension_numbers = #tpu.dot_dimension_numbers<[1], [0], [0], [1], [0, 0, 1, 1], [], []>} : vector<8x64xbf16>, vector<64x64xbf16>, vector<8x64xf32> -> vector<8x64xf32>
    %226 = arith.addf %220, %225 : vector<8x64xf32>
    %227 = vector.extract_strided_slice %75 {offsets = [200, 0], sizes = [8, 64], strides = [1, 1]} : vector<256x64xf32> to vector<8x64xf32>
    %228 = arith.truncf %227 : vector<8x64xf32> to vector<8x64xbf16>
    %c25 = arith.constant 25 : index
    %c0_121 = arith.constant 0 : index
    %c0_122 = arith.constant 0 : index
    %229 = vector.load %arg4[%c25, %c0_121, %c0_122] : memref<32x64x64xbf16, #tpu.memory_space<vmem>>, vector<1x64x64xbf16>
    %230 = vector.shape_cast %229 : vector<1x64x64xbf16> to vector<64x64xbf16>
    %cst_123 = arith.constant dense<0.000000e+00> : vector<8x64xf32>
    %231 = tpu.matmul %228, %230, %cst_123 {dimension_numbers = #tpu.dot_dimension_numbers<[1], [0], [0], [1], [0, 0, 1, 1], [], []>} : vector<8x64xbf16>, vector<64x64xbf16>, vector<8x64xf32> -> vector<8x64xf32>
    %232 = arith.addf %226, %231 : vector<8x64xf32>
    %233 = vector.extract_strided_slice %75 {offsets = [208, 0], sizes = [8, 64], strides = [1, 1]} : vector<256x64xf32> to vector<8x64xf32>
    %234 = arith.truncf %233 : vector<8x64xf32> to vector<8x64xbf16>
    %c26 = arith.constant 26 : index
    %c0_124 = arith.constant 0 : index
    %c0_125 = arith.constant 0 : index
    %235 = vector.load %arg4[%c26, %c0_124, %c0_125] : memref<32x64x64xbf16, #tpu.memory_space<vmem>>, vector<1x64x64xbf16>
    %236 = vector.shape_cast %235 : vector<1x64x64xbf16> to vector<64x64xbf16>
    %cst_126 = arith.constant dense<0.000000e+00> : vector<8x64xf32>
    %237 = tpu.matmul %234, %236, %cst_126 {dimension_numbers = #tpu.dot_dimension_numbers<[1], [0], [0], [1], [0, 0, 1, 1], [], []>} : vector<8x64xbf16>, vector<64x64xbf16>, vector<8x64xf32> -> vector<8x64xf32>
    %238 = arith.addf %232, %237 : vector<8x64xf32>
    %239 = vector.extract_strided_slice %75 {offsets = [216, 0], sizes = [8, 64], strides = [1, 1]} : vector<256x64xf32> to vector<8x64xf32>
    %240 = arith.truncf %239 : vector<8x64xf32> to vector<8x64xbf16>
    %c27 = arith.constant 27 : index
    %c0_127 = arith.constant 0 : index
    %c0_128 = arith.constant 0 : index
    %241 = vector.load %arg4[%c27, %c0_127, %c0_128] : memref<32x64x64xbf16, #tpu.memory_space<vmem>>, vector<1x64x64xbf16>
    %242 = vector.shape_cast %241 : vector<1x64x64xbf16> to vector<64x64xbf16>
    %cst_129 = arith.constant dense<0.000000e+00> : vector<8x64xf32>
    %243 = tpu.matmul %240, %242, %cst_129 {dimension_numbers = #tpu.dot_dimension_numbers<[1], [0], [0], [1], [0, 0, 1, 1], [], []>} : vector<8x64xbf16>, vector<64x64xbf16>, vector<8x64xf32> -> vector<8x64xf32>
    %244 = arith.addf %238, %243 : vector<8x64xf32>
    %245 = vector.extract_strided_slice %75 {offsets = [224, 0], sizes = [8, 64], strides = [1, 1]} : vector<256x64xf32> to vector<8x64xf32>
    %246 = arith.truncf %245 : vector<8x64xf32> to vector<8x64xbf16>
    %c28 = arith.constant 28 : index
    %c0_130 = arith.constant 0 : index
    %c0_131 = arith.constant 0 : index
    %247 = vector.load %arg4[%c28, %c0_130, %c0_131] : memref<32x64x64xbf16, #tpu.memory_space<vmem>>, vector<1x64x64xbf16>
    %248 = vector.shape_cast %247 : vector<1x64x64xbf16> to vector<64x64xbf16>
    %cst_132 = arith.constant dense<0.000000e+00> : vector<8x64xf32>
    %249 = tpu.matmul %246, %248, %cst_132 {dimension_numbers = #tpu.dot_dimension_numbers<[1], [0], [0], [1], [0, 0, 1, 1], [], []>} : vector<8x64xbf16>, vector<64x64xbf16>, vector<8x64xf32> -> vector<8x64xf32>
    %250 = arith.addf %244, %249 : vector<8x64xf32>
    %251 = vector.extract_strided_slice %75 {offsets = [232, 0], sizes = [8, 64], strides = [1, 1]} : vector<256x64xf32> to vector<8x64xf32>
    %252 = arith.truncf %251 : vector<8x64xf32> to vector<8x64xbf16>
    %c29 = arith.constant 29 : index
    %c0_133 = arith.constant 0 : index
    %c0_134 = arith.constant 0 : index
    %253 = vector.load %arg4[%c29, %c0_133, %c0_134] : memref<32x64x64xbf16, #tpu.memory_space<vmem>>, vector<1x64x64xbf16>
    %254 = vector.shape_cast %253 : vector<1x64x64xbf16> to vector<64x64xbf16>
    %cst_135 = arith.constant dense<0.000000e+00> : vector<8x64xf32>
    %255 = tpu.matmul %252, %254, %cst_135 {dimension_numbers = #tpu.dot_dimension_numbers<[1], [0], [0], [1], [0, 0, 1, 1], [], []>} : vector<8x64xbf16>, vector<64x64xbf16>, vector<8x64xf32> -> vector<8x64xf32>
    %256 = arith.addf %250, %255 : vector<8x64xf32>
    %257 = vector.extract_strided_slice %75 {offsets = [240, 0], sizes = [8, 64], strides = [1, 1]} : vector<256x64xf32> to vector<8x64xf32>
    %258 = arith.truncf %257 : vector<8x64xf32> to vector<8x64xbf16>
    %c30 = arith.constant 30 : index
    %c0_136 = arith.constant 0 : index
    %c0_137 = arith.constant 0 : index
    %259 = vector.load %arg4[%c30, %c0_136, %c0_137] : memref<32x64x64xbf16, #tpu.memory_space<vmem>>, vector<1x64x64xbf16>
    %260 = vector.shape_cast %259 : vector<1x64x64xbf16> to vector<64x64xbf16>
    %cst_138 = arith.constant dense<0.000000e+00> : vector<8x64xf32>
    %261 = tpu.matmul %258, %260, %cst_138 {dimension_numbers = #tpu.dot_dimension_numbers<[1], [0], [0], [1], [0, 0, 1, 1], [], []>} : vector<8x64xbf16>, vector<64x64xbf16>, vector<8x64xf32> -> vector<8x64xf32>
    %262 = arith.addf %256, %261 : vector<8x64xf32>
    %263 = vector.extract_strided_slice %75 {offsets = [248, 0], sizes = [8, 64], strides = [1, 1]} : vector<256x64xf32> to vector<8x64xf32>
    %264 = arith.truncf %263 : vector<8x64xf32> to vector<8x64xbf16>
    %c31 = arith.constant 31 : index
    %c0_139 = arith.constant 0 : index
    %c0_140 = arith.constant 0 : index
    %265 = vector.load %arg4[%c31, %c0_139, %c0_140] : memref<32x64x64xbf16, #tpu.memory_space<vmem>>, vector<1x64x64xbf16>
    %266 = vector.shape_cast %265 : vector<1x64x64xbf16> to vector<64x64xbf16>
    %cst_141 = arith.constant dense<0.000000e+00> : vector<8x64xf32>
    %267 = tpu.matmul %264, %266, %cst_141 {dimension_numbers = #tpu.dot_dimension_numbers<[1], [0], [0], [1], [0, 0, 1, 1], [], []>} : vector<8x64xbf16>, vector<64x64xbf16>, vector<8x64xf32> -> vector<8x64xf32>
    %268 = arith.addf %262, %267 : vector<8x64xf32>
    %c0_142 = arith.constant 0 : index
    %c0_143 = arith.constant 0 : index
    %269 = vector.load %arg5[%c0_142, %c0_143] : memref<1x64xf32, #tpu.memory_space<vmem>>, vector<1x64xf32>
    %270 = vector.broadcast %269 : vector<1x64xf32> to vector<8x64xf32>
    %271 = arith.addf %268, %270 : vector<8x64xf32>
    %cst_144 = arith.constant 0.000000e+00 : f32
    %272 = vector.broadcast %cst_144 : f32 to vector<8x64xf32>
    %273 = arith.maximumf %271, %272 : vector<8x64xf32>
    %c0_145 = arith.constant 0 : index
    %c0_146 = arith.constant 0 : index
    %274 = vector.load %arg6[%c0_145, %c0_146] : memref<1x64xf32, #tpu.memory_space<vmem>>, vector<1x64xf32>
    %cst_147 = arith.constant dense<0.000000e+00> : vector<1x8xf32>
    %275 = tpu.matmul %274, %273, %cst_147 {dimension_numbers = #tpu.dot_dimension_numbers<[1], [1], [0], [0], [0, 0, 1, 0], [], []>} : vector<1x64xf32>, vector<8x64xf32>, vector<1x8xf32> -> vector<1x8xf32>
    %c0_148 = arith.constant 0 : index
    %c0_149 = arith.constant 0 : index
    %276 = vector.load %arg7[%c0_148, %c0_149] : memref<1x1xf32, #tpu.memory_space<vmem>>, vector<1x1xf32>
    %277 = vector.broadcast %276 : vector<1x1xf32> to vector<1x8xf32>
    %278 = arith.addf %275, %277 : vector<1x8xf32>
    %cst_150 = arith.constant 0.000000e+00 : f32
    %279 = vector.broadcast %cst_150 : f32 to vector<1x8xf32>
    %280 = arith.subf %279, %278 : vector<1x8xf32>
    %281 = math.exp %280 : vector<1x8xf32>
    %cst_151 = arith.constant 1.000000e+00 : f32
    %282 = vector.broadcast %cst_151 : f32 to vector<1x8xf32>
    %283 = arith.addf %282, %281 : vector<1x8xf32>
    %cst_152 = arith.constant 1.000000e+00 : f32
    %284 = vector.broadcast %cst_152 : f32 to vector<1x8xf32>
    %285 = arith.divf %284, %283 : vector<1x8xf32>
    %c0_153 = arith.constant 0 : index
    %c0_154 = arith.constant 0 : index
    %c0_155 = arith.constant 0 : index
    %286 = vector.load %arg8[%c0_153, %c0_154, %c0_155] : memref<1x1x8xf32, #tpu.memory_space<vmem>>, vector<1x1x8xf32>
    %287 = vector.shape_cast %286 : vector<1x1x8xf32> to vector<1x8xf32>
    %288 = vector.shape_cast %285 : vector<1x8xf32> to vector<1x1x8xf32>
    tpu.vector_store %arg8[%c0_153, %c0_154, %c0_155], %288 {strides = array<i32>} : memref<1x1x8xf32, #tpu.memory_space<vmem>>, vector<1x1x8xf32>,
    return
  }
  func.func @transform_0(%arg0: i32) -> (i32, i32) {
    %c0_i32 = arith.constant 0 : i32
    %c0_i32_0 = arith.constant 0 : i32
    return %arg0, %c0_i32 : i32, i32
  }
  func.func @transform_1(%arg0: i32) -> (i32, i32) {
    %c0_i32 = arith.constant 0 : i32
    %c0_i32_0 = arith.constant 0 : i32
    %c0_i32_1 = arith.constant 0 : i32
    return %c0_i32, %c0_i32_0 : i32, i32
  }
  func.func @transform_2(%arg0: i32) -> (i32, i32) {
    %c0_i32 = arith.constant 0 : i32
    %c0_i32_0 = arith.constant 0 : i32
    %c0_i32_1 = arith.constant 0 : i32
    return %c0_i32, %c0_i32_0 : i32, i32
  }
  func.func @transform_3(%arg0: i32) -> (i32, i32, i32) {
    %c0_i32 = arith.constant 0 : i32
    %c0_i32_0 = arith.constant 0 : i32
    %c0_i32_1 = arith.constant 0 : i32
    %c0_i32_2 = arith.constant 0 : i32
    return %c0_i32, %c0_i32_0, %c0_i32_1 : i32, i32, i32
  }
  func.func @transform_4(%arg0: i32) -> (i32, i32) {
    %c0_i32 = arith.constant 0 : i32
    %c0_i32_0 = arith.constant 0 : i32
    %c0_i32_1 = arith.constant 0 : i32
    return %c0_i32, %c0_i32_0 : i32, i32
  }
  func.func @transform_5(%arg0: i32) -> (i32, i32) {
    %c0_i32 = arith.constant 0 : i32
    %c0_i32_0 = arith.constant 0 : i32
    %c0_i32_1 = arith.constant 0 : i32
    return %c0_i32, %c0_i32_0 : i32, i32
  }
  func.func @transform_6(%arg0: i32) -> (i32, i32) {
    %c0_i32 = arith.constant 0 : i32
    %c0_i32_0 = arith.constant 0 : i32
    %c0_i32_1 = arith.constant 0 : i32
    return %c0_i32, %c0_i32_0 : i32, i32
  }
  func.func @transform_7(%arg0: i32) -> (i32, i32, i32) {
    %c0_i32 = arith.constant 0 : i32
    %c0_i32_0 = arith.constant 0 : i32
    %c0_i32_1 = arith.constant 0 : i32
    return %arg0, %c0_i32, %c0_i32_0 : i32, i32, i32
  }
}

</mosaic_0001>

<llo_original>
// kernel: conv1d_model_pallas.1
$region0: #{conv1d_model_pallas.1}
  #allocation0 [shape = 'u32[]', space=smem, size = 0x4, offset = 0x4, fixed_abs, tag = 'smem constant byte address 0x4 - core index']
  #allocation1 [shape = 'u32[144,128]{1,0:T(1,128)}', space=vmem, size = 0x12000, scoped, tag = 'internal scratch']
  #allocation2 [shape = 'bf16[256,264]{1,0:T(16,128)(2,1)}', space=vmem, size = 0x30000, scoped, tag = 'scratch operand']
  #allocation3 [shape = 'f32[1,1]{1,0:T(1,128)S(1)}', space=vmem, size = 0x200, scoped, tag = 'scoped memory for conv1d_model_pallas.1']
  %s0 = inlined_call_operand.vmem [shape: bf16[8,512], index: 0, kind: input, shape index: {}]
  %s1 = inlined_call_operand.vmem [shape: bf16[264,128], index: 1, kind: input, shape index: {}]
  %s2 = inlined_call_operand.vmem [shape: f32[1,64], index: 2, kind: input, shape index: {}]
  %s3 = inlined_call_operand.vmem [shape: bf16[32,64,64], index: 3, kind: input, shape index: {}]
  %s4 = inlined_call_operand.vmem [shape: f32[1,64], index: 4, kind: input, shape index: {}]
  %s5 = inlined_call_operand.vmem [shape: f32[1,64], index: 5, kind: input, shape index: {}]
  %s6 = inlined_call_operand.<no memory space> [shape: f32[1,1], index: 6, kind: input, shape index: {}]
  %s7 = inlined_call_operand.vmem [shape: f32[1,1,8], index: 7, kind: output, shape index: {}]
  %s8 = sld [smem:[#allocation0]]
  $region38: #{conv1d_model_pallas.1} parent=0
    _
  %s10 = ssub.s32 1, %s8
  %s11 = scalar_select 0, %s10, %s8
  %v12 = vstv %s6
  %13 = vst [vmem:[#allocation3] sm:$0x1] %v12
  // Predicated region
  $region2: #{conv1d_model_pallas.1} parent=0 // pred_check
    _
  $region3: #{conv1d_model_pallas.1} parent=0 // pred_check_branch
    %15 = sbr.rel (0) target = $region5
  $region4: #{conv1d_model_pallas.1} parent=0 // pred_region
    _
  $region5: #{conv1d_model_pallas.1} parent=0 // pred_fallthru
    _
  // Predicated region
  $region6: #{conv1d_model_pallas.1} parent=0 // pred_check
    _
  $region7: #{conv1d_model_pallas.1} parent=0 // pred_check_branch
    %17 = sbr.rel (0) target = $region9
  $region8: #{conv1d_model_pallas.1} parent=0 // pred_region
    _
  $region9: #{conv1d_model_pallas.1} parent=0 // pred_fallthru
    _
  // Predicated region
  $region10: #{conv1d_model_pallas.1} parent=0 // pred_check
    _
  $region11: #{conv1d_model_pallas.1} parent=0 // pred_check_branch
    %19 = sbr.rel (0) target = $region13
  $region12: #{conv1d_model_pallas.1} parent=0 // pred_region
    _
  $region13: #{conv1d_model_pallas.1} parent=0 // pred_fallthru
    _
  // Predicated region
  $region14: #{conv1d_model_pallas.1} parent=0 // pred_check
    _
  $region15: #{conv1d_model_pallas.1} parent=0 // pred_check_branch
    %21 = sbr.rel (0) target = $region17
  $region16: #{conv1d_model_pallas.1} parent=0 // pred_region
    _
  $region17: #{conv1d_model_pallas.1} parent=0 // pred_fallthru
    _
  // Predicated region
  $region18: #{conv1d_model_pallas.1} parent=0 // pred_check
    _
  $region19: #{conv1d_model_pallas.1} parent=0 // pred_check_branch
    %23 = sbr.rel (0) target = $region21
  $region20: #{conv1d_model_pallas.1} parent=0 // pred_region
    _
  $region21: #{conv1d_model_pallas.1} parent=0 // pred_fallthru
    _
  // Predicated region
  $region22: #{conv1d_model_pallas.1} parent=0 // pred_check
    _
  $region23: #{conv1d_model_pallas.1} parent=0 // pred_check_branch
    %25 = sbr.rel (0) target = $region25
  $region24: #{conv1d_model_pallas.1} parent=0 // pred_region
    _
  $region25: #{conv1d_model_pallas.1} parent=0 // pred_fallthru
    _
  // Predicated region
  $region26: #{conv1d_model_pallas.1} parent=0 // pred_check
    _
  $region27: #{conv1d_model_pallas.1} parent=0 // pred_check_branch
    %27 = sbr.rel (0) target = $region29
  $region28: #{conv1d_model_pallas.1} parent=0 // pred_region
    _
  $region29: #{conv1d_model_pallas.1} parent=0 // pred_fallthru
    _
  %v29 = vld [vmem:[%s0] sm:$0xff]
  %v30 = vld [vmem:[%s0 + $0x8] sm:$0xff]
  %v33 = vunpack.c.l.b16 %v29
  %v34 = vunpack.c.h.b16 %v29
  %v35 = vunpack.c.l.b16 %v30
  %v36 = vpack.c.b16 %v33, %v33
  %v37 = vpack.c.b16 %v34, %v34
  %v38 = vpack.c.b16 %v35, %v35
  %42 = vst [vmem:[#allocation2] sm:$0xf] %v36
  %43 = vst [vmem:[#allocation2 + $0x8] sm:$0xf] %v37
  %vm44 = vcmask 60416
  %45 = vst.msk [vmem:[#allocation2 + $0x10] sm:$0xf] %vm44, %v38
  %46 = vrot.lane.b32.xlu0 %v36, 120
  %v47 = vpop.permute.xlu0 %46
  %48 = vrot.lane.b32.xlu0 %v37, 120
  %v49 = vpop.permute.xlu0 %48
  %50 = vrot.lane.b32.xlu0 %v38, 120
  %v51 = vpop.permute.xlu0 %50
  %vm52 = vcmask 982016
  %v53 = vsel %vm52, %v47, %v49
  %v54 = vsel %vm52, %v49, %v51
  %58 = vst [vmem:[#allocation2] sm:$0xf0] %v53
  %59 = vst [vmem:[#allocation2 + $0x8] sm:$0xf0] %v54
  %vm60 = vcmask 64516
  %61 = vst.msk [vmem:[#allocation2 + $0x10] sm:$0xf0] %vm60, %v51
  %62 = vrot.lane.b32.xlu0 %v36, 112
  %v63 = vpop.permute.xlu0 %62
  %64 = vrot.lane.b32.xlu0 %v37, 112
  %v65 = vpop.permute.xlu0 %64
  %66 = vrot.lane.b32.xlu0 %v38, 112
  %v67 = vpop.permute.xlu0 %66
  %vm68 = vcmask 916480
  %v69 = vsel %vm68, %v63, %v65
  %v70 = vsel %vm68, %v65, %v67
  %74 = vst [vmem:[#allocation2 + $0x18] sm:$0xf] %v69
  %75 = vst [vmem:[#allocation2 + $0x20] sm:$0xf] %v70
  %76 = vst.msk [vmem:[#allocation2 + $0x28] sm:$0xf] %vm44, %v67
  %77 = vrot.lane.b32.xlu0 %v36, 104
  %v78 = vpop.permute.xlu0 %77
  %79 = vrot.lane.b32.xlu0 %v37, 104
  %v80 = vpop.permute.xlu0 %79
  %81 = vrot.lane.b32.xlu0 %v38, 104
  %v82 = vpop.permute.xlu0 %81
  %vm83 = vcmask 850944
  %v84 = vsel %vm83, %v78, %v80
  %v85 = vsel %vm83, %v80, %v82
  %89 = vst [vmem:[#allocation2 + $0x18] sm:$0xf0] %v84
  %90 = vst [vmem:[#allocation2 + $0x20] sm:$0xf0] %v85
  %91 = vst.msk [vmem:[#allocation2 + $0x28] sm:$0xf0] %vm60, %v82
  %92 = vrot.lane.b32.xlu0 %v36, 96
  %v93 = vpop.permute.xlu0 %92
  %94 = vrot.lane.b32.xlu0 %v37, 96
  %v95 = vpop.permute.xlu0 %94
  %96 = vrot.lane.b32.xlu0 %v38, 96
  %v97 = vpop.permute.xlu0 %96
  %vm98 = vcmask 785408
  %v99 = vsel %vm98, %v93, %v95
  %v100 = vsel %vm98, %v95, %v97
  %104 = vst [vmem:[#allocation2 + $0x30] sm:$0xf] %v99
  %105 = vst [vmem:[#allocation2 + $0x38] sm:$0xf] %v100
  %106 = vst.msk [vmem:[#allocation2 + $0x40] sm:$0xf] %vm44, %v97
  %107 = vrot.lane.b32.xlu0 %v36, 88
  %v108 = vpop.permute.xlu0 %107
  %109 = vrot.lane.b32.xlu0 %v37, 88
  %v110 = vpop.permute.xlu0 %109
  %111 = vrot.lane.b32.xlu0 %v38, 88
  %v112 = vpop.permute.xlu0 %111
  %vm113 = vcmask 719872
  %v114 = vsel %vm113, %v108, %v110
  %v115 = vsel %vm113, %v110, %v112
  %119 = vst [vmem:[#allocation2 + $0x30] sm:$0xf0] %v114
  %120 = vst [vmem:[#allocation2 + $0x38] sm:$0xf0] %v115
  %121 = vst.msk [vmem:[#allocation2 + $0x40] sm:$0xf0] %vm60, %v112
  %122 = vrot.lane.b32.xlu0 %v36, 80
  %v123 = vpop.permute.xlu0 %122
  %124 = vrot.lane.b32.xlu0 %v37, 80
  %v125 = vpop.permute.xlu0 %124
  %126 = vrot.lane.b32.xlu0 %v38, 80
  %v127 = vpop.permute.xlu0 %126
  %vm128 = vcmask 654336
  %v129 = vsel %vm128, %v123, %v125
  %v130 = vsel %vm128, %v125, %v127
  %134 = vst [vmem:[#allocation2 + $0x48] sm:$0xf] %v129
  %135 = vst [vmem:[#allocation2 + $0x50] sm:$0xf] %v130
  %136 = vst.msk [vmem:[#allocation2 + $0x58] sm:$0xf] %vm44, %v127
  %137 = vrot.lane.b32.xlu0 %v36, 72
  %v138 = vpop.permute.xlu0 %137
  %139 = vrot.lane.b32.xlu0 %v37, 72
  %v140 = vpop.permute.xlu0 %139
  %141 = vrot.lane.b32.xlu0 %v38, 72
  %v142 = vpop.permute.xlu0 %141
  %vm143 = vcmask 588800
  %v144 = vsel %vm143, %v138, %v140
  %v145 = vsel %vm143, %v140, %v142
  %149 = vst [vmem:[#allocation2 + $0x48] sm:$0xf0] %v144
  %150 = vst [vmem:[#allocation2 + $0x50] sm:$0xf0] %v145
  %151 = vst.msk [vmem:[#allocation2 + $0x58] sm:$0xf0] %vm60, %v142
  %152 = vrot.lane.b32.xlu0 %v36, 64
  %v153 = vpop.permute.xlu0 %152
  %154 = vrot.lane.b32.xlu0 %v37, 64
  %v155 = vpop.permute.xlu0 %154
  %156 = vrot.lane.b32.xlu0 %v38, 64
  %v157 = vpop.permute.xlu0 %156
  %vm158 = vcmask 523264
  %v159 = vsel %vm158, %v153, %v155
  %v160 = vsel %vm158, %v155, %v157
  %164 = vst [vmem:[#allocation2 + $0x60] sm:$0xf] %v159
  %165 = vst [vmem:[#allocation2 + $0x68] sm:$0xf] %v160
  %166 = vst.msk [vmem:[#allocation2 + $0x70] sm:$0xf] %vm44, %v157
  %167 = vrot.lane.b32.xlu0 %v36, 56
  %v168 = vpop.permute.xlu0 %167
  %169 = vrot.lane.b32.xlu0 %v37, 56
  %v170 = vpop.permute.xlu0 %169
  %171 = vrot.lane.b32.xlu0 %v38, 56
  %v172 = vpop.permute.xlu0 %171
  %vm173 = vcmask 457728
  %v174 = vsel %vm173, %v168, %v170
  %v175 = vsel %vm173, %v170, %v172
  %179 = vst [vmem:[#allocation2 + $0x60] sm:$0xf0] %v174
  %180 = vst [vmem:[#allocation2 + $0x68] sm:$0xf0] %v175
  %181 = vst.msk [vmem:[#allocation2 + $0x70] sm:$0xf0] %vm60, %v172
  %182 = vrot.lane.b32.xlu0 %v36, 48
  %v183 = vpop.permute.xlu0 %182
  %184 = vrot.lane.b32.xlu0 %v37, 48
  %v185 = vpop.permute.xlu0 %184
  %186 = vrot.lane.b32.xlu0 %v38, 48
  %v187 = vpop.permute.xlu0 %186
  %vm188 = vcmask 392192
  %v189 = vsel %vm188, %v183, %v185
  %v190 = vsel %vm188, %v185, %v187
  %194 = vst [vmem:[#allocation2 + $0x78] sm:$0xf] %v189
  %195 = vst [vmem:[#allocation2 + $0x80] sm:$0xf] %v190
  %196 = vst.msk [vmem:[#allocation2 + $0x88] sm:$0xf] %vm44, %v187
  %197 = vrot.lane.b32.xlu0 %v36, 40
  %v198 = vpop.permute.xlu0 %197
  %199 = vrot.lane.b32.xlu0 %v37, 40
  %v200 = vpop.permute.xlu0 %199
  %201 = vrot.lane.b32.xlu0 %v38, 40
  %v202 = vpop.permute.xlu0 %201
  %vm203 = vcmask 326656
  %v204 = vsel %vm203, %v198, %v200
  %v205 = vsel %vm203, %v200, %v202
  %209 = vst [vmem:[#allocation2 + $0x78] sm:$0xf0] %v204
  %210 = vst [vmem:[#allocation2 + $0x80] sm:$0xf0] %v205
  %211 = vst.msk [vmem:[#allocation2 + $0x88] sm:$0xf0] %vm60, %v202
  %212 = vrot.lane.b32.xlu0 %v36, 32
  %v213 = vpop.permute.xlu0 %212
  %214 = vrot.lane.b32.xlu0 %v37, 32
  %v215 = vpop.permute.xlu0 %214
  %216 = vrot.lane.b32.xlu0 %v38, 32
  %v217 = vpop.permute.xlu0 %216
  %vm218 = vcmask 261120
  %v219 = vsel %vm218, %v213, %v215
  %v220 = vsel %vm218, %v215, %v217
  %224 = vst [vmem:[#allocation2 + $0x90] sm:$0xf] %v219
  %225 = vst [vmem:[#allocation2 + $0x98] sm:$0xf] %v220
  %226 = vst.msk [vmem:[#allocation2 + $0xa0] sm:$0xf] %vm44, %v217
  %227 = vrot.lane.b32.xlu0 %v36, 24
  %v228 = vpop.permute.xlu0 %227
  %229 = vrot.lane.b32.xlu0 %v37, 24
  %v230 = vpop.permute.xlu0 %229
  %231 = vrot.lane.b32.xlu0 %v38, 24
  %v232 = vpop.permute.xlu0 %231
  %vm233 = vcmask 195584
  %v234 = vsel %vm233, %v228, %v230
  %v235 = vsel %vm233, %v230, %v232
  %239 = vst [vmem:[#allocation2 + $0x90] sm:$0xf0] %v234
  %240 = vst [vmem:[#allocation2 + $0x98] sm:$0xf0] %v235
  %241 = vst.msk [vmem:[#allocation2 + $0xa0] sm:$0xf0] %vm60, %v232
  %242 = vrot.lane.b32.xlu0 %v36, 16
  %v243 = vpop.permute.xlu0 %242
  %244 = vrot.lane.b32.xlu0 %v37, 16
  %v245 = vpop.permute.xlu0 %244
  %246 = vrot.lane.b32.xlu0 %v38, 16
  %v247 = vpop.permute.xlu0 %246
  %vm248 = vcmask 130048
  %v249 = vsel %vm248, %v243, %v245
  %v250 = vsel %vm248, %v245, %v247
  %254 = vst [vmem:[#allocation2 + $0xa8] sm:$0xf] %v249
  %255 = vst [vmem:[#allocation2 + $0xb0] sm:$0xf] %v250
  %256 = vst.msk [vmem:[#allocation2 + $0xb8] sm:$0xf] %vm44, %v247
  %257 = vrot.lane.b32.xlu0 %v36, 8
  %v258 = vpop.permute.xlu0 %257
  %259 = vrot.lane.b32.xlu0 %v37, 8
  %v260 = vpop.permute.xlu0 %259
  %261 = vrot.lane.b32.xlu0 %v38, 8
  %v262 = vpop.permute.xlu0 %261
  %vm263 = vcmask 64512
  %v264 = vsel %vm263, %v258, %v260
  %v265 = vsel %vm263, %v260, %v262
  %269 = vst [vmem:[#allocation2 + $0xa8] sm:$0xf0] %v264
  %270 = vst [vmem:[#allocation2 + $0xb0] sm:$0xf0] %v265
  %271 = vst.msk [vmem:[#allocation2 + $0xb8] sm:$0xf0] %vm60, %v262
  %v272 = vunpack.c.h.b16 %v30
  %v273 = vpack.c.b16 %v272, %v272
  %275 = vst [vmem:[#allocation2 + $0xc0] sm:$0xf] %v37
  %276 = vst [vmem:[#allocation2 + $0xc8] sm:$0xf] %v38
  %277 = vst.msk [vmem:[#allocation2 + $0xd0] sm:$0xf] %vm44, %v273
  %278 = vrot.lane.b32.xlu0 %v273, 120
  %v279 = vpop.permute.xlu0 %278
  %v280 = vsel %vm52, %v51, %v279
  %283 = vst [vmem:[#allocation2 + $0xc0] sm:$0xf0] %v54
  %284 = vst [vmem:[#allocation2 + $0xc8] sm:$0xf0] %v280
  %285 = vst.msk [vmem:[#allocation2 + $0xd0] sm:$0xf0] %vm60, %v279
  %286 = vrot.lane.b32.xlu0 %v273, 112
  %v287 = vpop.permute.xlu0 %286
  %v288 = vsel %vm68, %v67, %v287
  %291 = vst [vmem:[#allocation2 + $0xd8] sm:$0xf] %v70
  %292 = vst [vmem:[#allocation2 + $0xe0] sm:$0xf] %v288
  %293 = vst.msk [vmem:[#allocation2 + $0xe8] sm:$0xf] %vm44, %v287
  %294 = vrot.lane.b32.xlu0 %v273, 104
  %v295 = vpop.permute.xlu0 %294
  %v296 = vsel %vm83, %v82, %v295
  %299 = vst [vmem:[#allocation2 + $0xd8] sm:$0xf0] %v85
  %300 = vst [vmem:[#allocation2 + $0xe0] sm:$0xf0] %v296
  %301 = vst.msk [vmem:[#allocation2 + $0xe8] sm:$0xf0] %vm60, %v295
  %302 = vrot.lane.b32.xlu0 %v273, 96
  %v303 = vpop.permute.xlu0 %302
  %v304 = vsel %vm98, %v97, %v303
  %307 = vst [vmem:[#allocation2 + $0xf0] sm:$0xf] %v100
  %308 = vst [vmem:[#allocation2 + $0xf8] sm:$0xf] %v304
  %309 = vst.msk [vmem:[#allocation2 + $0x100] sm:$0xf] %vm44, %v303
  %310 = vrot.lane.b32.xlu0 %v273, 88
  %v311 = vpop.permute.xlu0 %310
  %v312 = vsel %vm113, %v112, %v311
  %315 = vst [vmem:[#allocation2 + $0xf0] sm:$0xf0] %v115
  %316 = vst [vmem:[#allocation2 + $0xf8] sm:$0xf0] %v312
  %317 = vst.msk [vmem:[#allocation2 + $0x100] sm:$0xf0] %vm60, %v311
  %318 = vrot.lane.b32.xlu0 %v273, 80
  %v319 = vpop.permute.xlu0 %318
  %v320 = vsel %vm128, %v127, %v319
  %323 = vst [vmem:[#allocation2 + $0x108] sm:$0xf] %v130
  %324 = vst [vmem:[#allocation2 + $0x110] sm:$0xf] %v320
  %325 = vst.msk [vmem:[#allocation2 + $0x118] sm:$0xf] %vm44, %v319
  %326 = vrot.lane.b32.xlu0 %v273, 72
  %v327 = vpop.permute.xlu0 %326
  %v328 = vsel %vm143, %v142, %v327
  %331 = vst [vmem:[#allocation2 + $0x108] sm:$0xf0] %v145
  %332 = vst [vmem:[#allocation2 + $0x110] sm:$0xf0] %v328
  %333 = vst.msk [vmem:[#allocation2 + $0x118] sm:$0xf0] %vm60, %v327
  %334 = vrot.lane.b32.xlu0 %v273, 64
  %v335 = vpop.permute.xlu0 %334
  %v336 = vsel %vm158, %v157, %v335
  %339 = vst [vmem:[#allocation2 + $0x120] sm:$0xf] %v160
  %340 = vst [vmem:[#allocation2 + $0x128] sm:$0xf] %v336
  %341 = vst.msk [vmem:[#allocation2 + $0x130] sm:$0xf] %vm44, %v335
  %342 = vrot.lane.b32.xlu0 %v273, 56
  %v343 = vpop.permute.xlu0 %342
  %v344 = vsel %vm173, %v172, %v343
  %347 = vst [vmem:[#allocation2 + $0x120] sm:$0xf0] %v175
  %348 = vst [vmem:[#allocation2 + $0x128] sm:$0xf0] %v344
  %349 = vst.msk [vmem:[#allocation2 + $0x130] sm:$0xf0] %vm60, %v343
  %350 = vrot.lane.b32.xlu0 %v273, 48
  %v351 = vpop.permute.xlu0 %350
  %v352 = vsel %vm188, %v187, %v351
  %355 = vst [vmem:[#allocation2 + $0x138] sm:$0xf] %v190
  %356 = vst [vmem:[#allocation2 + $0x140] sm:$0xf] %v352
  %357 = vst.msk [vmem:[#allocation2 + $0x148] sm:$0xf] %vm44, %v351
  %358 = vrot.lane.b32.xlu0 %v273, 40
  %v359 = vpop.permute.xlu0 %358
  %v360 = vsel %vm203, %v202, %v359
  %363 = vst [vmem:[#allocation2 + $0x138] sm:$0xf0] %v205
  %364 = vst [vmem:[#allocation2 + $0x140] sm:$0xf0] %v360
  %365 = vst.msk [vmem:[#allocation2 + $0x148] sm:$0xf0] %vm60, %v359
  %366 = vrot.lane.b32.xlu0 %v273, 32
  %v367 = vpop.permute.xlu0 %366
  %v368 = vsel %vm218, %v217, %v367
  %371 = vst [vmem:[#allocation2 + $0x150] sm:$0xf] %v220
  %372 = vst [vmem:[#allocation2 + $0x158] sm:$0xf] %v368
  %373 = vst.msk [vmem:[#allocation2 + $0x160] sm:$0xf] %vm44, %v367
  %374 = vrot.lane.b32.xlu0 %v273, 24
  %v375 = vpop.permute.xlu0 %374
  %v376 = vsel %vm233, %v232, %v375
  %379 = vst [vmem:[#allocation2 + $0x150] sm:$0xf0] %v235
  %380 = vst [vmem:[#allocation2 + $0x158] sm:$0xf0] %v376
  %381 = vst.msk [vmem:[#allocation2 + $0x160] sm:$0xf0] %vm60, %v375
  %382 = vrot.lane.b32.xlu0 %v273, 16
  %v383 = vpop.permute.xlu0 %382
  %v384 = vsel %vm248, %v247, %v383
  %387 = vst [vmem:[#allocation2 + $0x168] sm:$0xf] %v250
  %388 = vst [vmem:[#allocation2 + $0x170] sm:$0xf] %v384
  %389 = vst.msk [vmem:[#allocation2 + $0x178] sm:$0xf] %vm44, %v383
  %390 = vrot.lane.b32.xlu0 %v273, 8
  %v391 = vpop.permute.xlu0 %390
  %v392 = vsel %vm263, %v262, %v391
  %395 = vst [vmem:[#allocation2 + $0x168] sm:$0xf0] %v265
  %396 = vst [vmem:[#allocation2 + $0x170] sm:$0xf0] %v392
  %397 = vst.msk [vmem:[#allocation2 + $0x178] sm:$0xf0] %vm60, %v391
  %v398 = vld [vmem:[#allocation2] sm:$0xff]
  %v399 = vld [vmem:[#allocation2 + $0x8] sm:$0xff]
  %v400 = vld [vmem:[#allocation2 + $0x10] sm:$0xff]
  %v401 = vld [vmem:[#allocation2 + $0x18] sm:$0xff]
  %v402 = vld [vmem:[#allocation2 + $0x20] sm:$0xff]
  %v403 = vld [vmem:[#allocation2 + $0x28] sm:$0xff]
  %v404 = vld [vmem:[#allocation2 + $0x30] sm:$0xff]
  %v405 = vld [vmem:[#allocation2 + $0x38] sm:$0xff]
  %v406 = vld [vmem:[#allocation2 + $0x40] sm:$0xff]
  %v407 = vld [vmem:[#allocation2 + $0x48] sm:$0xff]
  %v408 = vld [vmem:[#allocation2 + $0x50] sm:$0xff]
  %v409 = vld [vmem:[#allocation2 + $0x58] sm:$0xff]
  %v410 = vld [vmem:[#allocation2 + $0x60] sm:$0xff]
  %v411 = vld [vmem:[#allocation2 + $0x68] sm:$0xff]
  %v412 = vld [vmem:[#allocation2 + $0x70] sm:$0xff]
  %v413 = vld [vmem:[#allocation2 + $0x78] sm:$0xff]
  %v414 = vld [vmem:[#allocation2 + $0x80] sm:$0xff]
  %v415 = vld [vmem:[#allocation2 + $0x88] sm:$0xff]
  %v416 = vld [vmem:[#allocation2 + $0x90] sm:$0xff]
  %v417 = vld [vmem:[#allocation2 + $0x98] sm:$0xff]
  %v418 = vld [vmem:[#allocation2 + $0xa0] sm:$0xff]
  %v419 = vld [vmem:[#allocation2 + $0xa8] sm:$0xff]
  %v420 = vld [vmem:[#allocation2 + $0xb0] sm:$0xff]
  %v421 = vld [vmem:[#allocation2 + $0xb8] sm:$0xff]
  %v422 = vld [vmem:[#allocation2 + $0xc0] sm:$0xff]
  %v423 = vld [vmem:[#allocation2 + $0xc8] sm:$0xff]
  %v424 = vld [vmem:[#allocation2 + $0xd0] sm:$0xff]
  %v425 = vld [vmem:[#allocation2 + $0xd8] sm:$0xff]
  %v426 = vld [vmem:[#allocation2 + $0xe0] sm:$0xff]
  %v427 = vld [vmem:[#allocation2 + $0xe8] sm:$0xff]
  %v428 = vld [vmem:[#allocation2 + $0xf0] sm:$0xff]
  %v429 = vld [vmem:[#allocation2 + $0xf8] sm:$0xff]
  %v430 = vld [vmem:[#allocation2 + $0x100] sm:$0xff]
  %v431 = vld [vmem:[#allocation2 + $0x108] sm:$0xff]
  %v432 = vld [vmem:[#allocation2 + $0x110] sm:$0xff]
  %v433 = vld [vmem:[#allocation2 + $0x118] sm:$0xff]
  %v434 = vld [vmem:[#allocation2 + $0x120] sm:$0xff]
  %v435 = vld [vmem:[#allocation2 + $0x128] sm:$0xff]
  %v436 = vld [vmem:[#allocation2 + $0x130] sm:$0xff]
  %v437 = vld [vmem:[#allocation2 + $0x138] sm:$0xff]
  %v438 = vld [vmem:[#allocation2 + $0x140] sm:$0xff]
  %v439 = vld [vmem:[#allocation2 + $0x148] sm:$0xff]
  %v440 = vld [vmem:[#allocation2 + $0x150] sm:$0xff]
  %v441 = vld [vmem:[#allocation2 + $0x158] sm:$0xff]
  %v442 = vld [vmem:[#allocation2 + $0x160] sm:$0xff]
  %v443 = vld [vmem:[#allocation2 + $0x168] sm:$0xff]
  %v444 = vld [vmem:[#allocation2 + $0x170] sm:$0xff]
  %v445 = vld [vmem:[#allocation2 + $0x178] sm:$0xff]
  %v446 = vld [vmem:[%s1] sm:$0xf]
  %v447 = vld [vmem:[%s1 + $0x4] sm:$0xf]
  %v448 = vld [vmem:[%s1 + $0x8] sm:$0xf]
  %v449 = vld [vmem:[%s1 + $0xc] sm:$0xf]
  %v450 = vld [vmem:[%s1 + $0x10] sm:$0xf]
  %v451 = vld [vmem:[%s1 + $0x14] sm:$0xf]
  %v452 = vld [vmem:[%s1 + $0x18] sm:$0xf]
  %v453 = vld [vmem:[%s1 + $0x1c] sm:$0xf]
  %v454 = vld [vmem:[%s1 + $0x20] sm:$0xf]
  %v455 = vld [vmem:[%s1 + $0x24] sm:$0xf]
  %v456 = vld [vmem:[%s1 + $0x28] sm:$0xf]
  %v457 = vld [vmem:[%s1 + $0x2c] sm:$0xf]
  %v458 = vld [vmem:[%s1 + $0x30] sm:$0xf]
  %v459 = vld [vmem:[%s1 + $0x34] sm:$0xf]
  %v460 = vld [vmem:[%s1 + $0x38] sm:$0xf]
  %v461 = vld [vmem:[%s1 + $0x3c] sm:$0xf]
  %v462 = vld [vmem:[%s1 + $0x40] sm:$0xf]
  %v463 = vld [vmem:[%s1 + $0x44] sm:$0xf]
  %v464 = vld [vmem:[%s1 + $0x48] sm:$0xf]
  %v465 = vld [vmem:[%s1 + $0x4c] sm:$0xf]
  %v466 = vld [vmem:[%s1 + $0x50] sm:$0xf]
  %v467 = vld [vmem:[%s1 + $0x54] sm:$0xf]
  %v468 = vld [vmem:[%s1 + $0x58] sm:$0xf]
  %v469 = vld [vmem:[%s1 + $0x5c] sm:$0xf]
  %v470 = vld [vmem:[%s1 + $0x60] sm:$0xf]
  %v471 = vld [vmem:[%s1 + $0x64] sm:$0xf]
  %v472 = vld [vmem:[%s1 + $0x68] sm:$0xf]
  %v473 = vld [vmem:[%s1 + $0x6c] sm:$0xf]
  %v474 = vld [vmem:[%s1 + $0x70] sm:$0xf]
  %v475 = vld [vmem:[%s1 + $0x74] sm:$0xf]
  %v476 = vld [vmem:[%s1 + $0x78] sm:$0xf]
  %v477 = vld [vmem:[%s1 + $0x7c] sm:$0xf]
  %v478 = vld [vmem:[%s1 + $0x80] sm:$0xf]
  %v512 = vunpack.c.l.b16 %v446
  %v513 = vunpack.c.l.b16 %v447
  %v514 = vunpack.c.l.b16 %v448
  %v515 = vunpack.c.l.b16 %v449
  %v516 = vunpack.c.l.b16 %v450
  %v517 = vunpack.c.l.b16 %v451
  %v518 = vunpack.c.l.b16 %v452
  %v519 = vunpack.c.l.b16 %v453
  %v520 = vunpack.c.l.b16 %v454
  %v521 = vunpack.c.l.b16 %v455
  %v522 = vunpack.c.l.b16 %v456
  %v523 = vunpack.c.l.b16 %v457
  %v524 = vunpack.c.l.b16 %v458
  %v525 = vunpack.c.l.b16 %v459
  %v526 = vunpack.c.l.b16 %v460
  %v527 = vunpack.c.l.b16 %v461
  %v528 = vunpack.c.l.b16 %v462
  %v529 = vunpack.c.l.b16 %v463
  %v530 = vunpack.c.l.b16 %v464
  %v531 = vunpack.c.l.b16 %v465
  %v532 = vunpack.c.l.b16 %v466
  %v533 = vunpack.c.l.b16 %v467
  %v534 = vunpack.c.l.b16 %v468
  %v535 = vunpack.c.l.b16 %v469
  %v536 = vunpack.c.l.b16 %v470
  %v537 = vunpack.c.l.b16 %v471
  %v538 = vunpack.c.l.b16 %v472
  %v539 = vunpack.c.l.b16 %v473
  %v540 = vunpack.c.l.b16 %v474
  %v541 = vunpack.c.l.b16 %v475
  %v542 = vunpack.c.l.b16 %v476
  %v543 = vunpack.c.l.b16 %v477
  %v544 = vunpack.c.l.b16 %v478
  %v545 = vpack.c.b16 %v513, %v512
  %v546 = vpack.c.b16 %v515, %v514
  %v547 = vpack.c.b16 %v517, %v516
  %v548 = vpack.c.b16 %v519, %v518
  %v549 = vpack.c.b16 %v521, %v520
  %v550 = vpack.c.b16 %v523, %v522
  %v551 = vpack.c.b16 %v525, %v524
  %v552 = vpack.c.b16 %v527, %v526
  %v553 = vpack.c.b16 %v529, %v528
  %v554 = vpack.c.b16 %v531, %v530
  %v555 = vpack.c.b16 %v533, %v532
  %v556 = vpack.c.b16 %v535, %v534
  %v557 = vpack.c.b16 %v537, %v536
  %v558 = vpack.c.b16 %v539, %v538
  %v559 = vpack.c.b16 %v541, %v540
  %v560 = vpack.c.b16 %v543, %v542
  %v561 = vpack.c.b16 %v544, %v544
  %vm578 = vcmask 64512
  %v580 = vsel %vm578, %v400, 0
  %v583 = vsel %vm578, %v403, 0
  %v586 = vsel %vm578, %v406, 0
  %v589 = vsel %vm578, %v409, 0
  %v592 = vsel %vm578, %v412, 0
  %v595 = vsel %vm578, %v415, 0
  %v598 = vsel %vm578, %v418, 0
  %v601 = vsel %vm578, %v421, 0
  %v604 = vsel %vm578, %v424, 0
  %v607 = vsel %vm578, %v427, 0
  %v610 = vsel %vm578, %v430, 0
  %v613 = vsel %vm578, %v433, 0
  %v616 = vsel %vm578, %v436, 0
  %v619 = vsel %vm578, %v439, 0
  %v622 = vsel %vm578, %v442, 0
  %v625 = vsel %vm578, %v445, 0
  %vm627 = vcmask 1043456
  %v629 = vsel %vm627, %v561, 0
  %631 = vmatprep.subr.bf16.mxu0 0
  %632 = vmatpush1.bf16.msra.mxu0 %v545
  %633 = vmatprep.subr.bf16.mxu0 0
  %634 = vmatpush1.bf16.msra.mxu0 %v546
  %635 = vmatprep.subr.bf16.mxu0 0
  %636 = vmatpush1.bf16.msra.mxu0 %v547
  %637 = vmatprep.subr.bf16.mxu0 0
  %638 = vmatpush1.bf16.msra.mxu0 %v548
  %639 = vmatprep.subr.bf16.mxu0 0
  %640 = vmatpush1.bf16.msra.mxu0 %v549
  %641 = vmatprep.subr.bf16.mxu0 0
  %642 = vmatpush1.bf16.msra.mxu0 %v550
  %643 = vmatprep.subr.bf16.mxu0 0
  %644 = vmatpush1.bf16.msra.mxu0 %v551
  %645 = vmatprep.subr.bf16.mxu0 0
  %646 = vmatpush1.bf16.msra.mxu0 %v552
  %647 = vmatprep.subr.bf16.mxu0 0
  %648 = vmatpush1.bf16.msra.mxu0 %v553
  %649 = vmatprep.subr.bf16.mxu0 0
  %650 = vmatpush1.bf16.msra.mxu0 %v554
  %651 = vmatprep.subr.bf16.mxu0 0
  %652 = vmatpush1.bf16.msra.mxu0 %v555
  %653 = vmatprep.subr.bf16.mxu0 0
  %654 = vmatpush1.bf16.msra.mxu0 %v556
  %655 = vmatprep.subr.bf16.mxu0 0
  %656 = vmatpush1.bf16.msra.mxu0 %v557
  %657 = vmatprep.subr.bf16.mxu0 0
  %658 = vmatpush1.bf16.msra.mxu0 %v558
  %659 = vmatprep.subr.bf16.mxu0 0
  %660 = vmatpush1.bf16.msra.mxu0 %v559
  %661 = vmatprep.subr.bf16.mxu0 0
  %662 = vmatpush1.bf16.msra.mxu0 %v560
  %663 = vmatprep.mubr.bf16.mxu0 %v399
  %664 = vmatmul.mubr.bf16.gmra.mrb[0].mxu0 %v398
  %v665 = vpop.f32.mrb[0].mxu0
  %v666 = vadd.f32 0.0, %v665
  %v667 = vpop.f32.mrb[0].mxu0
  %v668 = vpop.f32.mrb[0].mxu0
  %v669 = vadd.f32 0.0, %v668
  %v670 = vpop.f32.mrb[0].mxu0
  %671 = vmatprep.mubr.bf16.mxu0 %v402
  %672 = vmatmul.mubr.bf16.gmra.mrb[0].mxu0 %v401
  %v673 = vpop.f32.mrb[0].mxu0
  %v674 = vadd.f32 0.0, %v673
  %v675 = vpop.f32.mrb[0].mxu0
  %v676 = vpop.f32.mrb[0].mxu0
  %v677 = vadd.f32 0.0, %v676
  %v678 = vpop.f32.mrb[0].mxu0
  %679 = vmatprep.mubr.bf16.mxu0 %v405
  %680 = vmatmul.mubr.bf16.gmra.mrb[0].mxu0 %v404
  %v681 = vpop.f32.mrb[0].mxu0
  %v682 = vadd.f32 0.0, %v681
  %v683 = vpop.f32.mrb[0].mxu0
  %v684 = vpop.f32.mrb[0].mxu0
  %v685 = vadd.f32 0.0, %v684
  %v686 = vpop.f32.mrb[0].mxu0
  %687 = vmatprep.mubr.bf16.mxu0 %v408
  %688 = vmatmul.mubr.bf16.gmra.mrb[0].mxu0 %v407
  %v689 = vpop.f32.mrb[0].mxu0
  %v690 = vadd.f32 0.0, %v689
  %v691 = vpop.f32.mrb[0].mxu0
  %v692 = vpop.f32.mrb[0].mxu0
  %v693 = vadd.f32 0.0, %v692
  %v694 = vpop.f32.mrb[0].mxu0
  %695 = vmatprep.mubr.bf16.mxu0 %v411
  %696 = vmatmul.mubr.bf16.gmra.mrb[0].mxu0 %v410
  %v697 = vpop.f32.mrb[0].mxu0
  %v698 = vadd.f32 0.0, %v697
  %v699 = vpop.f32.mrb[0].mxu0
  %v700 = vpop.f32.mrb[0].mxu0
  %v701 = vadd.f32 0.0, %v700
  %v702 = vpop.f32.mrb[0].mxu0
  %703 = vmatprep.mubr.bf16.mxu0 %v414
  %704 = vmatmul.mubr.bf16.gmra.mrb[0].mxu0 %v413
  %v705 = vpop.f32.mrb[0].mxu0
  %v706 = vadd.f32 0.0, %v705
  %v707 = vpop.f32.mrb[0].mxu0
  %v708 = vpop.f32.mrb[0].mxu0
  %v709 = vadd.f32 0.0, %v708
  %v710 = vpop.f32.mrb[0].mxu0
  %711 = vmatprep.mubr.bf16.mxu0 %v417
  %712 = vmatmul.mubr.bf16.gmra.mrb[0].mxu0 %v416
  %v713 = vpop.f32.mrb[0].mxu0
  %v714 = vadd.f32 0.0, %v713
  %v715 = vpop.f32.mrb[0].mxu0
  %v716 = vpop.f32.mrb[0].mxu0
  %v717 = vadd.f32 0.0, %v716
  %v718 = vpop.f32.mrb[0].mxu0
  %719 = vmatprep.mubr.bf16.mxu0 %v420
  %720 = vmatmul.mubr.bf16.gmra.mrb[0].mxu0 %v419
  %v721 = vpop.f32.mrb[0].mxu0
  %v722 = vadd.f32 0.0, %v721
  %v723 = vpop.f32.mrb[0].mxu0
  %v724 = vpop.f32.mrb[0].mxu0
  %v725 = vadd.f32 0.0, %v724
  %v726 = vpop.f32.mrb[0].mxu0
  %727 = vmatprep.mubr.bf16.mxu0 %v423
  %728 = vmatmul.mubr.bf16.gmra.mrb[0].mxu0 %v422
  %v729 = vpop.f32.mrb[0].mxu0
  %v730 = vadd.f32 0.0, %v729
  %v731 = vpop.f32.mrb[0].mxu0
  %v732 = vpop.f32.mrb[0].mxu0
  %v733 = vadd.f32 0.0, %v732
  %v734 = vpop.f32.mrb[0].mxu0
  %735 = vmatprep.mubr.bf16.mxu0 %v426
  %736 = vmatmul.mubr.bf16.gmra.mrb[0].mxu0 %v425
  %v737 = vpop.f32.mrb[0].mxu0
  %v738 = vadd.f32 0.0, %v737
  %v739 = vpop.f32.mrb[0].mxu0
  %v740 = vpop.f32.mrb[0].mxu0
  %v741 = vadd.f32 0.0, %v740
  %v742 = vpop.f32.mrb[0].mxu0
  %743 = vmatprep.mubr.bf16.mxu0 %v429
  %744 = vmatmul.mubr.bf16.gmra.mrb[0].mxu0 %v428
  %v745 = vpop.f32.mrb[0].mxu0
  %v746 = vadd.f32 0.0, %v745
  %v747 = vpop.f32.mrb[0].mxu0
  %v748 = vpop.f32.mrb[0].mxu0
  %v749 = vadd.f32 0.0, %v748
  %v750 = vpop.f32.mrb[0].mxu0
  %751 = vmatprep.mubr.bf16.mxu0 %v432
  %752 = vmatmul.mubr.bf16.gmra.mrb[0].mxu0 %v431
  %v753 = vpop.f32.mrb[0].mxu0
  %v754 = vadd.f32 0.0, %v753
  %v755 = vpop.f32.mrb[0].mxu0
  %v756 = vpop.f32.mrb[0].mxu0
  %v757 = vadd.f32 0.0, %v756
  %v758 = vpop.f32.mrb[0].mxu0
  %759 = vmatprep.mubr.bf16.mxu0 %v435
  %760 = vmatmul.mubr.bf16.gmra.mrb[0].mxu0 %v434
  %v761 = vpop.f32.mrb[0].mxu0
  %v762 = vadd.f32 0.0, %v761
  %v763 = vpop.f32.mrb[0].mxu0
  %v764 = vpop.f32.mrb[0].mxu0
  %v765 = vadd.f32 0.0, %v764
  %v766 = vpop.f32.mrb[0].mxu0
  %767 = vmatprep.mubr.bf16.mxu0 %v438
  %768 = vmatmul.mubr.bf16.gmra.mrb[0].mxu0 %v437
  %v769 = vpop.f32.mrb[0].mxu0
  %v770 = vadd.f32 0.0, %v769
  %v771 = vpop.f32.mrb[0].mxu0
  %v772 = vpop.f32.mrb[0].mxu0
  %v773 = vadd.f32 0.0, %v772
  %v774 = vpop.f32.mrb[0].mxu0
  %775 = vmatprep.mubr.bf16.mxu0 %v441
  %776 = vmatmul.mubr.bf16.gmra.mrb[0].mxu0 %v440
  %v777 = vpop.f32.mrb[0].mxu0
  %v778 = vadd.f32 0.0, %v777
  %v779 = vpop.f32.mrb[0].mxu0
  %v780 = vpop.f32.mrb[0].mxu0
  %v781 = vadd.f32 0.0, %v780
  %v782 = vpop.f32.mrb[0].mxu0
  %783 = vmatprep.mubr.bf16.mxu0 %v444
  %784 = vmatmul.mubr.bf16.gmra.mrb[0].mxu0 %v443
  %v785 = vpop.f32.mrb[0].mxu0
  %v786 = vadd.f32 0.0, %v785
  %v787 = vpop.f32.mrb[0].mxu0
  %v788 = vpop.f32.mrb[0].mxu0
  %v789 = vadd.f32 0.0, %v788
  %v790 = vpop.f32.mrb[0].mxu0
  %791 = vdwg.mxu0
  %792 = vmatprep.subr.bf16.mxu0 0
  %793 = vmatpush1.bf16.msra.mxu0 %v629
  %794 = vmatprep.subr.bf16.mxu0 0
  %795 = vmatpush1.bf16.msra.mxu0 0
  %796 = vmatprep.subr.bf16.mxu0 0
  %797 = vmatpush1.bf16.msra.mxu0 0
  %798 = vmatprep.subr.bf16.mxu0 0
  %799 = vmatpush1.bf16.msra.mxu0 0
  %800 = vmatprep.subr.bf16.mxu0 0
  %801 = vmatpush1.bf16.msra.mxu0 0
  %802 = vmatprep.subr.bf16.mxu0 0
  %803 = vmatpush1.bf16.msra.mxu0 0
  %804 = vmatprep.subr.bf16.mxu0 0
  %805 = vmatpush1.bf16.msra.mxu0 0
  %806 = vmatprep.subr.bf16.mxu0 0
  %807 = vmatpush1.bf16.msra.mxu0 0
  %808 = vmatprep.subr.bf16.mxu0 0
  %809 = vmatpush1.bf16.msra.mxu0 0
  %810 = vmatprep.subr.bf16.mxu0 0
  %811 = vmatpush1.bf16.msra.mxu0 0
  %812 = vmatprep.subr.bf16.mxu0 0
  %813 = vmatpush1.bf16.msra.mxu0 0
  %814 = vmatprep.subr.bf16.mxu0 0
  %815 = vmatpush1.bf16.msra.mxu0 0
  %816 = vmatprep.subr.bf16.mxu0 0
  %817 = vmatpush1.bf16.msra.mxu0 0
  %818 = vmatprep.subr.bf16.mxu0 0
  %819 = vmatpush1.bf16.msra.mxu0 0
  %820 = vmatprep.subr.bf16.mxu0 0
  %821 = vmatpush1.bf16.msra.mxu0 0
  %822 = vmatprep.subr.bf16.mxu0 0
  %823 = vmatpush1.bf16.msra.mxu0 0
  %824 = vmatprep.mubr.bf16.mxu0 0
  %825 = vmatmul.mubr.bf16.gmra.mrb[0].mxu0 %v580
  %v826 = vpop.f32.mrb[0].mxu0
  %v827 = vadd.f32 %v666, %v826
  %v828 = vpop.f32.mrb[0].mxu0
  %v829 = vpop.f32.mrb[0].mxu0
  %v830 = vadd.f32 %v669, %v829
  %v831 = vpop.f32.mrb[0].mxu0
  %832 = vmatprep.mubr.bf16.mxu0 0
  %833 = vmatmul.mubr.bf16.gmra.mrb[0].mxu0 %v583
  %v834 = vpop.f32.mrb[0].mxu0
  %v835 = vadd.f32 %v674, %v834
  %v836 = vpop.f32.mrb[0].mxu0
  %v837 = vpop.f32.mrb[0].mxu0
  %v838 = vadd.f32 %v677, %v837
  %v839 = vpop.f32.mrb[0].mxu0
  %840 = vmatprep.mubr.bf16.mxu0 0
  %841 = vmatmul.mubr.bf16.gmra.mrb[0].mxu0 %v586
  %v842 = vpop.f32.mrb[0].mxu0
  %v843 = vadd.f32 %v682, %v842
  %v844 = vpop.f32.mrb[0].mxu0
  %v845 = vpop.f32.mrb[0].mxu0
  %v846 = vadd.f32 %v685, %v845
  %v847 = vpop.f32.mrb[0].mxu0
  %848 = vmatprep.mubr.bf16.mxu0 0
  %849 = vmatmul.mubr.bf16.gmra.mrb[0].mxu0 %v589
  %v850 = vpop.f32.mrb[0].mxu0
  %v851 = vadd.f32 %v690, %v850
  %v852 = vpop.f32.mrb[0].mxu0
  %v853 = vpop.f32.mrb[0].mxu0
  %v854 = vadd.f32 %v693, %v853
  %v855 = vpop.f32.mrb[0].mxu0
  %856 = vmatprep.mubr.bf16.mxu0 0
  %857 = vmatmul.mubr.bf16.gmra.mrb[0].mxu0 %v592
  %v858 = vpop.f32.mrb[0].mxu0
  %v859 = vadd.f32 %v698, %v858
  %v860 = vpop.f32.mrb[0].mxu0
  %v861 = vpop.f32.mrb[0].mxu0
  %v862 = vadd.f32 %v701, %v861
  %v863 = vpop.f32.mrb[0].mxu0
  %864 = vmatprep.mubr.bf16.mxu0 0
  %865 = vmatmul.mubr.bf16.gmra.mrb[0].mxu0 %v595
  %v866 = vpop.f32.mrb[0].mxu0
  %v867 = vadd.f32 %v706, %v866
  %v868 = vpop.f32.mrb[0].mxu0
  %v869 = vpop.f32.mrb[0].mxu0
  %v870 = vadd.f32 %v709, %v869
  %v871 = vpop.f32.mrb[0].mxu0
  %872 = vmatprep.mubr.bf16.mxu0 0
  %873 = vmatmul.mubr.bf16.gmra.mrb[0].mxu0 %v598
  %v874 = vpop.f32.mrb[0].mxu0
  %v875 = vadd.f32 %v714, %v874
  %v876 = vpop.f32.mrb[0].mxu0
  %v877 = vpop.f32.mrb[0].mxu0
  %v878 = vadd.f32 %v717, %v877
  %v879 = vpop.f32.mrb[0].mxu0
  %880 = vmatprep.mubr.bf16.mxu0 0
  %881 = vmatmul.mubr.bf16.gmra.mrb[0].mxu0 %v601
  %v882 = vpop.f32.mrb[0].mxu0
  %v883 = vadd.f32 %v722, %v882
  %v884 = vpop.f32.mrb[0].mxu0
  %v885 = vpop.f32.mrb[0].mxu0
  %v886 = vadd.f32 %v725, %v885
  %v887 = vpop.f32.mrb[0].mxu0
  %888 = vmatprep.mubr.bf16.mxu0 0
  %889 = vmatmul.mubr.bf16.gmra.mrb[0].mxu0 %v604
  %v890 = vpop.f32.mrb[0].mxu0
  %v891 = vadd.f32 %v730, %v890
  %v892 = vpop.f32.mrb[0].mxu0
  %v893 = vpop.f32.mrb[0].mxu0
  %v894 = vadd.f32 %v733, %v893
  %v895 = vpop.f32.mrb[0].mxu0
  %896 = vmatprep.mubr.bf16.mxu0 0
  %897 = vmatmul.mubr.bf16.gmra.mrb[0].mxu0 %v607
  %v898 = vpop.f32.mrb[0].mxu0
  %v899 = vadd.f32 %v738, %v898
  %v900 = vpop.f32.mrb[0].mxu0
  %v901 = vpop.f32.mrb[0].mxu0
  %v902 = vadd.f32 %v741, %v901
  %v903 = vpop.f32.mrb[0].mxu0
  %904 = vmatprep.mubr.bf16.mxu0 0
  %905 = vmatmul.mubr.bf16.gmra.mrb[0].mxu0 %v610
  %v906 = vpop.f32.mrb[0].mxu0
  %v907 = vadd.f32 %v746, %v906
  %v908 = vpop.f32.mrb[0].mxu0
  %v909 = vpop.f32.mrb[0].mxu0
  %v910 = vadd.f32 %v749, %v909
  %v911 = vpop.f32.mrb[0].mxu0
  %912 = vmatprep.mubr.bf16.mxu0 0
  %913 = vmatmul.mubr.bf16.gmra.mrb[0].mxu0 %v613
  %v914 = vpop.f32.mrb[0].mxu0
  %v915 = vadd.f32 %v754, %v914
  %v916 = vpop.f32.mrb[0].mxu0
  %v917 = vpop.f32.mrb[0].mxu0
  %v918 = vadd.f32 %v757, %v917
  %v919 = vpop.f32.mrb[0].mxu0
  %920 = vmatprep.mubr.bf16.mxu0 0
  %921 = vmatmul.mubr.bf16.gmra.mrb[0].mxu0 %v616
  %v922 = vpop.f32.mrb[0].mxu0
  %v923 = vadd.f32 %v762, %v922
  %v924 = vpop.f32.mrb[0].mxu0
  %v925 = vpop.f32.mrb[0].mxu0
  %v926 = vadd.f32 %v765, %v925
  %v927 = vpop.f32.mrb[0].mxu0
  %928 = vmatprep.mubr.bf16.mxu0 0
  %929 = vmatmul.mubr.bf16.gmra.mrb[0].mxu0 %v619
  %v930 = vpop.f32.mrb[0].mxu0
  %v931 = vadd.f32 %v770, %v930
  %v932 = vpop.f32.mrb[0].mxu0
  %v933 = vpop.f32.mrb[0].mxu0
  %v934 = vadd.f32 %v773, %v933
  %v935 = vpop.f32.mrb[0].mxu0
  %936 = vmatprep.mubr.bf16.mxu0 0
  %937 = vmatmul.mubr.bf16.gmra.mrb[0].mxu0 %v622
  %v938 = vpop.f32.mrb[0].mxu0
  %v939 = vadd.f32 %v778, %v938
  %v940 = vpop.f32.mrb[0].mxu0
  %v941 = vpop.f32.mrb[0].mxu0
  %v942 = vadd.f32 %v781, %v941
  %v943 = vpop.f32.mrb[0].mxu0
  %944 = vmatprep.mubr.bf16.mxu0 0
  %945 = vmatmul.mubr.bf16.gmra.mrb[0].mxu0 %v625
  %v946 = vpop.f32.mrb[0].mxu0
  %v947 = vadd.f32 %v786, %v946
  %v948 = vpop.f32.mrb[0].mxu0
  %v949 = vpop.f32.mrb[0].mxu0
  %v950 = vadd.f32 %v789, %v949
  %v951 = vpop.f32.mrb[0].mxu0
  %952 = vdwg.mxu0
  %985 = vrot.lane.b32.xlu0 %v827, 64
  %v986 = vpop.permute.xlu0 %985
  %987 = vrot.lane.b32.xlu0 %v830, 64
  %v988 = vpop.permute.xlu0 %987
  %989 = vrot.lane.b32.xlu0 %v835, 64
  %v990 = vpop.permute.xlu0 %989
  %991 = vrot.lane.b32.xlu0 %v838, 64
  %v992 = vpop.permute.xlu0 %991
  %993 = vrot.lane.b32.xlu0 %v843, 64
  %v994 = vpop.permute.xlu0 %993
  %995 = vrot.lane.b32.xlu0 %v846, 64
  %v996 = vpop.permute.xlu0 %995
  %997 = vrot.lane.b32.xlu0 %v851, 64
  %v998 = vpop.permute.xlu0 %997
  %999 = vrot.lane.b32.xlu0 %v854, 64
  %v1000 = vpop.permute.xlu0 %999
  %1001 = vrot.lane.b32.xlu0 %v859, 64
  %v1002 = vpop.permute.xlu0 %1001
  %1003 = vrot.lane.b32.xlu0 %v862, 64
  %v1004 = vpop.permute.xlu0 %1003
  %1005 = vrot.lane.b32.xlu0 %v867, 64
  %v1006 = vpop.permute.xlu0 %1005
  %1007 = vrot.lane.b32.xlu0 %v870, 64
  %v1008 = vpop.permute.xlu0 %1007
  %1009 = vrot.lane.b32.xlu0 %v875, 64
  %v1010 = vpop.permute.xlu0 %1009
  %1011 = vrot.lane.b32.xlu0 %v878, 64
  %v1012 = vpop.permute.xlu0 %1011
  %1013 = vrot.lane.b32.xlu0 %v883, 64
  %v1014 = vpop.permute.xlu0 %1013
  %1015 = vrot.lane.b32.xlu0 %v886, 64
  %v1016 = vpop.permute.xlu0 %1015
  %1017 = vrot.lane.b32.xlu0 %v891, 64
  %v1018 = vpop.permute.xlu0 %1017
  %1019 = vrot.lane.b32.xlu0 %v894, 64
  %v1020 = vpop.permute.xlu0 %1019
  %1021 = vrot.lane.b32.xlu0 %v899, 64
  %v1022 = vpop.permute.xlu0 %1021
  %1023 = vrot.lane.b32.xlu0 %v902, 64
  %v1024 = vpop.permute.xlu0 %1023
  %1025 = vrot.lane.b32.xlu0 %v907, 64
  %v1026 = vpop.permute.xlu0 %1025
  %1027 = vrot.lane.b32.xlu0 %v910, 64
  %v1028 = vpop.permute.xlu0 %1027
  %1029 = vrot.lane.b32.xlu0 %v915, 64
  %v1030 = vpop.permute.xlu0 %1029
  %1031 = vrot.lane.b32.xlu0 %v918, 64
  %v1032 = vpop.permute.xlu0 %1031
  %1033 = vrot.lane.b32.xlu0 %v923, 64
  %v1034 = vpop.permute.xlu0 %1033
  %1035 = vrot.lane.b32.xlu0 %v926, 64
  %v1036 = vpop.permute.xlu0 %1035
  %1037 = vrot.lane.b32.xlu0 %v931, 64
  %v1038 = vpop.permute.xlu0 %1037
  %1039 = vrot.lane.b32.xlu0 %v934, 64
  %v1040 = vpop.permute.xlu0 %1039
  %1041 = vrot.lane.b32.xlu0 %v939, 64
  %v1042 = vpop.permute.xlu0 %1041
  %1043 = vrot.lane.b32.xlu0 %v942, 64
  %v1044 = vpop.permute.xlu0 %1043
  %1045 = vrot.lane.b32.xlu0 %v947, 64
  %v1046 = vpop.permute.xlu0 %1045
  %1047 = vrot.lane.b32.xlu0 %v950, 64
  %v1048 = vpop.permute.xlu0 %1047
  %v1081 = vmax.f32 %v827, %v986
  %v1082 = vmax.f32 %v830, %v988
  %v1083 = vmax.f32 %v835, %v990
  %v1084 = vmax.f32 %v838, %v992
  %v1085 = vmax.f32 %v843, %v994
  %v1086 = vmax.f32 %v846, %v996
  %v1087 = vmax.f32 %v851, %v998
  %v1088 = vmax.f32 %v854, %v1000
  %v1089 = vmax.f32 %v859, %v1002
  %v1090 = vmax.f32 %v862, %v1004
  %v1091 = vmax.f32 %v867, %v1006
  %v1092 = vmax.f32 %v870, %v1008
  %v1093 = vmax.f32 %v875, %v1010
  %v1094 = vmax.f32 %v878, %v1012
  %v1095 = vmax.f32 %v883, %v1014
  %v1096 = vmax.f32 %v886, %v1016
  %v1097 = vmax.f32 %v891, %v1018
  %v1098 = vmax.f32 %v894, %v1020
  %v1099 = vmax.f32 %v899, %v1022
  %v1100 = vmax.f32 %v902, %v1024
  %v1101 = vmax.f32 %v907, %v1026
  %v1102 = vmax.f32 %v910, %v1028
  %v1103 = vmax.f32 %v915, %v1030
  %v1104 = vmax.f32 %v918, %v1032
  %v1105 = vmax.f32 %v923, %v1034
  %v1106 = vmax.f32 %v926, %v1036
  %v1107 = vmax.f32 %v931, %v1038
  %v1108 = vmax.f32 %v934, %v1040
  %v1109 = vmax.f32 %v939, %v1042
  %v1110 = vmax.f32 %v942, %v1044
  %v1111 = vmax.f32 %v947, %v1046
  %v1112 = vmax.f32 %v950, %v1048
  %v1113 = vld [vmem:[%s2] sm:$0x1]
  %v1115 = vlaneseq
  %v1116 = vshrl.u32 %v1115, 7
  %v1117 = vsub.s32 0, %v1116
  %v1118 = vrot.slane %v1113, %v1117
  %v1120 = vadd.f32 %v1081, %v1118
  %v1121 = vadd.f32 %v1082, %v1118
  %v1122 = vadd.f32 %v1083, %v1118
  %v1123 = vadd.f32 %v1084, %v1118
  %v1124 = vadd.f32 %v1085, %v1118
  %v1125 = vadd.f32 %v1086, %v1118
  %v1126 = vadd.f32 %v1087, %v1118
  %v1127 = vadd.f32 %v1088, %v1118
  %v1128 = vadd.f32 %v1089, %v1118
  %v1129 = vadd.f32 %v1090, %v1118
  %v1130 = vadd.f32 %v1091, %v1118
  %v1131 = vadd.f32 %v1092, %v1118
  %v1132 = vadd.f32 %v1093, %v1118
  %v1133 = vadd.f32 %v1094, %v1118
  %v1134 = vadd.f32 %v1095, %v1118
  %v1135 = vadd.f32 %v1096, %v1118
  %v1136 = vadd.f32 %v1097, %v1118
  %v1137 = vadd.f32 %v1098, %v1118
  %v1138 = vadd.f32 %v1099, %v1118
  %v1139 = vadd.f32 %v1100, %v1118
  %v1140 = vadd.f32 %v1101, %v1118
  %v1141 = vadd.f32 %v1102, %v1118
  %v1142 = vadd.f32 %v1103, %v1118
  %v1143 = vadd.f32 %v1104, %v1118
  %v1144 = vadd.f32 %v1105, %v1118
  %v1145 = vadd.f32 %v1106, %v1118
  %v1146 = vadd.f32 %v1107, %v1118
  %v1147 = vadd.f32 %v1108, %v1118
  %v1148 = vadd.f32 %v1109, %v1118
  %v1149 = vadd.f32 %v1110, %v1118
  %v1150 = vadd.f32 %v1111, %v1118
  %v1151 = vadd.f32 %v1112, %v1118
  %v1152 = vmax.f32 %v1120, 0.0
  %v1153 = vmax.f32 %v1121, 0.0
  %v1154 = vmax.f32 %v1122, 0.0
  %v1155 = vmax.f32 %v1123, 0.0
  %v1156 = vmax.f32 %v1124, 0.0
  %v1157 = vmax.f32 %v1125, 0.0
  %v1158 = vmax.f32 %v1126, 0.0
  %v1159 = vmax.f32 %v1127, 0.0
  %v1160 = vmax.f32 %v1128, 0.0
  %v1161 = vmax.f32 %v1129, 0.0
  %v1162 = vmax.f32 %v1130, 0.0
  %v1163 = vmax.f32 %v1131, 0.0
  %v1164 = vmax.f32 %v1132, 0.0
  %v1165 = vmax.f32 %v1133, 0.0
  %v1166 = vmax.f32 %v1134, 0.0
  %v1167 = vmax.f32 %v1135, 0.0
  %v1168 = vmax.f32 %v1136, 0.0
  %v1169 = vmax.f32 %v1137, 0.0
  %v1170 = vmax.f32 %v1138, 0.0
  %v1171 = vmax.f32 %v1139, 0.0
  %v1172 = vmax.f32 %v1140, 0.0
  %v1173 = vmax.f32 %v1141, 0.0
  %v1174 = vmax.f32 %v1142, 0.0
  %v1175 = vmax.f32 %v1143, 0.0
  %v1176 = vmax.f32 %v1144, 0.0
  %v1177 = vmax.f32 %v1145, 0.0
  %v1178 = vmax.f32 %v1146, 0.0
  %v1179 = vmax.f32 %v1147, 0.0
  %v1180 = vmax.f32 %v1148, 0.0
  %v1181 = vmax.f32 %v1149, 0.0
  %v1182 = vmax.f32 %v1150, 0.0
  %v1183 = vmax.f32 %v1151, 0.0
  %v1184 = vpack.c.bf16 %v1152, %v1152
  %v1185 = vld [vmem:[%s3] sm:$0xf]
  %v1186 = vld [vmem:[%s3 + $0x4] sm:$0xf]
  %v1187 = vld [vmem:[%s3 + $0x8] sm:$0xf]
  %v1188 = vld [vmem:[%s3 + $0xc] sm:$0xf]
  %v1189 = vld [vmem:[%s3 + $0x10] sm:$0xf]
  %v1190 = vld [vmem:[%s3 + $0x14] sm:$0xf]
  %v1191 = vld [vmem:[%s3 + $0x18] sm:$0xf]
  %v1192 = vld [vmem:[%s3 + $0x1c] sm:$0xf]
  %v1193 = vpack.c.bf16 %v1153, %v1153
  %s1194 = scalar_lea.vmem %s3, 32
  %v1195 = vld [vmem:[%s1194] sm:$0xf]
  %v1196 = vld [vmem:[%s1194 + $0x4] sm:$0xf]
  %v1197 = vld [vmem:[%s1194 + $0x8] sm:$0xf]
  %v1198 = vld [vmem:[%s1194 + $0xc] sm:$0xf]
  %v1199 = vld [vmem:[%s1194 + $0x10] sm:$0xf]
  %v1200 = vld [vmem:[%s1194 + $0x14] sm:$0xf]
  %v1201 = vld [vmem:[%s1194 + $0x18] sm:$0xf]
  %v1202 = vld [vmem:[%s1194 + $0x1c] sm:$0xf]
  %v1211 = vunpack.c.l.b16 %v1195
  %v1212 = vunpack.c.l.b16 %v1196
  %v1213 = vunpack.c.l.b16 %v1197
  %v1214 = vunpack.c.l.b16 %v1198
  %v1215 = vunpack.c.l.b16 %v1199
  %v1216 = vunpack.c.l.b16 %v1200
  %v1217 = vunpack.c.l.b16 %v1201
  %v1218 = vunpack.c.l.b16 %v1202
  %v1219 = vpack.c.b16 %v1212, %v1211
  %v1220 = vpack.c.b16 %v1214, %v1213
  %v1221 = vpack.c.b16 %v1216, %v1215
  %v1222 = vpack.c.b16 %v1218, %v1217
  %vm1227 = vcmask 523264
  %v1229 = vsel %vm1227, %v1193, 0
  %1231 = vmatprep.subr.bf16.mxu0 0
  %1232 = vmatpush1.bf16.msra.mxu0 %v1219
  %1233 = vmatprep.subr.bf16.mxu0 0
  %1234 = vmatpush1.bf16.msra.mxu0 %v1220
  %1235 = vmatprep.subr.bf16.mxu0 0
  %1236 = vmatpush1.bf16.msra.mxu0 %v1221
  %1237 = vmatprep.subr.bf16.mxu0 0
  %1238 = vmatpush1.bf16.msra.mxu0 %v1222
  %1239 = vmatprep.subr.bf16.mxu0 0
  %1240 = vmatpush1.bf16.msra.mxu0 0
  %1241 = vmatprep.subr.bf16.mxu0 0
  %1242 = vmatpush1.bf16.msra.mxu0 0
  %1243 = vmatprep.subr.bf16.mxu0 0
  %1244 = vmatpush1.bf16.msra.mxu0 0
  %1245 = vmatprep.subr.bf16.mxu0 0
  %1246 = vmatpush1.bf16.msra.mxu0 0
  %1247 = vmatprep.subr.bf16.mxu0 0
  %1248 = vmatpush1.bf16.msra.mxu0 0
  %1249 = vmatprep.subr.bf16.mxu0 0
  %1250 = vmatpush1.bf16.msra.mxu0 0
  %1251 = vmatprep.subr.bf16.mxu0 0
  %1252 = vmatpush1.bf16.msra.mxu0 0
  %1253 = vmatprep.subr.bf16.mxu0 0
  %1254 = vmatpush1.bf16.msra.mxu0 0
  %1255 = vmatprep.subr.bf16.mxu0 0
  %1256 = vmatpush1.bf16.msra.mxu0 0
  %1257 = vmatprep.subr.bf16.mxu0 0
  %1258 = vmatpush1.bf16.msra.mxu0 0
  %1259 = vmatprep.subr.bf16.mxu0 0
  %1260 = vmatpush1.bf16.msra.mxu0 0
  %1261 = vmatprep.subr.bf16.mxu0 0
  %1262 = vmatpush1.bf16.msra.mxu0 0
  %1263 = vmatprep.mubr.bf16.mxu0 0
  %1264 = vmatmul.mubr.bf16.gmra.mrb[0].mxu0 %v1229
  %v1265 = vpop.f32.mrb[0].mxu0
  %v1266 = vadd.f32 0.0, %v1265
  %v1267 = vpop.f32.mrb[0].mxu0
  %v1268 = vpop.f32.mrb[0].mxu0
  %v1269 = vpop.f32.mrb[0].mxu0
  %1270 = vdwg.mxu0
  %v1279 = vunpack.c.l.b16 %v1185
  %v1280 = vunpack.c.l.b16 %v1186
  %v1281 = vunpack.c.l.b16 %v1187
  %v1282 = vunpack.c.l.b16 %v1188
  %v1283 = vunpack.c.l.b16 %v1189
  %v1284 = vunpack.c.l.b16 %v1190
  %v1285 = vunpack.c.l.b16 %v1191
  %v1286 = vunpack.c.l.b16 %v1192
  %v1287 = vpack.c.b16 %v1280, %v1279
  %v1288 = vpack.c.b16 %v1282, %v1281
  %v1289 = vpack.c.b16 %v1284, %v1283
  %v1290 = vpack.c.b16 %v1286, %v1285
  %v1296 = vsel %vm1227, %v1184, 0
  %1298 = vmatprep.subr.bf16.mxu0 0
  %1299 = vmatpush1.bf16.msra.mxu0 %v1287
  %1300 = vmatprep.subr.bf16.mxu0 0
  %1301 = vmatpush1.bf16.msra.mxu0 %v1288
  %1302 = vmatprep.subr.bf16.mxu0 0
  %1303 = vmatpush1.bf16.msra.mxu0 %v1289
  %1304 = vmatprep.subr.bf16.mxu0 0
  %1305 = vmatpush1.bf16.msra.mxu0 %v1290
  %1306 = vmatprep.subr.bf16.mxu0 0
  %1307 = vmatpush1.bf16.msra.mxu0 0
  %1308 = vmatprep.subr.bf16.mxu0 0
  %1309 = vmatpush1.bf16.msra.mxu0 0
  %1310 = vmatprep.subr.bf16.mxu0 0
  %1311 = vmatpush1.bf16.msra.mxu0 0
  %1312 = vmatprep.subr.bf16.mxu0 0
  %1313 = vmatpush1.bf16.msra.mxu0 0
  %1314 = vmatprep.subr.bf16.mxu0 0
  %1315 = vmatpush1.bf16.msra.mxu0 0
  %1316 = vmatprep.subr.bf16.mxu0 0
  %1317 = vmatpush1.bf16.msra.mxu0 0
  %1318 = vmatprep.subr.bf16.mxu0 0
  %1319 = vmatpush1.bf16.msra.mxu0 0
  %1320 = vmatprep.subr.bf16.mxu0 0
  %1321 = vmatpush1.bf16.msra.mxu0 0
  %1322 = vmatprep.subr.bf16.mxu0 0
  %1323 = vmatpush1.bf16.msra.mxu0 0
  %1324 = vmatprep.subr.bf16.mxu0 0
  %1325 = vmatpush1.bf16.msra.mxu0 0
  %1326 = vmatprep.subr.bf16.mxu0 0
  %1327 = vmatpush1.bf16.msra.mxu0 0
  %1328 = vmatprep.subr.bf16.mxu0 0
  %1329 = vmatpush1.bf16.msra.mxu0 0
  %1330 = vmatprep.mubr.bf16.mxu0 0
  %1331 = vmatmul.mubr.bf16.gmra.mrb[0].mxu0 %v1296
  %v1332 = vpop.f32.mrb[0].mxu0
  %v1333 = vadd.f32 %v1266, %v1332
  %v1334 = vpop.f32.mrb[0].mxu0
  %v1335 = vpop.f32.mrb[0].mxu0
  %v1336 = vpop.f32.mrb[0].mxu0
  %1337 = vdwg.mxu0
  %v1338 = vpack.c.bf16 %v1154, %v1154
  %s1339 = scalar_lea.vmem %s3, 64
  %v1340 = vld [vmem:[%s1339] sm:$0xf]
  %v1341 = vld [vmem:[%s1339 + $0x4] sm:$0xf]
  %v1342 = vld [vmem:[%s1339 + $0x8] sm:$0xf]
  %v1343 = vld [vmem:[%s1339 + $0xc] sm:$0xf]
  %v1344 = vld [vmem:[%s1339 + $0x10] sm:$0xf]
  %v1345 = vld [vmem:[%s1339 + $0x14] sm:$0xf]
  %v1346 = vld [vmem:[%s1339 + $0x18] sm:$0xf]
  %v1347 = vld [vmem:[%s1339 + $0x1c] sm:$0xf]
  %v1356 = vunpack.c.l.b16 %v1340
  %v1357 = vunpack.c.l.b16 %v1341
  %v1358 = vunpack.c.l.b16 %v1342
  %v1359 = vunpack.c.l.b16 %v1343
  %v1360 = vunpack.c.l.b16 %v1344
  %v1361 = vunpack.c.l.b16 %v1345
  %v1362 = vunpack.c.l.b16 %v1346
  %v1363 = vunpack.c.l.b16 %v1347
  %v1364 = vpack.c.b16 %v1357, %v1356
  %v1365 = vpack.c.b16 %v1359, %v1358
  %v1366 = vpack.c.b16 %v1361, %v1360
  %v1367 = vpack.c.b16 %v1363, %v1362
  %v1373 = vsel %vm1227, %v1338, 0
  %1375 = vmatprep.subr.bf16.mxu0 0
  %1376 = vmatpush1.bf16.msra.mxu0 %v1364
  %1377 = vmatprep.subr.bf16.mxu0 0
  %1378 = vmatpush1.bf16.msra.mxu0 %v1365
  %1379 = vmatprep.subr.bf16.mxu0 0
  %1380 = vmatpush1.bf16.msra.mxu0 %v1366
  %1381 = vmatprep.subr.bf16.mxu0 0
  %1382 = vmatpush1.bf16.msra.mxu0 %v1367
  %1383 = vmatprep.subr.bf16.mxu0 0
  %1384 = vmatpush1.bf16.msra.mxu0 0
  %1385 = vmatprep.subr.bf16.mxu0 0
  %1386 = vmatpush1.bf16.msra.mxu0 0
  %1387 = vmatprep.subr.bf16.mxu0 0
  %1388 = vmatpush1.bf16.msra.mxu0 0
  %1389 = vmatprep.subr.bf16.mxu0 0
  %1390 = vmatpush1.bf16.msra.mxu0 0
  %1391 = vmatprep.subr.bf16.mxu0 0
  %1392 = vmatpush1.bf16.msra.mxu0 0
  %1393 = vmatprep.subr.bf16.mxu0 0
  %1394 = vmatpush1.bf16.msra.mxu0 0
  %1395 = vmatprep.subr.bf16.mxu0 0
  %1396 = vmatpush1.bf16.msra.mxu0 0
  %1397 = vmatprep.subr.bf16.mxu0 0
  %1398 = vmatpush1.bf16.msra.mxu0 0
  %1399 = vmatprep.subr.bf16.mxu0 0
  %1400 = vmatpush1.bf16.msra.mxu0 0
  %1401 = vmatprep.subr.bf16.mxu0 0
  %1402 = vmatpush1.bf16.msra.mxu0 0
  %1403 = vmatprep.subr.bf16.mxu0 0
  %1404 = vmatpush1.bf16.msra.mxu0 0
  %1405 = vmatprep.subr.bf16.mxu0 0
  %1406 = vmatpush1.bf16.msra.mxu0 0
  %1407 = vmatprep.mubr.bf16.mxu0 0
  %1408 = vmatmul.mubr.bf16.gmra.mrb[0].mxu0 %v1373
  %v1409 = vpop.f32.mrb[0].mxu0
  %v1410 = vadd.f32 0.0, %v1409
  %v1411 = vpop.f32.mrb[0].mxu0
  %v1412 = vpop.f32.mrb[0].mxu0
  %v1413 = vpop.f32.mrb[0].mxu0
  %1414 = vdwg.mxu0
  %v1415 = vadd.f32 %v1333, %v1410
  %v1416 = vpack.c.bf16 %v1155, %v1155
  %s1417 = scalar_lea.vmem %s3, 96
  %v1418 = vld [vmem:[%s1417] sm:$0xf]
  %v1419 = vld [vmem:[%s1417 + $0x4] sm:$0xf]
  %v1420 = vld [vmem:[%s1417 + $0x8] sm:$0xf]
  %v1421 = vld [vmem:[%s1417 + $0xc] sm:$0xf]
  %v1422 = vld [vmem:[%s1417 + $0x10] sm:$0xf]
  %v1423 = vld [vmem:[%s1417 + $0x14] sm:$0xf]
  %v1424 = vld [vmem:[%s1417 + $0x18] sm:$0xf]
  %v1425 = vld [vmem:[%s1417 + $0x1c] sm:$0xf]
  %v1434 = vunpack.c.l.b16 %v1418
  %v1435 = vunpack.c.l.b16 %v1419
  %v1436 = vunpack.c.l.b16 %v1420
  %v1437 = vunpack.c.l.b16 %v1421
  %v1438 = vunpack.c.l.b16 %v1422
  %v1439 = vunpack.c.l.b16 %v1423
  %v1440 = vunpack.c.l.b16 %v1424
  %v1441 = vunpack.c.l.b16 %v1425
  %v1442 = vpack.c.b16 %v1435, %v1434
  %v1443 = vpack.c.b16 %v1437, %v1436
  %v1444 = vpack.c.b16 %v1439, %v1438
  %v1445 = vpack.c.b16 %v1441, %v1440
  %v1451 = vsel %vm1227, %v1416, 0
  %1453 = vmatprep.subr.bf16.mxu0 0
  %1454 = vmatpush1.bf16.msra.mxu0 %v1442
  %1455 = vmatprep.subr.bf16.mxu0 0
  %1456 = vmatpush1.bf16.msra.mxu0 %v1443
  %1457 = vmatprep.subr.bf16.mxu0 0
  %1458 = vmatpush1.bf16.msra.mxu0 %v1444
  %1459 = vmatprep.subr.bf16.mxu0 0
  %1460 = vmatpush1.bf16.msra.mxu0 %v1445
  %1461 = vmatprep.subr.bf16.mxu0 0
  %1462 = vmatpush1.bf16.msra.mxu0 0
  %1463 = vmatprep.subr.bf16.mxu0 0
  %1464 = vmatpush1.bf16.msra.mxu0 0
  %1465 = vmatprep.subr.bf16.mxu0 0
  %1466 = vmatpush1.bf16.msra.mxu0 0
  %1467 = vmatprep.subr.bf16.mxu0 0
  %1468 = vmatpush1.bf16.msra.mxu0 0
  %1469 = vmatprep.subr.bf16.mxu0 0
  %1470 = vmatpush1.bf16.msra.mxu0 0
  %1471 = vmatprep.subr.bf16.mxu0 0
  %1472 = vmatpush1.bf16.msra.mxu0 0
  %1473 = vmatprep.subr.bf16.mxu0 0
  %1474 = vmatpush1.bf16.msra.mxu0 0
  %1475 = vmatprep.subr.bf16.mxu0 0
  %1476 = vmatpush1.bf16.msra.mxu0 0
  %1477 = vmatprep.subr.bf16.mxu0 0
  %1478 = vmatpush1.bf16.msra.mxu0 0
  %1479 = vmatprep.subr.bf16.mxu0 0
  %1480 = vmatpush1.bf16.msra.mxu0 0
  %1481 = vmatprep.subr.bf16.mxu0 0
  %1482 = vmatpush1.bf16.msra.mxu0 0
  %1483 = vmatprep.subr.bf16.mxu0 0
  %1484 = vmatpush1.bf16.msra.mxu0 0
  %1485 = vmatprep.mubr.bf16.mxu0 0
  %1486 = vmatmul.mubr.bf16.gmra.mrb[0].mxu0 %v1451
  %v1487 = vpop.f32.mrb[0].mxu0
  %v1488 = vadd.f32 0.0, %v1487
  %v1489 = vpop.f32.mrb[0].mxu0
  %v1490 = vpop.f32.mrb[0].mxu0
  %v1491 = vpop.f32.mrb[0].mxu0
  %1492 = vdwg.mxu0
  %v1493 = vadd.f32 %v1415, %v1488
  %v1494 = vpack.c.bf16 %v1156, %v1156
  %s1495 = scalar_lea.vmem %s3, 128
  %v1496 = vld [vmem:[%s1495] sm:$0xf]
  %v1497 = vld [vmem:[%s1495 + $0x4] sm:$0xf]
  %v1498 = vld [vmem:[%s1495 + $0x8] sm:$0xf]
  %v1499 = vld [vmem:[%s1495 + $0xc] sm:$0xf]
  %v1500 = vld [vmem:[%s1495 + $0x10] sm:$0xf]
  %v1501 = vld [vmem:[%s1495 + $0x14] sm:$0xf]
  %v1502 = vld [vmem:[%s1495 + $0x18] sm:$0xf]
  %v1503 = vld [vmem:[%s1495 + $0x1c] sm:$0xf]
  %v1512 = vunpack.c.l.b16 %v1496
  %v1513 = vunpack.c.l.b16 %v1497
  %v1514 = vunpack.c.l.b16 %v1498
  %v1515 = vunpack.c.l.b16 %v1499
  %v1516 = vunpack.c.l.b16 %v1500
  %v1517 = vunpack.c.l.b16 %v1501
  %v1518 = vunpack.c.l.b16 %v1502
  %v1519 = vunpack.c.l.b16 %v1503
  %v1520 = vpack.c.b16 %v1513, %v1512
  %v1521 = vpack.c.b16 %v1515, %v1514
  %v1522 = vpack.c.b16 %v1517, %v1516
  %v1523 = vpack.c.b16 %v1519, %v1518
  %v1529 = vsel %vm1227, %v1494, 0
  %1531 = vmatprep.subr.bf16.mxu0 0
  %1532 = vmatpush1.bf16.msra.mxu0 %v1520
  %1533 = vmatprep.subr.bf16.mxu0 0
  %1534 = vmatpush1.bf16.msra.mxu0 %v1521
  %1535 = vmatprep.subr.bf16.mxu0 0
  %1536 = vmatpush1.bf16.msra.mxu0 %v1522
  %1537 = vmatprep.subr.bf16.mxu0 0
  %1538 = vmatpush1.bf16.msra.mxu0 %v1523
  %1539 = vmatprep.subr.bf16.mxu0 0
  %1540 = vmatpush1.bf16.msra.mxu0 0
  %1541 = vmatprep.subr.bf16.mxu0 0
  %1542 = vmatpush1.bf16.msra.mxu0 0
  %1543 = vmatprep.subr.bf16.mxu0 0
  %1544 = vmatpush1.bf16.msra.mxu0 0
  %1545 = vmatprep.subr.bf16.mxu0 0
  %1546 = vmatpush1.bf16.msra.mxu0 0
  %1547 = vmatprep.subr.bf16.mxu0 0
  %1548 = vmatpush1.bf16.msra.mxu0 0
  %1549 = vmatprep.subr.bf16.mxu0 0
  %1550 = vmatpush1.bf16.msra.mxu0 0
  %1551 = vmatprep.subr.bf16.mxu0 0
  %1552 = vmatpush1.bf16.msra.mxu0 0
  %1553 = vmatprep.subr.bf16.mxu0 0
  %1554 = vmatpush1.bf16.msra.mxu0 0
  %1555 = vmatprep.subr.bf16.mxu0 0
  %1556 = vmatpush1.bf16.msra.mxu0 0
  %1557 = vmatprep.subr.bf16.mxu0 0
  %1558 = vmatpush1.bf16.msra.mxu0 0
  %1559 = vmatprep.subr.bf16.mxu0 0
  %1560 = vmatpush1.bf16.msra.mxu0 0
  %1561 = vmatprep.subr.bf16.mxu0 0
  %1562 = vmatpush1.bf16.msra.mxu0 0
  %1563 = vmatprep.mubr.bf16.mxu0 0
  %1564 = vmatmul.mubr.bf16.gmra.mrb[0].mxu0 %v1529
  %v1565 = vpop.f32.mrb[0].mxu0
  %v1566 = vadd.f32 0.0, %v1565
  %v1567 = vpop.f32.mrb[0].mxu0
  %v1568 = vpop.f32.mrb[0].mxu0
  %v1569 = vpop.f32.mrb[0].mxu0
  %1570 = vdwg.mxu0
  %v1571 = vadd.f32 %v1493, %v1566
  %v1572 = vpack.c.bf16 %v1157, %v1157
  %s1573 = scalar_lea.vmem %s3, 160
  %v1574 = vld [vmem:[%s1573] sm:$0xf]
  %v1575 = vld [vmem:[%s1573 + $0x4] sm:$0xf]
  %v1576 = vld [vmem:[%s1573 + $0x8] sm:$0xf]
  %v1577 = vld [vmem:[%s1573 + $0xc] sm:$0xf]
  %v1578 = vld [vmem:[%s1573 + $0x10] sm:$0xf]
  %v1579 = vld [vmem:[%s1573 + $0x14] sm:$0xf]
  %v1580 = vld [vmem:[%s1573 + $0x18] sm:$0xf]
  %v1581 = vld [vmem:[%s1573 + $0x1c] sm:$0xf]
  %v1590 = vunpack.c.l.b16 %v1574
  %v1591 = vunpack.c.l.b16 %v1575
  %v1592 = vunpack.c.l.b16 %v1576
  %v1593 = vunpack.c.l.b16 %v1577
  %v1594 = vunpack.c.l.b16 %v1578
  %v1595 = vunpack.c.l.b16 %v1579
  %v1596 = vunpack.c.l.b16 %v1580
  %v1597 = vunpack.c.l.b16 %v1581
  %v1598 = vpack.c.b16 %v1591, %v1590
  %v1599 = vpack.c.b16 %v1593, %v1592
  %v1600 = vpack.c.b16 %v1595, %v1594
  %v1601 = vpack.c.b16 %v1597, %v1596
  %v1607 = vsel %vm1227, %v1572, 0
  %1609 = vmatprep.subr.bf16.mxu0 0
  %1610 = vmatpush1.bf16.msra.mxu0 %v1598
  %1611 = vmatprep.subr.bf16.mxu0 0
  %1612 = vmatpush1.bf16.msra.mxu0 %v1599
  %1613 = vmatprep.subr.bf16.mxu0 0
  %1614 = vmatpush1.bf16.msra.mxu0 %v1600
  %1615 = vmatprep.subr.bf16.mxu0 0
  %1616 = vmatpush1.bf16.msra.mxu0 %v1601
  %1617 = vmatprep.subr.bf16.mxu0 0
  %1618 = vmatpush1.bf16.msra.mxu0 0
  %1619 = vmatprep.subr.bf16.mxu0 0
  %1620 = vmatpush1.bf16.msra.mxu0 0
  %1621 = vmatprep.subr.bf16.mxu0 0
  %1622 = vmatpush1.bf16.msra.mxu0 0
  %1623 = vmatprep.subr.bf16.mxu0 0
  %1624 = vmatpush1.bf16.msra.mxu0 0
  %1625 = vmatprep.subr.bf16.mxu0 0
  %1626 = vmatpush1.bf16.msra.mxu0 0
  %1627 = vmatprep.subr.bf16.mxu0 0
  %1628 = vmatpush1.bf16.msra.mxu0 0
  %1629 = vmatprep.subr.bf16.mxu0 0
  %1630 = vmatpush1.bf16.msra.mxu0 0
  %1631 = vmatprep.subr.bf16.mxu0 0
  %1632 = vmatpush1.bf16.msra.mxu0 0
  %1633 = vmatprep.subr.bf16.mxu0 0
  %1634 = vmatpush1.bf16.msra.mxu0 0
  %1635 = vmatprep.subr.bf16.mxu0 0
  %1636 = vmatpush1.bf16.msra.mxu0 0
  %1637 = vmatprep.subr.bf16.mxu0 0
  %1638 = vmatpush1.bf16.msra.mxu0 0
  %1639 = vmatprep.subr.bf16.mxu0 0
  %1640 = vmatpush1.bf16.msra.mxu0 0
  %1641 = vmatprep.mubr.bf16.mxu0 0
  %1642 = vmatmul.mubr.bf16.gmra.mrb[0].mxu0 %v1607
  %v1643 = vpop.f32.mrb[0].mxu0
  %v1644 = vadd.f32 0.0, %v1643
  %v1645 = vpop.f32.mrb[0].mxu0
  %v1646 = vpop.f32.mrb[0].mxu0
  %v1647 = vpop.f32.mrb[0].mxu0
  %1648 = vdwg.mxu0
  %v1649 = vadd.f32 %v1571, %v1644
  %v1650 = vpack.c.bf16 %v1158, %v1158
  %s1651 = scalar_lea.vmem %s3, 192
  %v1652 = vld [vmem:[%s1651] sm:$0xf]
  %v1653 = vld [vmem:[%s1651 + $0x4] sm:$0xf]
  %v1654 = vld [vmem:[%s1651 + $0x8] sm:$0xf]
  %v1655 = vld [vmem:[%s1651 + $0xc] sm:$0xf]
  %v1656 = vld [vmem:[%s1651 + $0x10] sm:$0xf]
  %v1657 = vld [vmem:[%s1651 + $0x14] sm:$0xf]
  %v1658 = vld [vmem:[%s1651 + $0x18] sm:$0xf]
  %v1659 = vld [vmem:[%s1651 + $0x1c] sm:$0xf]
  %v1668 = vunpack.c.l.b16 %v1652
  %v1669 = vunpack.c.l.b16 %v1653
  %v1670 = vunpack.c.l.b16 %v1654
  %v1671 = vunpack.c.l.b16 %v1655
  %v1672 = vunpack.c.l.b16 %v1656
  %v1673 = vunpack.c.l.b16 %v1657
  %v1674 = vunpack.c.l.b16 %v1658
  %v1675 = vunpack.c.l.b16 %v1659
  %v1676 = vpack.c.b16 %v1669, %v1668
  %v1677 = vpack.c.b16 %v1671, %v1670
  %v1678 = vpack.c.b16 %v1673, %v1672
  %v1679 = vpack.c.b16 %v1675, %v1674
  %v1685 = vsel %vm1227, %v1650, 0
  %1687 = vmatprep.subr.bf16.mxu0 0
  %1688 = vmatpush1.bf16.msra.mxu0 %v1676
  %1689 = vmatprep.subr.bf16.mxu0 0
  %1690 = vmatpush1.bf16.msra.mxu0 %v1677
  %1691 = vmatprep.subr.bf16.mxu0 0
  %1692 = vmatpush1.bf16.msra.mxu0 %v1678
  %1693 = vmatprep.subr.bf16.mxu0 0
  %1694 = vmatpush1.bf16.msra.mxu0 %v1679
  %1695 = vmatprep.subr.bf16.mxu0 0
  %1696 = vmatpush1.bf16.msra.mxu0 0
  %1697 = vmatprep.subr.bf16.mxu0 0
  %1698 = vmatpush1.bf16.msra.mxu0 0
  %1699 = vmatprep.subr.bf16.mxu0 0
  %1700 = vmatpush1.bf16.msra.mxu0 0
  %1701 = vmatprep.subr.bf16.mxu0 0
  %1702 = vmatpush1.bf16.msra.mxu0 0
  %1703 = vmatprep.subr.bf16.mxu0 0
  %1704 = vmatpush1.bf16.msra.mxu0 0
  %1705 = vmatprep.subr.bf16.mxu0 0
  %1706 = vmatpush1.bf16.msra.mxu0 0
  %1707 = vmatprep.subr.bf16.mxu0 0
  %1708 = vmatpush1.bf16.msra.mxu0 0
  %1709 = vmatprep.subr.bf16.mxu0 0
  %1710 = vmatpush1.bf16.msra.mxu0 0
  %1711 = vmatprep.subr.bf16.mxu0 0
  %1712 = vmatpush1.bf16.msra.mxu0 0
  %1713 = vmatprep.subr.bf16.mxu0 0
  %1714 = vmatpush1.bf16.msra.mxu0 0
  %1715 = vmatprep.subr.bf16.mxu0 0
  %1716 = vmatpush1.bf16.msra.mxu0 0
  %1717 = vmatprep.subr.bf16.mxu0 0
  %1718 = vmatpush1.bf16.msra.mxu0 0
  %1719 = vmatprep.mubr.bf16.mxu0 0
  %1720 = vmatmul.mubr.bf16.gmra.mrb[0].mxu0 %v1685
  %v1721 = vpop.f32.mrb[0].mxu0
  %v1722 = vadd.f32 0.0, %v1721
  %v1723 = vpop.f32.mrb[0].mxu0
  %v1724 = vpop.f32.mrb[0].mxu0
  %v1725 = vpop.f32.mrb[0].mxu0
  %1726 = vdwg.mxu0
  %v1727 = vadd.f32 %v1649, %v1722
  %v1728 = vpack.c.bf16 %v1159, %v1159
  %s1729 = scalar_lea.vmem %s3, 224
  %v1730 = vld [vmem:[%s1729] sm:$0xf]
  %v1731 = vld [vmem:[%s1729 + $0x4] sm:$0xf]
  %v1732 = vld [vmem:[%s1729 + $0x8] sm:$0xf]
  %v1733 = vld [vmem:[%s1729 + $0xc] sm:$0xf]
  %v1734 = vld [vmem:[%s1729 + $0x10] sm:$0xf]
  %v1735 = vld [vmem:[%s1729 + $0x14] sm:$0xf]
  %v1736 = vld [vmem:[%s1729 + $0x18] sm:$0xf]
  %v1737 = vld [vmem:[%s1729 + $0x1c] sm:$0xf]
  %v1746 = vunpack.c.l.b16 %v1730
  %v1747 = vunpack.c.l.b16 %v1731
  %v1748 = vunpack.c.l.b16 %v1732
  %v1749 = vunpack.c.l.b16 %v1733
  %v1750 = vunpack.c.l.b16 %v1734
  %v1751 = vunpack.c.l.b16 %v1735
  %v1752 = vunpack.c.l.b16 %v1736
  %v1753 = vunpack.c.l.b16 %v1737
  %v1754 = vpack.c.b16 %v1747, %v1746
  %v1755 = vpack.c.b16 %v1749, %v1748
  %v1756 = vpack.c.b16 %v1751, %v1750
  %v1757 = vpack.c.b16 %v1753, %v1752
  %v1763 = vsel %vm1227, %v1728, 0
  %1765 = vmatprep.subr.bf16.mxu0 0
  %1766 = vmatpush1.bf16.msra.mxu0 %v1754
  %1767 = vmatprep.subr.bf16.mxu0 0
  %1768 = vmatpush1.bf16.msra.mxu0 %v1755
  %1769 = vmatprep.subr.bf16.mxu0 0
  %1770 = vmatpush1.bf16.msra.mxu0 %v1756
  %1771 = vmatprep.subr.bf16.mxu0 0
  %1772 = vmatpush1.bf16.msra.mxu0 %v1757
  %1773 = vmatprep.subr.bf16.mxu0 0
  %1774 = vmatpush1.bf16.msra.mxu0 0
  %1775 = vmatprep.subr.bf16.mxu0 0
  %1776 = vmatpush1.bf16.msra.mxu0 0
  %1777 = vmatprep.subr.bf16.mxu0 0
  %1778 = vmatpush1.bf16.msra.mxu0 0
  %1779 = vmatprep.subr.bf16.mxu0 0
  %1780 = vmatpush1.bf16.msra.mxu0 0
  %1781 = vmatprep.subr.bf16.mxu0 0
  %1782 = vmatpush1.bf16.msra.mxu0 0
  %1783 = vmatprep.subr.bf16.mxu0 0
  %1784 = vmatpush1.bf16.msra.mxu0 0
  %1785 = vmatprep.subr.bf16.mxu0 0
  %1786 = vmatpush1.bf16.msra.mxu0 0
  %1787 = vmatprep.subr.bf16.mxu0 0
  %1788 = vmatpush1.bf16.msra.mxu0 0
  %1789 = vmatprep.subr.bf16.mxu0 0
  %1790 = vmatpush1.bf16.msra.mxu0 0
  %1791 = vmatprep.subr.bf16.mxu0 0
  %1792 = vmatpush1.bf16.msra.mxu0 0
  %1793 = vmatprep.subr.bf16.mxu0 0
  %1794 = vmatpush1.bf16.msra.mxu0 0
  %1795 = vmatprep.subr.bf16.mxu0 0
  %1796 = vmatpush1.bf16.msra.mxu0 0
  %1797 = vmatprep.mubr.bf16.mxu0 0
  %1798 = vmatmul.mubr.bf16.gmra.mrb[0].mxu0 %v1763
  %v1799 = vpop.f32.mrb[0].mxu0
  %v1800 = vadd.f32 0.0, %v1799
  %v1801 = vpop.f32.mrb[0].mxu0
  %v1802 = vpop.f32.mrb[0].mxu0
  %v1803 = vpop.f32.mrb[0].mxu0
  %1804 = vdwg.mxu0
  %v1805 = vadd.f32 %v1727, %v1800
  %v1806 = vpack.c.bf16 %v1160, %v1160
  %s1807 = scalar_lea.vmem %s3, 256
  %v1808 = vld [vmem:[%s1807] sm:$0xf]
  %v1809 = vld [vmem:[%s1807 + $0x4] sm:$0xf]
  %v1810 = vld [vmem:[%s1807 + $0x8] sm:$0xf]
  %v1811 = vld [vmem:[%s1807 + $0xc] sm:$0xf]
  %v1812 = vld [vmem:[%s1807 + $0x10] sm:$0xf]
  %v1813 = vld [vmem:[%s1807 + $0x14] sm:$0xf]
  %v1814 = vld [vmem:[%s1807 + $0x18] sm:$0xf]
  %v1815 = vld [vmem:[%s1807 + $0x1c] sm:$0xf]
  %v1824 = vunpack.c.l.b16 %v1808
  %v1825 = vunpack.c.l.b16 %v1809
  %v1826 = vunpack.c.l.b16 %v1810
  %v1827 = vunpack.c.l.b16 %v1811
  %v1828 = vunpack.c.l.b16 %v1812
  %v1829 = vunpack.c.l.b16 %v1813
  %v1830 = vunpack.c.l.b16 %v1814
  %v1831 = vunpack.c.l.b16 %v1815
  %v1832 = vpack.c.b16 %v1825, %v1824
  %v1833 = vpack.c.b16 %v1827, %v1826
  %v1834 = vpack.c.b16 %v1829, %v1828
  %v1835 = vpack.c.b16 %v1831, %v1830
  %v1841 = vsel %vm1227, %v1806, 0
  %1843 = vmatprep.subr.bf16.mxu0 0
  %1844 = vmatpush1.bf16.msra.mxu0 %v1832
  %1845 = vmatprep.subr.bf16.mxu0 0
  %1846 = vmatpush1.bf16.msra.mxu0 %v1833
  %1847 = vmatprep.subr.bf16.mxu0 0
  %1848 = vmatpush1.bf16.msra.mxu0 %v1834
  %1849 = vmatprep.subr.bf16.mxu0 0
  %1850 = vmatpush1.bf16.msra.mxu0 %v1835
  %1851 = vmatprep.subr.bf16.mxu0 0
  %1852 = vmatpush1.bf16.msra.mxu0 0
  %1853 = vmatprep.subr.bf16.mxu0 0
  %1854 = vmatpush1.bf16.msra.mxu0 0
  %1855 = vmatprep.subr.bf16.mxu0 0
  %1856 = vmatpush1.bf16.msra.mxu0 0
  %1857 = vmatprep.subr.bf16.mxu0 0
  %1858 = vmatpush1.bf16.msra.mxu0 0
  %1859 = vmatprep.subr.bf16.mxu0 0
  %1860 = vmatpush1.bf16.msra.mxu0 0
  %1861 = vmatprep.subr.bf16.mxu0 0
  %1862 = vmatpush1.bf16.msra.mxu0 0
  %1863 = vmatprep.subr.bf16.mxu0 0
  %1864 = vmatpush1.bf16.msra.mxu0 0
  %1865 = vmatprep.subr.bf16.mxu0 0
  %1866 = vmatpush1.bf16.msra.mxu0 0
  %1867 = vmatprep.subr.bf16.mxu0 0
  %1868 = vmatpush1.bf16.msra.mxu0 0
  %1869 = vmatprep.subr.bf16.mxu0 0
  %1870 = vmatpush1.bf16.msra.mxu0 0
  %1871 = vmatprep.subr.bf16.mxu0 0
  %1872 = vmatpush1.bf16.msra.mxu0 0
  %1873 = vmatprep.subr.bf16.mxu0 0
  %1874 = vmatpush1.bf16.msra.mxu0 0
  %1875 = vmatprep.mubr.bf16.mxu0 0
  %1876 = vmatmul.mubr.bf16.gmra.mrb[0].mxu0 %v1841
  %v1877 = vpop.f32.mrb[0].mxu0
  %v1878 = vadd.f32 0.0, %v1877
  %v1879 = vpop.f32.mrb[0].mxu0
  %v1880 = vpop.f32.mrb[0].mxu0
  %v1881 = vpop.f32.mrb[0].mxu0
  %1882 = vdwg.mxu0
  %v1883 = vadd.f32 %v1805, %v1878
  %v1884 = vpack.c.bf16 %v1161, %v1161
  %s1885 = scalar_lea.vmem %s3, 288
  %v1886 = vld [vmem:[%s1885] sm:$0xf]
  %v1887 = vld [vmem:[%s1885 + $0x4] sm:$0xf]
  %v1888 = vld [vmem:[%s1885 + $0x8] sm:$0xf]
  %v1889 = vld [vmem:[%s1885 + $0xc] sm:$0xf]
  %v1890 = vld [vmem:[%s1885 + $0x10] sm:$0xf]
  %v1891 = vld [vmem:[%s1885 + $0x14] sm:$0xf]
  %v1892 = vld [vmem:[%s1885 + $0x18] sm:$0xf]
  %v1893 = vld [vmem:[%s1885 + $0x1c] sm:$0xf]
  %v1902 = vunpack.c.l.b16 %v1886
  %v1903 = vunpack.c.l.b16 %v1887
  %v1904 = vunpack.c.l.b16 %v1888
  %v1905 = vunpack.c.l.b16 %v1889
  %v1906 = vunpack.c.l.b16 %v1890
  %v1907 = vunpack.c.l.b16 %v1891
  %v1908 = vunpack.c.l.b16 %v1892
  %v1909 = vunpack.c.l.b16 %v1893
  %v1910 = vpack.c.b16 %v1903, %v1902
  %v1911 = vpack.c.b16 %v1905, %v1904
  %v1912 = vpack.c.b16 %v1907, %v1906
  %v1913 = vpack.c.b16 %v1909, %v1908
  %v1919 = vsel %vm1227, %v1884, 0
  %1921 = vmatprep.subr.bf16.mxu0 0
  %1922 = vmatpush1.bf16.msra.mxu0 %v1910
  %1923 = vmatprep.subr.bf16.mxu0 0
  %1924 = vmatpush1.bf16.msra.mxu0 %v1911
  %1925 = vmatprep.subr.bf16.mxu0 0
  %1926 = vmatpush1.bf16.msra.mxu0 %v1912
  %1927 = vmatprep.subr.bf16.mxu0 0
  %1928 = vmatpush1.bf16.msra.mxu0 %v1913
  %1929 = vmatprep.subr.bf16.mxu0 0
  %1930 = vmatpush1.bf16.msra.mxu0 0
  %1931 = vmatprep.subr.bf16.mxu0 0
  %1932 = vmatpush1.bf16.msra.mxu0 0
  %1933 = vmatprep.subr.bf16.mxu0 0
  %1934 = vmatpush1.bf16.msra.mxu0 0
  %1935 = vmatprep.subr.bf16.mxu0 0
  %1936 = vmatpush1.bf16.msra.mxu0 0
  %1937 = vmatprep.subr.bf16.mxu0 0
  %1938 = vmatpush1.bf16.msra.mxu0 0
  %1939 = vmatprep.subr.bf16.mxu0 0
  %1940 = vmatpush1.bf16.msra.mxu0 0
  %1941 = vmatprep.subr.bf16.mxu0 0
  %1942 = vmatpush1.bf16.msra.mxu0 0
  %1943 = vmatprep.subr.bf16.mxu0 0
  %1944 = vmatpush1.bf16.msra.mxu0 0
  %1945 = vmatprep.subr.bf16.mxu0 0
  %1946 = vmatpush1.bf16.msra.mxu0 0
  %1947 = vmatprep.subr.bf16.mxu0 0
  %1948 = vmatpush1.bf16.msra.mxu0 0
  %1949 = vmatprep.subr.bf16.mxu0 0
  %1950 = vmatpush1.bf16.msra.mxu0 0
  %1951 = vmatprep.subr.bf16.mxu0 0
  %1952 = vmatpush1.bf16.msra.mxu0 0
  %1953 = vmatprep.mubr.bf16.mxu0 0
  %1954 = vmatmul.mubr.bf16.gmra.mrb[0].mxu0 %v1919
  %v1955 = vpop.f32.mrb[0].mxu0
  %v1956 = vadd.f32 0.0, %v1955
  %v1957 = vpop.f32.mrb[0].mxu0
  %v1958 = vpop.f32.mrb[0].mxu0
  %v1959 = vpop.f32.mrb[0].mxu0
  %1960 = vdwg.mxu0
  %v1961 = vadd.f32 %v1883, %v1956
  %v1962 = vpack.c.bf16 %v1162, %v1162
  %s1963 = scalar_lea.vmem %s3, 320
  %v1964 = vld [vmem:[%s1963] sm:$0xf]
  %v1965 = vld [vmem:[%s1963 + $0x4] sm:$0xf]
  %v1966 = vld [vmem:[%s1963 + $0x8] sm:$0xf]
  %v1967 = vld [vmem:[%s1963 + $0xc] sm:$0xf]
  %v1968 = vld [vmem:[%s1963 + $0x10] sm:$0xf]
  %v1969 = vld [vmem:[%s1963 + $0x14] sm:$0xf]
  %v1970 = vld [vmem:[%s1963 + $0x18] sm:$0xf]
  %v1971 = vld [vmem:[%s1963 + $0x1c] sm:$0xf]
  %v1980 = vunpack.c.l.b16 %v1964
  %v1981 = vunpack.c.l.b16 %v1965
  %v1982 = vunpack.c.l.b16 %v1966
  %v1983 = vunpack.c.l.b16 %v1967
  %v1984 = vunpack.c.l.b16 %v1968
  %v1985 = vunpack.c.l.b16 %v1969
  %v1986 = vunpack.c.l.b16 %v1970
  %v1987 = vunpack.c.l.b16 %v1971
  %v1988 = vpack.c.b16 %v1981, %v1980
  %v1989 = vpack.c.b16 %v1983, %v1982
  %v1990 = vpack.c.b16 %v1985, %v1984
  %v1991 = vpack.c.b16 %v1987, %v1986
  %v1997 = vsel %vm1227, %v1962, 0
  %1999 = vmatprep.subr.bf16.mxu0 0
  %2000 = vmatpush1.bf16.msra.mxu0 %v1988
  %2001 = vmatprep.subr.bf16.mxu0 0
  %2002 = vmatpush1.bf16.msra.mxu0 %v1989
  %2003 = vmatprep.subr.bf16.mxu0 0
  %2004 = vmatpush1.bf16.msra.mxu0 %v1990
  %2005 = vmatprep.subr.bf16.mxu0 0
  %2006 = vmatpush1.bf16.msra.mxu0 %v1991
  %2007 = vmatprep.subr.bf16.mxu0 0
  %2008 = vmatpush1.bf16.msra.mxu0 0
  %2009 = vmatprep.subr.bf16.mxu0 0
  %2010 = vmatpush1.bf16.msra.mxu0 0
  %2011 = vmatprep.subr.bf16.mxu0 0
  %2012 = vmatpush1.bf16.msra.mxu0 0
  %2013 = vmatprep.subr.bf16.mxu0 0
  %2014 = vmatpush1.bf16.msra.mxu0 0
  %2015 = vmatprep.subr.bf16.mxu0 0
  %2016 = vmatpush1.bf16.msra.mxu0 0
  %2017 = vmatprep.subr.bf16.mxu0 0
  %2018 = vmatpush1.bf16.msra.mxu0 0
  %2019 = vmatprep.subr.bf16.mxu0 0
  %2020 = vmatpush1.bf16.msra.mxu0 0
  %2021 = vmatprep.subr.bf16.mxu0 0
  %2022 = vmatpush1.bf16.msra.mxu0 0
  %2023 = vmatprep.subr.bf16.mxu0 0
  %2024 = vmatpush1.bf16.msra.mxu0 0
  %2025 = vmatprep.subr.bf16.mxu0 0
  %2026 = vmatpush1.bf16.msra.mxu0 0
  %2027 = vmatprep.subr.bf16.mxu0 0
  %2028 = vmatpush1.bf16.msra.mxu0 0
  %2029 = vmatprep.subr.bf16.mxu0 0
  %2030 = vmatpush1.bf16.msra.mxu0 0
  %2031 = vmatprep.mubr.bf16.mxu0 0
  %2032 = vmatmul.mubr.bf16.gmra.mrb[0].mxu0 %v1997
  %v2033 = vpop.f32.mrb[0].mxu0
  %v2034 = vadd.f32 0.0, %v2033
  %v2035 = vpop.f32.mrb[0].mxu0
  %v2036 = vpop.f32.mrb[0].mxu0
  %v2037 = vpop.f32.mrb[0].mxu0
  %2038 = vdwg.mxu0
  %v2039 = vadd.f32 %v1961, %v2034
  %v2040 = vpack.c.bf16 %v1163, %v1163
  %s2041 = scalar_lea.vmem %s3, 352
  %v2042 = vld [vmem:[%s2041] sm:$0xf]
  %v2043 = vld [vmem:[%s2041 + $0x4] sm:$0xf]
  %v2044 = vld [vmem:[%s2041 + $0x8] sm:$0xf]
  %v2045 = vld [vmem:[%s2041 + $0xc] sm:$0xf]
  %v2046 = vld [vmem:[%s2041 + $0x10] sm:$0xf]
  %v2047 = vld [vmem:[%s2041 + $0x14] sm:$0xf]
  %v2048 = vld [vmem:[%s2041 + $0x18] sm:$0xf]
  %v2049 = vld [vmem:[%s2041 + $0x1c] sm:$0xf]
  %v2058 = vunpack.c.l.b16 %v2042
  %v2059 = vunpack.c.l.b16 %v2043
  %v2060 = vunpack.c.l.b16 %v2044
  %v2061 = vunpack.c.l.b16 %v2045
  %v2062 = vunpack.c.l.b16 %v2046
  %v2063 = vunpack.c.l.b16 %v2047
  %v2064 = vunpack.c.l.b16 %v2048
  %v2065 = vunpack.c.l.b16 %v2049
  %v2066 = vpack.c.b16 %v2059, %v2058
  %v2067 = vpack.c.b16 %v2061, %v2060
  %v2068 = vpack.c.b16 %v2063, %v2062
  %v2069 = vpack.c.b16 %v2065, %v2064
  %v2075 = vsel %vm1227, %v2040, 0
  %2077 = vmatprep.subr.bf16.mxu0 0
  %2078 = vmatpush1.bf16.msra.mxu0 %v2066
  %2079 = vmatprep.subr.bf16.mxu0 0
  %2080 = vmatpush1.bf16.msra.mxu0 %v2067
  %2081 = vmatprep.subr.bf16.mxu0 0
  %2082 = vmatpush1.bf16.msra.mxu0 %v2068
  %2083 = vmatprep.subr.bf16.mxu0 0
  %2084 = vmatpush1.bf16.msra.mxu0 %v2069
  %2085 = vmatprep.subr.bf16.mxu0 0
  %2086 = vmatpush1.bf16.msra.mxu0 0
  %2087 = vmatprep.subr.bf16.mxu0 0
  %2088 = vmatpush1.bf16.msra.mxu0 0
  %2089 = vmatprep.subr.bf16.mxu0 0
  %2090 = vmatpush1.bf16.msra.mxu0 0
  %2091 = vmatprep.subr.bf16.mxu0 0
  %2092 = vmatpush1.bf16.msra.mxu0 0
  %2093 = vmatprep.subr.bf16.mxu0 0
  %2094 = vmatpush1.bf16.msra.mxu0 0
  %2095 = vmatprep.subr.bf16.mxu0 0
  %2096 = vmatpush1.bf16.msra.mxu0 0
  %2097 = vmatprep.subr.bf16.mxu0 0
  %2098 = vmatpush1.bf16.msra.mxu0 0
  %2099 = vmatprep.subr.bf16.mxu0 0
  %2100 = vmatpush1.bf16.msra.mxu0 0
  %2101 = vmatprep.subr.bf16.mxu0 0
  %2102 = vmatpush1.bf16.msra.mxu0 0
  %2103 = vmatprep.subr.bf16.mxu0 0
  %2104 = vmatpush1.bf16.msra.mxu0 0
  %2105 = vmatprep.subr.bf16.mxu0 0
  %2106 = vmatpush1.bf16.msra.mxu0 0
  %2107 = vmatprep.subr.bf16.mxu0 0
  %2108 = vmatpush1.bf16.msra.mxu0 0
  %2109 = vmatprep.mubr.bf16.mxu0 0
  %2110 = vmatmul.mubr.bf16.gmra.mrb[0].mxu0 %v2075
  %v2111 = vpop.f32.mrb[0].mxu0
  %v2112 = vadd.f32 0.0, %v2111
  %v2113 = vpop.f32.mrb[0].mxu0
  %v2114 = vpop.f32.mrb[0].mxu0
  %v2115 = vpop.f32.mrb[0].mxu0
  %2116 = vdwg.mxu0
  %v2117 = vadd.f32 %v2039, %v2112
  %v2118 = vpack.c.bf16 %v1164, %v1164
  %s2119 = scalar_lea.vmem %s3, 384
  %v2120 = vld [vmem:[%s2119] sm:$0xf]
  %v2121 = vld [vmem:[%s2119 + $0x4] sm:$0xf]
  %v2122 = vld [vmem:[%s2119 + $0x8] sm:$0xf]
  %v2123 = vld [vmem:[%s2119 + $0xc] sm:$0xf]
  %v2124 = vld [vmem:[%s2119 + $0x10] sm:$0xf]
  %v2125 = vld [vmem:[%s2119 + $0x14] sm:$0xf]
  %v2126 = vld [vmem:[%s2119 + $0x18] sm:$0xf]
  %v2127 = vld [vmem:[%s2119 + $0x1c] sm:$0xf]
  %v2136 = vunpack.c.l.b16 %v2120
  %v2137 = vunpack.c.l.b16 %v2121
  %v2138 = vunpack.c.l.b16 %v2122
  %v2139 = vunpack.c.l.b16 %v2123
  %v2140 = vunpack.c.l.b16 %v2124
  %v2141 = vunpack.c.l.b16 %v2125
  %v2142 = vunpack.c.l.b16 %v2126
  %v2143 = vunpack.c.l.b16 %v2127
  %v2144 = vpack.c.b16 %v2137, %v2136
  %v2145 = vpack.c.b16 %v2139, %v2138
  %v2146 = vpack.c.b16 %v2141, %v2140
  %v2147 = vpack.c.b16 %v2143, %v2142
  %v2153 = vsel %vm1227, %v2118, 0
  %2155 = vmatprep.subr.bf16.mxu0 0
  %2156 = vmatpush1.bf16.msra.mxu0 %v2144
  %2157 = vmatprep.subr.bf16.mxu0 0
  %2158 = vmatpush1.bf16.msra.mxu0 %v2145
  %2159 = vmatprep.subr.bf16.mxu0 0
  %2160 = vmatpush1.bf16.msra.mxu0 %v2146
  %2161 = vmatprep.subr.bf16.mxu0 0
  %2162 = vmatpush1.bf16.msra.mxu0 %v2147
  %2163 = vmatprep.subr.bf16.mxu0 0
  %2164 = vmatpush1.bf16.msra.mxu0 0
  %2165 = vmatprep.subr.bf16.mxu0 0
  %2166 = vmatpush1.bf16.msra.mxu0 0
  %2167 = vmatprep.subr.bf16.mxu0 0
  %2168 = vmatpush1.bf16.msra.mxu0 0
  %2169 = vmatprep.subr.bf16.mxu0 0
  %2170 = vmatpush1.bf16.msra.mxu0 0
  %2171 = vmatprep.subr.bf16.mxu0 0
  %2172 = vmatpush1.bf16.msra.mxu0 0
  %2173 = vmatprep.subr.bf16.mxu0 0
  %2174 = vmatpush1.bf16.msra.mxu0 0
  %2175 = vmatprep.subr.bf16.mxu0 0
  %2176 = vmatpush1.bf16.msra.mxu0 0
  %2177 = vmatprep.subr.bf16.mxu0 0
  %2178 = vmatpush1.bf16.msra.mxu0 0
  %2179 = vmatprep.subr.bf16.mxu0 0
  %2180 = vmatpush1.bf16.msra.mxu0 0
  %2181 = vmatprep.subr.bf16.mxu0 0
  %2182 = vmatpush1.bf16.msra.mxu0 0
  %2183 = vmatprep.subr.bf16.mxu0 0
  %2184 = vmatpush1.bf16.msra.mxu0 0
  %2185 = vmatprep.subr.bf16.mxu0 0
  %2186 = vmatpush1.bf16.msra.mxu0 0
  %2187 = vmatprep.mubr.bf16.mxu0 0
  %2188 = vmatmul.mubr.bf16.gmra.mrb[0].mxu0 %v2153
  %v2189 = vpop.f32.mrb[0].mxu0
  %v2190 = vadd.f32 0.0, %v2189
  %v2191 = vpop.f32.mrb[0].mxu0
  %v2192 = vpop.f32.mrb[0].mxu0
  %v2193 = vpop.f32.mrb[0].mxu0
  %2194 = vdwg.mxu0
  %v2195 = vadd.f32 %v2117, %v2190
  %v2196 = vpack.c.bf16 %v1165, %v1165
  %s2197 = scalar_lea.vmem %s3, 416
  %v2198 = vld [vmem:[%s2197] sm:$0xf]
  %v2199 = vld [vmem:[%s2197 + $0x4] sm:$0xf]
  %v2200 = vld [vmem:[%s2197 + $0x8] sm:$0xf]
  %v2201 = vld [vmem:[%s2197 + $0xc] sm:$0xf]
  %v2202 = vld [vmem:[%s2197 + $0x10] sm:$0xf]
  %v2203 = vld [vmem:[%s2197 + $0x14] sm:$0xf]
  %v2204 = vld [vmem:[%s2197 + $0x18] sm:$0xf]
  %v2205 = vld [vmem:[%s2197 + $0x1c] sm:$0xf]
  %v2214 = vunpack.c.l.b16 %v2198
  %v2215 = vunpack.c.l.b16 %v2199
  %v2216 = vunpack.c.l.b16 %v2200
  %v2217 = vunpack.c.l.b16 %v2201
  %v2218 = vunpack.c.l.b16 %v2202
  %v2219 = vunpack.c.l.b16 %v2203
  %v2220 = vunpack.c.l.b16 %v2204
  %v2221 = vunpack.c.l.b16 %v2205
  %v2222 = vpack.c.b16 %v2215, %v2214
  %v2223 = vpack.c.b16 %v2217, %v2216
  %v2224 = vpack.c.b16 %v2219, %v2218
  %v2225 = vpack.c.b16 %v2221, %v2220
  %v2231 = vsel %vm1227, %v2196, 0
  %2233 = vmatprep.subr.bf16.mxu0 0
  %2234 = vmatpush1.bf16.msra.mxu0 %v2222
  %2235 = vmatprep.subr.bf16.mxu0 0
  %2236 = vmatpush1.bf16.msra.mxu0 %v2223
  %2237 = vmatprep.subr.bf16.mxu0 0
  %2238 = vmatpush1.bf16.msra.mxu0 %v2224
  %2239 = vmatprep.subr.bf16.mxu0 0
  %2240 = vmatpush1.bf16.msra.mxu0 %v2225
  %2241 = vmatprep.subr.bf16.mxu0 0
  %2242 = vmatpush1.bf16.msra.mxu0 0
  %2243 = vmatprep.subr.bf16.mxu0 0
  %2244 = vmatpush1.bf16.msra.mxu0 0
  %2245 = vmatprep.subr.bf16.mxu0 0
  %2246 = vmatpush1.bf16.msra.mxu0 0
  %2247 = vmatprep.subr.bf16.mxu0 0
  %2248 = vmatpush1.bf16.msra.mxu0 0
  %2249 = vmatprep.subr.bf16.mxu0 0
  %2250 = vmatpush1.bf16.msra.mxu0 0
  %2251 = vmatprep.subr.bf16.mxu0 0
  %2252 = vmatpush1.bf16.msra.mxu0 0
  %2253 = vmatprep.subr.bf16.mxu0 0
  %2254 = vmatpush1.bf16.msra.mxu0 0
  %2255 = vmatprep.subr.bf16.mxu0 0
  %2256 = vmatpush1.bf16.msra.mxu0 0
  %2257 = vmatprep.subr.bf16.mxu0 0
  %2258 = vmatpush1.bf16.msra.mxu0 0
  %2259 = vmatprep.subr.bf16.mxu0 0
  %2260 = vmatpush1.bf16.msra.mxu0 0
  %2261 = vmatprep.subr.bf16.mxu0 0
  %2262 = vmatpush1.bf16.msra.mxu0 0
  %2263 = vmatprep.subr.bf16.mxu0 0
  %2264 = vmatpush1.bf16.msra.mxu0 0
  %2265 = vmatprep.mubr.bf16.mxu0 0
  %2266 = vmatmul.mubr.bf16.gmra.mrb[0].mxu0 %v2231
  %v2267 = vpop.f32.mrb[0].mxu0
  %v2268 = vadd.f32 0.0, %v2267
  %v2269 = vpop.f32.mrb[0].mxu0
  %v2270 = vpop.f32.mrb[0].mxu0
  %v2271 = vpop.f32.mrb[0].mxu0
  %2272 = vdwg.mxu0
  %v2273 = vadd.f32 %v2195, %v2268
  %v2274 = vpack.c.bf16 %v1166, %v1166
  %s2275 = scalar_lea.vmem %s3, 448
  %v2276 = vld [vmem:[%s2275] sm:$0xf]
  %v2277 = vld [vmem:[%s2275 + $0x4] sm:$0xf]
  %v2278 = vld [vmem:[%s2275 + $0x8] sm:$0xf]
  %v2279 = vld [vmem:[%s2275 + $0xc] sm:$0xf]
  %v2280 = vld [vmem:[%s2275 + $0x10] sm:$0xf]
  %v2281 = vld [vmem:[%s2275 + $0x14] sm:$0xf]
  %v2282 = vld [vmem:[%s2275 + $0x18] sm:$0xf]
  %v2283 = vld [vmem:[%s2275 + $0x1c] sm:$0xf]
  %v2292 = vunpack.c.l.b16 %v2276
  %v2293 = vunpack.c.l.b16 %v2277
  %v2294 = vunpack.c.l.b16 %v2278
  %v2295 = vunpack.c.l.b16 %v2279
  %v2296 = vunpack.c.l.b16 %v2280
  %v2297 = vunpack.c.l.b16 %v2281
  %v2298 = vunpack.c.l.b16 %v2282
  %v2299 = vunpack.c.l.b16 %v2283
  %v2300 = vpack.c.b16 %v2293, %v2292
  %v2301 = vpack.c.b16 %v2295, %v2294
  %v2302 = vpack.c.b16 %v2297, %v2296
  %v2303 = vpack.c.b16 %v2299, %v2298
  %v2309 = vsel %vm1227, %v2274, 0
  %2311 = vmatprep.subr.bf16.mxu0 0
  %2312 = vmatpush1.bf16.msra.mxu0 %v2300
  %2313 = vmatprep.subr.bf16.mxu0 0
  %2314 = vmatpush1.bf16.msra.mxu0 %v2301
  %2315 = vmatprep.subr.bf16.mxu0 0
  %2316 = vmatpush1.bf16.msra.mxu0 %v2302
  %2317 = vmatprep.subr.bf16.mxu0 0
  %2318 = vmatpush1.bf16.msra.mxu0 %v2303
  %2319 = vmatprep.subr.bf16.mxu0 0
  %2320 = vmatpush1.bf16.msra.mxu0 0
  %2321 = vmatprep.subr.bf16.mxu0 0
  %2322 = vmatpush1.bf16.msra.mxu0 0
  %2323 = vmatprep.subr.bf16.mxu0 0
  %2324 = vmatpush1.bf16.msra.mxu0 0
  %2325 = vmatprep.subr.bf16.mxu0 0
  %2326 = vmatpush1.bf16.msra.mxu0 0
  %2327 = vmatprep.subr.bf16.mxu0 0
  %2328 = vmatpush1.bf16.msra.mxu0 0
  %2329 = vmatprep.subr.bf16.mxu0 0
  %2330 = vmatpush1.bf16.msra.mxu0 0
  %2331 = vmatprep.subr.bf16.mxu0 0
  %2332 = vmatpush1.bf16.msra.mxu0 0
  %2333 = vmatprep.subr.bf16.mxu0 0
  %2334 = vmatpush1.bf16.msra.mxu0 0
  %2335 = vmatprep.subr.bf16.mxu0 0
  %2336 = vmatpush1.bf16.msra.mxu0 0
  %2337 = vmatprep.subr.bf16.mxu0 0
  %2338 = vmatpush1.bf16.msra.mxu0 0
  %2339 = vmatprep.subr.bf16.mxu0 0
  %2340 = vmatpush1.bf16.msra.mxu0 0
  %2341 = vmatprep.subr.bf16.mxu0 0
  %2342 = vmatpush1.bf16.msra.mxu0 0
  %2343 = vmatprep.mubr.bf16.mxu0 0
  %2344 = vmatmul.mubr.bf16.gmra.mrb[0].mxu0 %v2309
  %v2345 = vpop.f32.mrb[0].mxu0
  %v2346 = vadd.f32 0.0, %v2345
  %v2347 = vpop.f32.mrb[0].mxu0
  %v2348 = vpop.f32.mrb[0].mxu0
  %v2349 = vpop.f32.mrb[0].mxu0
  %2350 = vdwg.mxu0
  %v2351 = vadd.f32 %v2273, %v2346
  %v2352 = vpack.c.bf16 %v1167, %v1167
  %s2353 = scalar_lea.vmem %s3, 480
  %v2354 = vld [vmem:[%s2353] sm:$0xf]
  %v2355 = vld [vmem:[%s2353 + $0x4] sm:$0xf]
  %v2356 = vld [vmem:[%s2353 + $0x8] sm:$0xf]
  %v2357 = vld [vmem:[%s2353 + $0xc] sm:$0xf]
  %v2358 = vld [vmem:[%s2353 + $0x10] sm:$0xf]
  %v2359 = vld [vmem:[%s2353 + $0x14] sm:$0xf]
  %v2360 = vld [vmem:[%s2353 + $0x18] sm:$0xf]
  %v2361 = vld [vmem:[%s2353 + $0x1c] sm:$0xf]
  %v2370 = vunpack.c.l.b16 %v2354
  %v2371 = vunpack.c.l.b16 %v2355
  %v2372 = vunpack.c.l.b16 %v2356
  %v2373 = vunpack.c.l.b16 %v2357
  %v2374 = vunpack.c.l.b16 %v2358
  %v2375 = vunpack.c.l.b16 %v2359
  %v2376 = vunpack.c.l.b16 %v2360
  %v2377 = vunpack.c.l.b16 %v2361
  %v2378 = vpack.c.b16 %v2371, %v2370
  %v2379 = vpack.c.b16 %v2373, %v2372
  %v2380 = vpack.c.b16 %v2375, %v2374
  %v2381 = vpack.c.b16 %v2377, %v2376
  %v2387 = vsel %vm1227, %v2352, 0
  %2389 = vmatprep.subr.bf16.mxu0 0
  %2390 = vmatpush1.bf16.msra.mxu0 %v2378
  %2391 = vmatprep.subr.bf16.mxu0 0
  %2392 = vmatpush1.bf16.msra.mxu0 %v2379
  %2393 = vmatprep.subr.bf16.mxu0 0
  %2394 = vmatpush1.bf16.msra.mxu0 %v2380
  %2395 = vmatprep.subr.bf16.mxu0 0
  %2396 = vmatpush1.bf16.msra.mxu0 %v2381
  %2397 = vmatprep.subr.bf16.mxu0 0
  %2398 = vmatpush1.bf16.msra.mxu0 0
  %2399 = vmatprep.subr.bf16.mxu0 0
  %2400 = vmatpush1.bf16.msra.mxu0 0
  %2401 = vmatprep.subr.bf16.mxu0 0
  %2402 = vmatpush1.bf16.msra.mxu0 0
  %2403 = vmatprep.subr.bf16.mxu0 0
  %2404 = vmatpush1.bf16.msra.mxu0 0
  %2405 = vmatprep.subr.bf16.mxu0 0
  %2406 = vmatpush1.bf16.msra.mxu0 0
  %2407 = vmatprep.subr.bf16.mxu0 0
  %2408 = vmatpush1.bf16.msra.mxu0 0
  %2409 = vmatprep.subr.bf16.mxu0 0
  %2410 = vmatpush1.bf16.msra.mxu0 0
  %2411 = vmatprep.subr.bf16.mxu0 0
  %2412 = vmatpush1.bf16.msra.mxu0 0
  %2413 = vmatprep.subr.bf16.mxu0 0
  %2414 = vmatpush1.bf16.msra.mxu0 0
  %2415 = vmatprep.subr.bf16.mxu0 0
  %2416 = vmatpush1.bf16.msra.mxu0 0
  %2417 = vmatprep.subr.bf16.mxu0 0
  %2418 = vmatpush1.bf16.msra.mxu0 0
  %2419 = vmatprep.subr.bf16.mxu0 0
  %2420 = vmatpush1.bf16.msra.mxu0 0
  %2421 = vmatprep.mubr.bf16.mxu0 0
  %2422 = vmatmul.mubr.bf16.gmra.mrb[0].mxu0 %v2387
  %v2423 = vpop.f32.mrb[0].mxu0
  %v2424 = vadd.f32 0.0, %v2423
  %v2425 = vpop.f32.mrb[0].mxu0
  %v2426 = vpop.f32.mrb[0].mxu0
  %v2427 = vpop.f32.mrb[0].mxu0
  %2428 = vdwg.mxu0
  %v2429 = vadd.f32 %v2351, %v2424
  %v2430 = vpack.c.bf16 %v1168, %v1168
  %s2431 = scalar_lea.vmem %s3, 512
  %v2432 = vld [vmem:[%s2431] sm:$0xf]
  %v2433 = vld [vmem:[%s2431 + $0x4] sm:$0xf]
  %v2434 = vld [vmem:[%s2431 + $0x8] sm:$0xf]
  %v2435 = vld [vmem:[%s2431 + $0xc] sm:$0xf]
  %v2436 = vld [vmem:[%s2431 + $0x10] sm:$0xf]
  %v2437 = vld [vmem:[%s2431 + $0x14] sm:$0xf]
  %v2438 = vld [vmem:[%s2431 + $0x18] sm:$0xf]
  %v2439 = vld [vmem:[%s2431 + $0x1c] sm:$0xf]
  %v2448 = vunpack.c.l.b16 %v2432
  %v2449 = vunpack.c.l.b16 %v2433
  %v2450 = vunpack.c.l.b16 %v2434
  %v2451 = vunpack.c.l.b16 %v2435
  %v2452 = vunpack.c.l.b16 %v2436
  %v2453 = vunpack.c.l.b16 %v2437
  %v2454 = vunpack.c.l.b16 %v2438
  %v2455 = vunpack.c.l.b16 %v2439
  %v2456 = vpack.c.b16 %v2449, %v2448
  %v2457 = vpack.c.b16 %v2451, %v2450
  %v2458 = vpack.c.b16 %v2453, %v2452
  %v2459 = vpack.c.b16 %v2455, %v2454
  %v2465 = vsel %vm1227, %v2430, 0
  %2467 = vmatprep.subr.bf16.mxu0 0
  %2468 = vmatpush1.bf16.msra.mxu0 %v2456
  %2469 = vmatprep.subr.bf16.mxu0 0
  %2470 = vmatpush1.bf16.msra.mxu0 %v2457
  %2471 = vmatprep.subr.bf16.mxu0 0
  %2472 = vmatpush1.bf16.msra.mxu0 %v2458
  %2473 = vmatprep.subr.bf16.mxu0 0
  %2474 = vmatpush1.bf16.msra.mxu0 %v2459
  %2475 = vmatprep.subr.bf16.mxu0 0
  %2476 = vmatpush1.bf16.msra.mxu0 0
  %2477 = vmatprep.subr.bf16.mxu0 0
  %2478 = vmatpush1.bf16.msra.mxu0 0
  %2479 = vmatprep.subr.bf16.mxu0 0
  %2480 = vmatpush1.bf16.msra.mxu0 0
  %2481 = vmatprep.subr.bf16.mxu0 0
  %2482 = vmatpush1.bf16.msra.mxu0 0
  %2483 = vmatprep.subr.bf16.mxu0 0
  %2484 = vmatpush1.bf16.msra.mxu0 0
  %2485 = vmatprep.subr.bf16.mxu0 0
  %2486 = vmatpush1.bf16.msra.mxu0 0
  %2487 = vmatprep.subr.bf16.mxu0 0
  %2488 = vmatpush1.bf16.msra.mxu0 0
  %2489 = vmatprep.subr.bf16.mxu0 0
  %2490 = vmatpush1.bf16.msra.mxu0 0
  %2491 = vmatprep.subr.bf16.mxu0 0
  %2492 = vmatpush1.bf16.msra.mxu0 0
  %2493 = vmatprep.subr.bf16.mxu0 0
  %2494 = vmatpush1.bf16.msra.mxu0 0
  %2495 = vmatprep.subr.bf16.mxu0 0
  %2496 = vmatpush1.bf16.msra.mxu0 0
  %2497 = vmatprep.subr.bf16.mxu0 0
  %2498 = vmatpush1.bf16.msra.mxu0 0
  %2499 = vmatprep.mubr.bf16.mxu0 0
  %2500 = vmatmul.mubr.bf16.gmra.mrb[0].mxu0 %v2465
  %v2501 = vpop.f32.mrb[0].mxu0
  %v2502 = vadd.f32 0.0, %v2501
  %v2503 = vpop.f32.mrb[0].mxu0
  %v2504 = vpop.f32.mrb[0].mxu0
  %v2505 = vpop.f32.mrb[0].mxu0
  %2506 = vdwg.mxu0
  %v2507 = vadd.f32 %v2429, %v2502
  %v2508 = vpack.c.bf16 %v1169, %v1169
  %s2509 = scalar_lea.vmem %s3, 544
  %v2510 = vld [vmem:[%s2509] sm:$0xf]
  %v2511 = vld [vmem:[%s2509 + $0x4] sm:$0xf]
  %v2512 = vld [vmem:[%s2509 + $0x8] sm:$0xf]
  %v2513 = vld [vmem:[%s2509 + $0xc] sm:$0xf]
  %v2514 = vld [vmem:[%s2509 + $0x10] sm:$0xf]
  %v2515 = vld [vmem:[%s2509 + $0x14] sm:$0xf]
  %v2516 = vld [vmem:[%s2509 + $0x18] sm:$0xf]
  %v2517 = vld [vmem:[%s2509 + $0x1c] sm:$0xf]
  %v2526 = vunpack.c.l.b16 %v2510
  %v2527 = vunpack.c.l.b16 %v2511
  %v2528 = vunpack.c.l.b16 %v2512
  %v2529 = vunpack.c.l.b16 %v2513
  %v2530 = vunpack.c.l.b16 %v2514
  %v2531 = vunpack.c.l.b16 %v2515
  %v2532 = vunpack.c.l.b16 %v2516
  %v2533 = vunpack.c.l.b16 %v2517
  %v2534 = vpack.c.b16 %v2527, %v2526
  %v2535 = vpack.c.b16 %v2529, %v2528
  %v2536 = vpack.c.b16 %v2531, %v2530
  %v2537 = vpack.c.b16 %v2533, %v2532
  %v2543 = vsel %vm1227, %v2508, 0
  %2545 = vmatprep.subr.bf16.mxu0 0
  %2546 = vmatpush1.bf16.msra.mxu0 %v2534
  %2547 = vmatprep.subr.bf16.mxu0 0
  %2548 = vmatpush1.bf16.msra.mxu0 %v2535
  %2549 = vmatprep.subr.bf16.mxu0 0
  %2550 = vmatpush1.bf16.msra.mxu0 %v2536
  %2551 = vmatprep.subr.bf16.mxu0 0
  %2552 = vmatpush1.bf16.msra.mxu0 %v2537
  %2553 = vmatprep.subr.bf16.mxu0 0
  %2554 = vmatpush1.bf16.msra.mxu0 0
  %2555 = vmatprep.subr.bf16.mxu0 0
  %2556 = vmatpush1.bf16.msra.mxu0 0
  %2557 = vmatprep.subr.bf16.mxu0 0
  %2558 = vmatpush1.bf16.msra.mxu0 0
  %2559 = vmatprep.subr.bf16.mxu0 0
  %2560 = vmatpush1.bf16.msra.mxu0 0
  %2561 = vmatprep.subr.bf16.mxu0 0
  %2562 = vmatpush1.bf16.msra.mxu0 0
  %2563 = vmatprep.subr.bf16.mxu0 0
  %2564 = vmatpush1.bf16.msra.mxu0 0
  %2565 = vmatprep.subr.bf16.mxu0 0
  %2566 = vmatpush1.bf16.msra.mxu0 0
  %2567 = vmatprep.subr.bf16.mxu0 0
  %2568 = vmatpush1.bf16.msra.mxu0 0
  %2569 = vmatprep.subr.bf16.mxu0 0
  %2570 = vmatpush1.bf16.msra.mxu0 0
  %2571 = vmatprep.subr.bf16.mxu0 0
  %2572 = vmatpush1.bf16.msra.mxu0 0
  %2573 = vmatprep.subr.bf16.mxu0 0
  %2574 = vmatpush1.bf16.msra.mxu0 0
  %2575 = vmatprep.subr.bf16.mxu0 0
  %2576 = vmatpush1.bf16.msra.mxu0 0
  %2577 = vmatprep.mubr.bf16.mxu0 0
  %2578 = vmatmul.mubr.bf16.gmra.mrb[0].mxu0 %v2543
  %v2579 = vpop.f32.mrb[0].mxu0
  %v2580 = vadd.f32 0.0, %v2579
  %v2581 = vpop.f32.mrb[0].mxu0
  %v2582 = vpop.f32.mrb[0].mxu0
  %v2583 = vpop.f32.mrb[0].mxu0
  %2584 = vdwg.mxu0
  %v2585 = vadd.f32 %v2507, %v2580
  %v2586 = vpack.c.bf16 %v1170, %v1170
  %s2587 = scalar_lea.vmem %s3, 576
  %v2588 = vld [vmem:[%s2587] sm:$0xf]
  %v2589 = vld [vmem:[%s2587 + $0x4] sm:$0xf]
  %v2590 = vld [vmem:[%s2587 + $0x8] sm:$0xf]
  %v2591 = vld [vmem:[%s2587 + $0xc] sm:$0xf]
  %v2592 = vld [vmem:[%s2587 + $0x10] sm:$0xf]
  %v2593 = vld [vmem:[%s2587 + $0x14] sm:$0xf]
  %v2594 = vld [vmem:[%s2587 + $0x18] sm:$0xf]
  %v2595 = vld [vmem:[%s2587 + $0x1c] sm:$0xf]
  %v2604 = vunpack.c.l.b16 %v2588
  %v2605 = vunpack.c.l.b16 %v2589
  %v2606 = vunpack.c.l.b16 %v2590
  %v2607 = vunpack.c.l.b16 %v2591
  %v2608 = vunpack.c.l.b16 %v2592
  %v2609 = vunpack.c.l.b16 %v2593
  %v2610 = vunpack.c.l.b16 %v2594
  %v2611 = vunpack.c.l.b16 %v2595
  %v2612 = vpack.c.b16 %v2605, %v2604
  %v2613 = vpack.c.b16 %v2607, %v2606
  %v2614 = vpack.c.b16 %v2609, %v2608
  %v2615 = vpack.c.b16 %v2611, %v2610
  %v2621 = vsel %vm1227, %v2586, 0
  %2623 = vmatprep.subr.bf16.mxu0 0
  %2624 = vmatpush1.bf16.msra.mxu0 %v2612
  %2625 = vmatprep.subr.bf16.mxu0 0
  %2626 = vmatpush1.bf16.msra.mxu0 %v2613
  %2627 = vmatprep.subr.bf16.mxu0 0
  %2628 = vmatpush1.bf16.msra.mxu0 %v2614
  %2629 = vmatprep.subr.bf16.mxu0 0
  %2630 = vmatpush1.bf16.msra.mxu0 %v2615
  %2631 = vmatprep.subr.bf16.mxu0 0
  %2632 = vmatpush1.bf16.msra.mxu0 0
  %2633 = vmatprep.subr.bf16.mxu0 0
  %2634 = vmatpush1.bf16.msra.mxu0 0
  %2635 = vmatprep.subr.bf16.mxu0 0
  %2636 = vmatpush1.bf16.msra.mxu0 0
  %2637 = vmatprep.subr.bf16.mxu0 0
  %2638 = vmatpush1.bf16.msra.mxu0 0
  %2639 = vmatprep.subr.bf16.mxu0 0
  %2640 = vmatpush1.bf16.msra.mxu0 0
  %2641 = vmatprep.subr.bf16.mxu0 0
  %2642 = vmatpush1.bf16.msra.mxu0 0
  %2643 = vmatprep.subr.bf16.mxu0 0
  %2644 = vmatpush1.bf16.msra.mxu0 0
  %2645 = vmatprep.subr.bf16.mxu0 0
  %2646 = vmatpush1.bf16.msra.mxu0 0
  %2647 = vmatprep.subr.bf16.mxu0 0
  %2648 = vmatpush1.bf16.msra.mxu0 0
  %2649 = vmatprep.subr.bf16.mxu0 0
  %2650 = vmatpush1.bf16.msra.mxu0 0
  %2651 = vmatprep.subr.bf16.mxu0 0
  %2652 = vmatpush1.bf16.msra.mxu0 0
  %2653 = vmatprep.subr.bf16.mxu0 0
  %2654 = vmatpush1.bf16.msra.mxu0 0
  %2655 = vmatprep.mubr.bf16.mxu0 0
  %2656 = vmatmul.mubr.bf16.gmra.mrb[0].mxu0 %v2621
  %v2657 = vpop.f32.mrb[0].mxu0
  %v2658 = vadd.f32 0.0, %v2657
  %v2659 = vpop.f32.mrb[0].mxu0
  %v2660 = vpop.f32.mrb[0].mxu0
  %v2661 = vpop.f32.mrb[0].mxu0
  %2662 = vdwg.mxu0
  %v2663 = vadd.f32 %v2585, %v2658
  %v2664 = vpack.c.bf16 %v1171, %v1171
  %s2665 = scalar_lea.vmem %s3, 608
  %v2666 = vld [vmem:[%s2665] sm:$0xf]
  %v2667 = vld [vmem:[%s2665 + $0x4] sm:$0xf]
  %v2668 = vld [vmem:[%s2665 + $0x8] sm:$0xf]
  %v2669 = vld [vmem:[%s2665 + $0xc] sm:$0xf]
  %v2670 = vld [vmem:[%s2665 + $0x10] sm:$0xf]
  %v2671 = vld [vmem:[%s2665 + $0x14] sm:$0xf]
  %v2672 = vld [vmem:[%s2665 + $0x18] sm:$0xf]
  %v2673 = vld [vmem:[%s2665 + $0x1c] sm:$0xf]
  %v2682 = vunpack.c.l.b16 %v2666
  %v2683 = vunpack.c.l.b16 %v2667
  %v2684 = vunpack.c.l.b16 %v2668
  %v2685 = vunpack.c.l.b16 %v2669
  %v2686 = vunpack.c.l.b16 %v2670
  %v2687 = vunpack.c.l.b16 %v2671
  %v2688 = vunpack.c.l.b16 %v2672
  %v2689 = vunpack.c.l.b16 %v2673
  %v2690 = vpack.c.b16 %v2683, %v2682
  %v2691 = vpack.c.b16 %v2685, %v2684
  %v2692 = vpack.c.b16 %v2687, %v2686
  %v2693 = vpack.c.b16 %v2689, %v2688
  %v2699 = vsel %vm1227, %v2664, 0
  %2701 = vmatprep.subr.bf16.mxu0 0
  %2702 = vmatpush1.bf16.msra.mxu0 %v2690
  %2703 = vmatprep.subr.bf16.mxu0 0
  %2704 = vmatpush1.bf16.msra.mxu0 %v2691
  %2705 = vmatprep.subr.bf16.mxu0 0
  %2706 = vmatpush1.bf16.msra.mxu0 %v2692
  %2707 = vmatprep.subr.bf16.mxu0 0
  %2708 = vmatpush1.bf16.msra.mxu0 %v2693
  %2709 = vmatprep.subr.bf16.mxu0 0
  %2710 = vmatpush1.bf16.msra.mxu0 0
  %2711 = vmatprep.subr.bf16.mxu0 0
  %2712 = vmatpush1.bf16.msra.mxu0 0
  %2713 = vmatprep.subr.bf16.mxu0 0
  %2714 = vmatpush1.bf16.msra.mxu0 0
  %2715 = vmatprep.subr.bf16.mxu0 0
  %2716 = vmatpush1.bf16.msra.mxu0 0
  %2717 = vmatprep.subr.bf16.mxu0 0
  %2718 = vmatpush1.bf16.msra.mxu0 0
  %2719 = vmatprep.subr.bf16.mxu0 0
  %2720 = vmatpush1.bf16.msra.mxu0 0
  %2721 = vmatprep.subr.bf16.mxu0 0
  %2722 = vmatpush1.bf16.msra.mxu0 0
  %2723 = vmatprep.subr.bf16.mxu0 0
  %2724 = vmatpush1.bf16.msra.mxu0 0
  %2725 = vmatprep.subr.bf16.mxu0 0
  %2726 = vmatpush1.bf16.msra.mxu0 0
  %2727 = vmatprep.subr.bf16.mxu0 0
  %2728 = vmatpush1.bf16.msra.mxu0 0
  %2729 = vmatprep.subr.bf16.mxu0 0
  %2730 = vmatpush1.bf16.msra.mxu0 0
  %2731 = vmatprep.subr.bf16.mxu0 0
  %2732 = vmatpush1.bf16.msra.mxu0 0
  %2733 = vmatprep.mubr.bf16.mxu0 0
  %2734 = vmatmul.mubr.bf16.gmra.mrb[0].mxu0 %v2699
  %v2735 = vpop.f32.mrb[0].mxu0
  %v2736 = vadd.f32 0.0, %v2735
  %v2737 = vpop.f32.mrb[0].mxu0
  %v2738 = vpop.f32.mrb[0].mxu0
  %v2739 = vpop.f32.mrb[0].mxu0
  %2740 = vdwg.mxu0
  %v2741 = vadd.f32 %v2663, %v2736
  %v2742 = vpack.c.bf16 %v1172, %v1172
  %s2743 = scalar_lea.vmem %s3, 640
  %v2744 = vld [vmem:[%s2743] sm:$0xf]
  %v2745 = vld [vmem:[%s2743 + $0x4] sm:$0xf]
  %v2746 = vld [vmem:[%s2743 + $0x8] sm:$0xf]
  %v2747 = vld [vmem:[%s2743 + $0xc] sm:$0xf]
  %v2748 = vld [vmem:[%s2743 + $0x10] sm:$0xf]
  %v2749 = vld [vmem:[%s2743 + $0x14] sm:$0xf]
  %v2750 = vld [vmem:[%s2743 + $0x18] sm:$0xf]
  %v2751 = vld [vmem:[%s2743 + $0x1c] sm:$0xf]
  %v2760 = vunpack.c.l.b16 %v2744
  %v2761 = vunpack.c.l.b16 %v2745
  %v2762 = vunpack.c.l.b16 %v2746
  %v2763 = vunpack.c.l.b16 %v2747
  %v2764 = vunpack.c.l.b16 %v2748
  %v2765 = vunpack.c.l.b16 %v2749
  %v2766 = vunpack.c.l.b16 %v2750
  %v2767 = vunpack.c.l.b16 %v2751
  %v2768 = vpack.c.b16 %v2761, %v2760
  %v2769 = vpack.c.b16 %v2763, %v2762
  %v2770 = vpack.c.b16 %v2765, %v2764
  %v2771 = vpack.c.b16 %v2767, %v2766
  %v2777 = vsel %vm1227, %v2742, 0
  %2779 = vmatprep.subr.bf16.mxu0 0
  %2780 = vmatpush1.bf16.msra.mxu0 %v2768
  %2781 = vmatprep.subr.bf16.mxu0 0
  %2782 = vmatpush1.bf16.msra.mxu0 %v2769
  %2783 = vmatprep.subr.bf16.mxu0 0
  %2784 = vmatpush1.bf16.msra.mxu0 %v2770
  %2785 = vmatprep.subr.bf16.mxu0 0
  %2786 = vmatpush1.bf16.msra.mxu0 %v2771
  %2787 = vmatprep.subr.bf16.mxu0 0
  %2788 = vmatpush1.bf16.msra.mxu0 0
  %2789 = vmatprep.subr.bf16.mxu0 0
  %2790 = vmatpush1.bf16.msra.mxu0 0
  %2791 = vmatprep.subr.bf16.mxu0 0
  %2792 = vmatpush1.bf16.msra.mxu0 0
  %2793 = vmatprep.subr.bf16.mxu0 0
  %2794 = vmatpush1.bf16.msra.mxu0 0
  %2795 = vmatprep.subr.bf16.mxu0 0
  %2796 = vmatpush1.bf16.msra.mxu0 0
  %2797 = vmatprep.subr.bf16.mxu0 0
  %2798 = vmatpush1.bf16.msra.mxu0 0
  %2799 = vmatprep.subr.bf16.mxu0 0
  %2800 = vmatpush1.bf16.msra.mxu0 0
  %2801 = vmatprep.subr.bf16.mxu0 0
  %2802 = vmatpush1.bf16.msra.mxu0 0
  %2803 = vmatprep.subr.bf16.mxu0 0
  %2804 = vmatpush1.bf16.msra.mxu0 0
  %2805 = vmatprep.subr.bf16.mxu0 0
  %2806 = vmatpush1.bf16.msra.mxu0 0
  %2807 = vmatprep.subr.bf16.mxu0 0
  %2808 = vmatpush1.bf16.msra.mxu0 0
  %2809 = vmatprep.subr.bf16.mxu0 0
  %2810 = vmatpush1.bf16.msra.mxu0 0
  %2811 = vmatprep.mubr.bf16.mxu0 0
  %2812 = vmatmul.mubr.bf16.gmra.mrb[0].mxu0 %v2777
  %v2813 = vpop.f32.mrb[0].mxu0
  %v2814 = vadd.f32 0.0, %v2813
  %v2815 = vpop.f32.mrb[0].mxu0
  %v2816 = vpop.f32.mrb[0].mxu0
  %v2817 = vpop.f32.mrb[0].mxu0
  %2818 = vdwg.mxu0
  %v2819 = vadd.f32 %v2741, %v2814
  %v2820 = vpack.c.bf16 %v1173, %v1173
  %s2821 = scalar_lea.vmem %s3, 672
  %v2822 = vld [vmem:[%s2821] sm:$0xf]
  %v2823 = vld [vmem:[%s2821 + $0x4] sm:$0xf]
  %v2824 = vld [vmem:[%s2821 + $0x8] sm:$0xf]
  %v2825 = vld [vmem:[%s2821 + $0xc] sm:$0xf]
  %v2826 = vld [vmem:[%s2821 + $0x10] sm:$0xf]
  %v2827 = vld [vmem:[%s2821 + $0x14] sm:$0xf]
  %v2828 = vld [vmem:[%s2821 + $0x18] sm:$0xf]
  %v2829 = vld [vmem:[%s2821 + $0x1c] sm:$0xf]
  %v2838 = vunpack.c.l.b16 %v2822
  %v2839 = vunpack.c.l.b16 %v2823
  %v2840 = vunpack.c.l.b16 %v2824
  %v2841 = vunpack.c.l.b16 %v2825
  %v2842 = vunpack.c.l.b16 %v2826
  %v2843 = vunpack.c.l.b16 %v2827
  %v2844 = vunpack.c.l.b16 %v2828
  %v2845 = vunpack.c.l.b16 %v2829
  %v2846 = vpack.c.b16 %v2839, %v2838
  %v2847 = vpack.c.b16 %v2841, %v2840
  %v2848 = vpack.c.b16 %v2843, %v2842
  %v2849 = vpack.c.b16 %v2845, %v2844
  %v2855 = vsel %vm1227, %v2820, 0
  %2857 = vmatprep.subr.bf16.mxu0 0
  %2858 = vmatpush1.bf16.msra.mxu0 %v2846
  %2859 = vmatprep.subr.bf16.mxu0 0
  %2860 = vmatpush1.bf16.msra.mxu0 %v2847
  %2861 = vmatprep.subr.bf16.mxu0 0
  %2862 = vmatpush1.bf16.msra.mxu0 %v2848
  %2863 = vmatprep.subr.bf16.mxu0 0
  %2864 = vmatpush1.bf16.msra.mxu0 %v2849
  %2865 = vmatprep.subr.bf16.mxu0 0
  %2866 = vmatpush1.bf16.msra.mxu0 0
  %2867 = vmatprep.subr.bf16.mxu0 0
  %2868 = vmatpush1.bf16.msra.mxu0 0
  %2869 = vmatprep.subr.bf16.mxu0 0
  %2870 = vmatpush1.bf16.msra.mxu0 0
  %2871 = vmatprep.subr.bf16.mxu0 0
  %2872 = vmatpush1.bf16.msra.mxu0 0
  %2873 = vmatprep.subr.bf16.mxu0 0
  %2874 = vmatpush1.bf16.msra.mxu0 0
  %2875 = vmatprep.subr.bf16.mxu0 0
  %2876 = vmatpush1.bf16.msra.mxu0 0
  %2877 = vmatprep.subr.bf16.mxu0 0
  %2878 = vmatpush1.bf16.msra.mxu0 0
  %2879 = vmatprep.subr.bf16.mxu0 0
  %2880 = vmatpush1.bf16.msra.mxu0 0
  %2881 = vmatprep.subr.bf16.mxu0 0
  %2882 = vmatpush1.bf16.msra.mxu0 0
  %2883 = vmatprep.subr.bf16.mxu0 0
  %2884 = vmatpush1.bf16.msra.mxu0 0
  %2885 = vmatprep.subr.bf16.mxu0 0
  %2886 = vmatpush1.bf16.msra.mxu0 0
  %2887 = vmatprep.subr.bf16.mxu0 0
  %2888 = vmatpush1.bf16.msra.mxu0 0
  %2889 = vmatprep.mubr.bf16.mxu0 0
  %2890 = vmatmul.mubr.bf16.gmra.mrb[0].mxu0 %v2855
  %v2891 = vpop.f32.mrb[0].mxu0
  %v2892 = vadd.f32 0.0, %v2891
  %v2893 = vpop.f32.mrb[0].mxu0
  %v2894 = vpop.f32.mrb[0].mxu0
  %v2895 = vpop.f32.mrb[0].mxu0
  %2896 = vdwg.mxu0
  %v2897 = vadd.f32 %v2819, %v2892
  %v2898 = vpack.c.bf16 %v1174, %v1174
  %s2899 = scalar_lea.vmem %s3, 704
  %v2900 = vld [vmem:[%s2899] sm:$0xf]
  %v2901 = vld [vmem:[%s2899 + $0x4] sm:$0xf]
  %v2902 = vld [vmem:[%s2899 + $0x8] sm:$0xf]
  %v2903 = vld [vmem:[%s2899 + $0xc] sm:$0xf]
  %v2904 = vld [vmem:[%s2899 + $0x10] sm:$0xf]
  %v2905 = vld [vmem:[%s2899 + $0x14] sm:$0xf]
  %v2906 = vld [vmem:[%s2899 + $0x18] sm:$0xf]
  %v2907 = vld [vmem:[%s2899 + $0x1c] sm:$0xf]
  %v2916 = vunpack.c.l.b16 %v2900
  %v2917 = vunpack.c.l.b16 %v2901
  %v2918 = vunpack.c.l.b16 %v2902
  %v2919 = vunpack.c.l.b16 %v2903
  %v2920 = vunpack.c.l.b16 %v2904
  %v2921 = vunpack.c.l.b16 %v2905
  %v2922 = vunpack.c.l.b16 %v2906
  %v2923 = vunpack.c.l.b16 %v2907
  %v2924 = vpack.c.b16 %v2917, %v2916
  %v2925 = vpack.c.b16 %v2919, %v2918
  %v2926 = vpack.c.b16 %v2921, %v2920
  %v2927 = vpack.c.b16 %v2923, %v2922
  %v2933 = vsel %vm1227, %v2898, 0
  %2935 = vmatprep.subr.bf16.mxu0 0
  %2936 = vmatpush1.bf16.msra.mxu0 %v2924
  %2937 = vmatprep.subr.bf16.mxu0 0
  %2938 = vmatpush1.bf16.msra.mxu0 %v2925
  %2939 = vmatprep.subr.bf16.mxu0 0
  %2940 = vmatpush1.bf16.msra.mxu0 %v2926
  %2941 = vmatprep.subr.bf16.mxu0 0
  %2942 = vmatpush1.bf16.msra.mxu0 %v2927
  %2943 = vmatprep.subr.bf16.mxu0 0
  %2944 = vmatpush1.bf16.msra.mxu0 0
  %2945 = vmatprep.subr.bf16.mxu0 0
  %2946 = vmatpush1.bf16.msra.mxu0 0
  %2947 = vmatprep.subr.bf16.mxu0 0
  %2948 = vmatpush1.bf16.msra.mxu0 0
  %2949 = vmatprep.subr.bf16.mxu0 0
  %2950 = vmatpush1.bf16.msra.mxu0 0
  %2951 = vmatprep.subr.bf16.mxu0 0
  %2952 = vmatpush1.bf16.msra.mxu0 0
  %2953 = vmatprep.subr.bf16.mxu0 0
  %2954 = vmatpush1.bf16.msra.mxu0 0
  %2955 = vmatprep.subr.bf16.mxu0 0
  %2956 = vmatpush1.bf16.msra.mxu0 0
  %2957 = vmatprep.subr.bf16.mxu0 0
  %2958 = vmatpush1.bf16.msra.mxu0 0
  %2959 = vmatprep.subr.bf16.mxu0 0
  %2960 = vmatpush1.bf16.msra.mxu0 0
  %2961 = vmatprep.subr.bf16.mxu0 0
  %2962 = vmatpush1.bf16.msra.mxu0 0
  %2963 = vmatprep.subr.bf16.mxu0 0
  %2964 = vmatpush1.bf16.msra.mxu0 0
  %2965 = vmatprep.subr.bf16.mxu0 0
  %2966 = vmatpush1.bf16.msra.mxu0 0
  %2967 = vmatprep.mubr.bf16.mxu0 0
  %2968 = vmatmul.mubr.bf16.gmra.mrb[0].mxu0 %v2933
  %v2969 = vpop.f32.mrb[0].mxu0
  %v2970 = vadd.f32 0.0, %v2969
  %v2971 = vpop.f32.mrb[0].mxu0
  %v2972 = vpop.f32.mrb[0].mxu0
  %v2973 = vpop.f32.mrb[0].mxu0
  %2974 = vdwg.mxu0
  %v2975 = vadd.f32 %v2897, %v2970
  %v2976 = vpack.c.bf16 %v1175, %v1175
  %s2977 = scalar_lea.vmem %s3, 736
  %v2978 = vld [vmem:[%s2977] sm:$0xf]
  %v2979 = vld [vmem:[%s2977 + $0x4] sm:$0xf]
  %v2980 = vld [vmem:[%s2977 + $0x8] sm:$0xf]
  %v2981 = vld [vmem:[%s2977 + $0xc] sm:$0xf]
  %v2982 = vld [vmem:[%s2977 + $0x10] sm:$0xf]
  %v2983 = vld [vmem:[%s2977 + $0x14] sm:$0xf]
  %v2984 = vld [vmem:[%s2977 + $0x18] sm:$0xf]
  %v2985 = vld [vmem:[%s2977 + $0x1c] sm:$0xf]
  %v2994 = vunpack.c.l.b16 %v2978
  %v2995 = vunpack.c.l.b16 %v2979
  %v2996 = vunpack.c.l.b16 %v2980
  %v2997 = vunpack.c.l.b16 %v2981
  %v2998 = vunpack.c.l.b16 %v2982
  %v2999 = vunpack.c.l.b16 %v2983
  %v3000 = vunpack.c.l.b16 %v2984
  %v3001 = vunpack.c.l.b16 %v2985
  %v3002 = vpack.c.b16 %v2995, %v2994
  %v3003 = vpack.c.b16 %v2997, %v2996
  %v3004 = vpack.c.b16 %v2999, %v2998
  %v3005 = vpack.c.b16 %v3001, %v3000
  %v3011 = vsel %vm1227, %v2976, 0
  %3013 = vmatprep.subr.bf16.mxu0 0
  %3014 = vmatpush1.bf16.msra.mxu0 %v3002
  %3015 = vmatprep.subr.bf16.mxu0 0
  %3016 = vmatpush1.bf16.msra.mxu0 %v3003
  %3017 = vmatprep.subr.bf16.mxu0 0
  %3018 = vmatpush1.bf16.msra.mxu0 %v3004
  %3019 = vmatprep.subr.bf16.mxu0 0
  %3020 = vmatpush1.bf16.msra.mxu0 %v3005
  %3021 = vmatprep.subr.bf16.mxu0 0
  %3022 = vmatpush1.bf16.msra.mxu0 0
  %3023 = vmatprep.subr.bf16.mxu0 0
  %3024 = vmatpush1.bf16.msra.mxu0 0
  %3025 = vmatprep.subr.bf16.mxu0 0
  %3026 = vmatpush1.bf16.msra.mxu0 0
  %3027 = vmatprep.subr.bf16.mxu0 0
  %3028 = vmatpush1.bf16.msra.mxu0 0
  %3029 = vmatprep.subr.bf16.mxu0 0
  %3030 = vmatpush1.bf16.msra.mxu0 0
  %3031 = vmatprep.subr.bf16.mxu0 0
  %3032 = vmatpush1.bf16.msra.mxu0 0
  %3033 = vmatprep.subr.bf16.mxu0 0
  %3034 = vmatpush1.bf16.msra.mxu0 0
  %3035 = vmatprep.subr.bf16.mxu0 0
  %3036 = vmatpush1.bf16.msra.mxu0 0
  %3037 = vmatprep.subr.bf16.mxu0 0
  %3038 = vmatpush1.bf16.msra.mxu0 0
  %3039 = vmatprep.subr.bf16.mxu0 0
  %3040 = vmatpush1.bf16.msra.mxu0 0
  %3041 = vmatprep.subr.bf16.mxu0 0
  %3042 = vmatpush1.bf16.msra.mxu0 0
  %3043 = vmatprep.subr.bf16.mxu0 0
  %3044 = vmatpush1.bf16.msra.mxu0 0
  %3045 = vmatprep.mubr.bf16.mxu0 0
  %3046 = vmatmul.mubr.bf16.gmra.mrb[0].mxu0 %v3011
  %v3047 = vpop.f32.mrb[0].mxu0
  %v3048 = vadd.f32 0.0, %v3047
  %v3049 = vpop.f32.mrb[0].mxu0
  %v3050 = vpop.f32.mrb[0].mxu0
  %v3051 = vpop.f32.mrb[0].mxu0
  %3052 = vdwg.mxu0
  %v3053 = vadd.f32 %v2975, %v3048
  %v3054 = vpack.c.bf16 %v1176, %v1176
  %s3055 = scalar_lea.vmem %s3, 768
  %v3056 = vld [vmem:[%s3055] sm:$0xf]
  %v3057 = vld [vmem:[%s3055 + $0x4] sm:$0xf]
  %v3058 = vld [vmem:[%s3055 + $0x8] sm:$0xf]
  %v3059 = vld [vmem:[%s3055 + $0xc] sm:$0xf]
  %v3060 = vld [vmem:[%s3055 + $0x10] sm:$0xf]
  %v3061 = vld [vmem:[%s3055 + $0x14] sm:$0xf]
  %v3062 = vld [vmem:[%s3055 + $0x18] sm:$0xf]
  %v3063 = vld [vmem:[%s3055 + $0x1c] sm:$0xf]
  %v3072 = vunpack.c.l.b16 %v3056
  %v3073 = vunpack.c.l.b16 %v3057
  %v3074 = vunpack.c.l.b16 %v3058
  %v3075 = vunpack.c.l.b16 %v3059
  %v3076 = vunpack.c.l.b16 %v3060
  %v3077 = vunpack.c.l.b16 %v3061
  %v3078 = vunpack.c.l.b16 %v3062
  %v3079 = vunpack.c.l.b16 %v3063
  %v3080 = vpack.c.b16 %v3073, %v3072
  %v3081 = vpack.c.b16 %v3075, %v3074
  %v3082 = vpack.c.b16 %v3077, %v3076
  %v3083 = vpack.c.b16 %v3079, %v3078
  %v3089 = vsel %vm1227, %v3054, 0
  %3091 = vmatprep.subr.bf16.mxu0 0
  %3092 = vmatpush1.bf16.msra.mxu0 %v3080
  %3093 = vmatprep.subr.bf16.mxu0 0
  %3094 = vmatpush1.bf16.msra.mxu0 %v3081
  %3095 = vmatprep.subr.bf16.mxu0 0
  %3096 = vmatpush1.bf16.msra.mxu0 %v3082
  %3097 = vmatprep.subr.bf16.mxu0 0
  %3098 = vmatpush1.bf16.msra.mxu0 %v3083
  %3099 = vmatprep.subr.bf16.mxu0 0
  %3100 = vmatpush1.bf16.msra.mxu0 0
  %3101 = vmatprep.subr.bf16.mxu0 0
  %3102 = vmatpush1.bf16.msra.mxu0 0
  %3103 = vmatprep.subr.bf16.mxu0 0
  %3104 = vmatpush1.bf16.msra.mxu0 0
  %3105 = vmatprep.subr.bf16.mxu0 0
  %3106 = vmatpush1.bf16.msra.mxu0 0
  %3107 = vmatprep.subr.bf16.mxu0 0
  %3108 = vmatpush1.bf16.msra.mxu0 0
  %3109 = vmatprep.subr.bf16.mxu0 0
  %3110 = vmatpush1.bf16.msra.mxu0 0
  %3111 = vmatprep.subr.bf16.mxu0 0
  %3112 = vmatpush1.bf16.msra.mxu0 0
  %3113 = vmatprep.subr.bf16.mxu0 0
  %3114 = vmatpush1.bf16.msra.mxu0 0
  %3115 = vmatprep.subr.bf16.mxu0 0
  %3116 = vmatpush1.bf16.msra.mxu0 0
  %3117 = vmatprep.subr.bf16.mxu0 0
  %3118 = vmatpush1.bf16.msra.mxu0 0
  %3119 = vmatprep.subr.bf16.mxu0 0
  %3120 = vmatpush1.bf16.msra.mxu0 0
  %3121 = vmatprep.subr.bf16.mxu0 0
  %3122 = vmatpush1.bf16.msra.mxu0 0
  %3123 = vmatprep.mubr.bf16.mxu0 0
  %3124 = vmatmul.mubr.bf16.gmra.mrb[0].mxu0 %v3089
  %v3125 = vpop.f32.mrb[0].mxu0
  %v3126 = vadd.f32 0.0, %v3125
  %v3127 = vpop.f32.mrb[0].mxu0
  %v3128 = vpop.f32.mrb[0].mxu0
  %v3129 = vpop.f32.mrb[0].mxu0
  %3130 = vdwg.mxu0
  %v3131 = vadd.f32 %v3053, %v3126
  %v3132 = vpack.c.bf16 %v1177, %v1177
  %s3133 = scalar_lea.vmem %s3, 800
  %v3134 = vld [vmem:[%s3133] sm:$0xf]
  %v3135 = vld [vmem:[%s3133 + $0x4] sm:$0xf]
  %v3136 = vld [vmem:[%s3133 + $0x8] sm:$0xf]
  %v3137 = vld [vmem:[%s3133 + $0xc] sm:$0xf]
  %v3138 = vld [vmem:[%s3133 + $0x10] sm:$0xf]
  %v3139 = vld [vmem:[%s3133 + $0x14] sm:$0xf]
  %v3140 = vld [vmem:[%s3133 + $0x18] sm:$0xf]
  %v3141 = vld [vmem:[%s3133 + $0x1c] sm:$0xf]
  %v3150 = vunpack.c.l.b16 %v3134
  %v3151 = vunpack.c.l.b16 %v3135
  %v3152 = vunpack.c.l.b16 %v3136
  %v3153 = vunpack.c.l.b16 %v3137
  %v3154 = vunpack.c.l.b16 %v3138
  %v3155 = vunpack.c.l.b16 %v3139
  %v3156 = vunpack.c.l.b16 %v3140
  %v3157 = vunpack.c.l.b16 %v3141
  %v3158 = vpack.c.b16 %v3151, %v3150
  %v3159 = vpack.c.b16 %v3153, %v3152
  %v3160 = vpack.c.b16 %v3155, %v3154
  %v3161 = vpack.c.b16 %v3157, %v3156
  %v3167 = vsel %vm1227, %v3132, 0
  %3169 = vmatprep.subr.bf16.mxu0 0
  %3170 = vmatpush1.bf16.msra.mxu0 %v3158
  %3171 = vmatprep.subr.bf16.mxu0 0
  %3172 = vmatpush1.bf16.msra.mxu0 %v3159
  %3173 = vmatprep.subr.bf16.mxu0 0
  %3174 = vmatpush1.bf16.msra.mxu0 %v3160
  %3175 = vmatprep.subr.bf16.mxu0 0
  %3176 = vmatpush1.bf16.msra.mxu0 %v3161
  %3177 = vmatprep.subr.bf16.mxu0 0
  %3178 = vmatpush1.bf16.msra.mxu0 0
  %3179 = vmatprep.subr.bf16.mxu0 0
  %3180 = vmatpush1.bf16.msra.mxu0 0
  %3181 = vmatprep.subr.bf16.mxu0 0
  %3182 = vmatpush1.bf16.msra.mxu0 0
  %3183 = vmatprep.subr.bf16.mxu0 0
  %3184 = vmatpush1.bf16.msra.mxu0 0
  %3185 = vmatprep.subr.bf16.mxu0 0
  %3186 = vmatpush1.bf16.msra.mxu0 0
  %3187 = vmatprep.subr.bf16.mxu0 0
  %3188 = vmatpush1.bf16.msra.mxu0 0
  %3189 = vmatprep.subr.bf16.mxu0 0
  %3190 = vmatpush1.bf16.msra.mxu0 0
  %3191 = vmatprep.subr.bf16.mxu0 0
  %3192 = vmatpush1.bf16.msra.mxu0 0
  %3193 = vmatprep.subr.bf16.mxu0 0
  %3194 = vmatpush1.bf16.msra.mxu0 0
  %3195 = vmatprep.subr.bf16.mxu0 0
  %3196 = vmatpush1.bf16.msra.mxu0 0
  %3197 = vmatprep.subr.bf16.mxu0 0
  %3198 = vmatpush1.bf16.msra.mxu0 0
  %3199 = vmatprep.subr.bf16.mxu0 0
  %3200 = vmatpush1.bf16.msra.mxu0 0
  %3201 = vmatprep.mubr.bf16.mxu0 0
  %3202 = vmatmul.mubr.bf16.gmra.mrb[0].mxu0 %v3167
  %v3203 = vpop.f32.mrb[0].mxu0
  %v3204 = vadd.f32 0.0, %v3203
  %v3205 = vpop.f32.mrb[0].mxu0
  %v3206 = vpop.f32.mrb[0].mxu0
  %v3207 = vpop.f32.mrb[0].mxu0
  %3208 = vdwg.mxu0
  %v3209 = vadd.f32 %v3131, %v3204
  %v3210 = vpack.c.bf16 %v1178, %v1178
  %s3211 = scalar_lea.vmem %s3, 832
  %v3212 = vld [vmem:[%s3211] sm:$0xf]
  %v3213 = vld [vmem:[%s3211 + $0x4] sm:$0xf]
  %v3214 = vld [vmem:[%s3211 + $0x8] sm:$0xf]
  %v3215 = vld [vmem:[%s3211 + $0xc] sm:$0xf]
  %v3216 = vld [vmem:[%s3211 + $0x10] sm:$0xf]
  %v3217 = vld [vmem:[%s3211 + $0x14] sm:$0xf]
  %v3218 = vld [vmem:[%s3211 + $0x18] sm:$0xf]
  %v3219 = vld [vmem:[%s3211 + $0x1c] sm:$0xf]
  %v3228 = vunpack.c.l.b16 %v3212
  %v3229 = vunpack.c.l.b16 %v3213
  %v3230 = vunpack.c.l.b16 %v3214
  %v3231 = vunpack.c.l.b16 %v3215
  %v3232 = vunpack.c.l.b16 %v3216
  %v3233 = vunpack.c.l.b16 %v3217
  %v3234 = vunpack.c.l.b16 %v3218
  %v3235 = vunpack.c.l.b16 %v3219
  %v3236 = vpack.c.b16 %v3229, %v3228
  %v3237 = vpack.c.b16 %v3231, %v3230
  %v3238 = vpack.c.b16 %v3233, %v3232
  %v3239 = vpack.c.b16 %v3235, %v3234
  %v3245 = vsel %vm1227, %v3210, 0
  %3247 = vmatprep.subr.bf16.mxu0 0
  %3248 = vmatpush1.bf16.msra.mxu0 %v3236
  %3249 = vmatprep.subr.bf16.mxu0 0
  %3250 = vmatpush1.bf16.msra.mxu0 %v3237
  %3251 = vmatprep.subr.bf16.mxu0 0
  %3252 = vmatpush1.bf16.msra.mxu0 %v3238
  %3253 = vmatprep.subr.bf16.mxu0 0
  %3254 = vmatpush1.bf16.msra.mxu0 %v3239
  %3255 = vmatprep.subr.bf16.mxu0 0
  %3256 = vmatpush1.bf16.msra.mxu0 0
  %3257 = vmatprep.subr.bf16.mxu0 0
  %3258 = vmatpush1.bf16.msra.mxu0 0
  %3259 = vmatprep.subr.bf16.mxu0 0
  %3260 = vmatpush1.bf16.msra.mxu0 0
  %3261 = vmatprep.subr.bf16.mxu0 0
  %3262 = vmatpush1.bf16.msra.mxu0 0
  %3263 = vmatprep.subr.bf16.mxu0 0
  %3264 = vmatpush1.bf16.msra.mxu0 0
  %3265 = vmatprep.subr.bf16.mxu0 0
  %3266 = vmatpush1.bf16.msra.mxu0 0
  %3267 = vmatprep.subr.bf16.mxu0 0
  %3268 = vmatpush1.bf16.msra.mxu0 0
  %3269 = vmatprep.subr.bf16.mxu0 0
  %3270 = vmatpush1.bf16.msra.mxu0 0
  %3271 = vmatprep.subr.bf16.mxu0 0
  %3272 = vmatpush1.bf16.msra.mxu0 0
  %3273 = vmatprep.subr.bf16.mxu0 0
  %3274 = vmatpush1.bf16.msra.mxu0 0
  %3275 = vmatprep.subr.bf16.mxu0 0
  %3276 = vmatpush1.bf16.msra.mxu0 0
  %3277 = vmatprep.subr.bf16.mxu0 0
  %3278 = vmatpush1.bf16.msra.mxu0 0
  %3279 = vmatprep.mubr.bf16.mxu0 0
  %3280 = vmatmul.mubr.bf16.gmra.mrb[0].mxu0 %v3245
  %v3281 = vpop.f32.mrb[0].mxu0
  %v3282 = vadd.f32 0.0, %v3281
  %v3283 = vpop.f32.mrb[0].mxu0
  %v3284 = vpop.f32.mrb[0].mxu0
  %v3285 = vpop.f32.mrb[0].mxu0
  %3286 = vdwg.mxu0
  %v3287 = vadd.f32 %v3209, %v3282
  %v3288 = vpack.c.bf16 %v1179, %v1179
  %s3289 = scalar_lea.vmem %s3, 864
  %v3290 = vld [vmem:[%s3289] sm:$0xf]
  %v3291 = vld [vmem:[%s3289 + $0x4] sm:$0xf]
  %v3292 = vld [vmem:[%s3289 + $0x8] sm:$0xf]
  %v3293 = vld [vmem:[%s3289 + $0xc] sm:$0xf]
  %v3294 = vld [vmem:[%s3289 + $0x10] sm:$0xf]
  %v3295 = vld [vmem:[%s3289 + $0x14] sm:$0xf]
  %v3296 = vld [vmem:[%s3289 + $0x18] sm:$0xf]
  %v3297 = vld [vmem:[%s3289 + $0x1c] sm:$0xf]
  %v3306 = vunpack.c.l.b16 %v3290
  %v3307 = vunpack.c.l.b16 %v3291
  %v3308 = vunpack.c.l.b16 %v3292
  %v3309 = vunpack.c.l.b16 %v3293
  %v3310 = vunpack.c.l.b16 %v3294
  %v3311 = vunpack.c.l.b16 %v3295
  %v3312 = vunpack.c.l.b16 %v3296
  %v3313 = vunpack.c.l.b16 %v3297
  %v3314 = vpack.c.b16 %v3307, %v3306
  %v3315 = vpack.c.b16 %v3309, %v3308
  %v3316 = vpack.c.b16 %v3311, %v3310
  %v3317 = vpack.c.b16 %v3313, %v3312
  %v3323 = vsel %vm1227, %v3288, 0
  %3325 = vmatprep.subr.bf16.mxu0 0
  %3326 = vmatpush1.bf16.msra.mxu0 %v3314
  %3327 = vmatprep.subr.bf16.mxu0 0
  %3328 = vmatpush1.bf16.msra.mxu0 %v3315
  %3329 = vmatprep.subr.bf16.mxu0 0
  %3330 = vmatpush1.bf16.msra.mxu0 %v3316
  %3331 = vmatprep.subr.bf16.mxu0 0
  %3332 = vmatpush1.bf16.msra.mxu0 %v3317
  %3333 = vmatprep.subr.bf16.mxu0 0
  %3334 = vmatpush1.bf16.msra.mxu0 0
  %3335 = vmatprep.subr.bf16.mxu0 0
  %3336 = vmatpush1.bf16.msra.mxu0 0
  %3337 = vmatprep.subr.bf16.mxu0 0
  %3338 = vmatpush1.bf16.msra.mxu0 0
  %3339 = vmatprep.subr.bf16.mxu0 0
  %3340 = vmatpush1.bf16.msra.mxu0 0
  %3341 = vmatprep.subr.bf16.mxu0 0
  %3342 = vmatpush1.bf16.msra.mxu0 0
  %3343 = vmatprep.subr.bf16.mxu0 0
  %3344 = vmatpush1.bf16.msra.mxu0 0
  %3345 = vmatprep.subr.bf16.mxu0 0
  %3346 = vmatpush1.bf16.msra.mxu0 0
  %3347 = vmatprep.subr.bf16.mxu0 0
  %3348 = vmatpush1.bf16.msra.mxu0 0
  %3349 = vmatprep.subr.bf16.mxu0 0
  %3350 = vmatpush1.bf16.msra.mxu0 0
  %3351 = vmatprep.subr.bf16.mxu0 0
  %3352 = vmatpush1.bf16.msra.mxu0 0
  %3353 = vmatprep.subr.bf16.mxu0 0
  %3354 = vmatpush1.bf16.msra.mxu0 0
  %3355 = vmatprep.subr.bf16.mxu0 0
  %3356 = vmatpush1.bf16.msra.mxu0 0
  %3357 = vmatprep.mubr.bf16.mxu0 0
  %3358 = vmatmul.mubr.bf16.gmra.mrb[0].mxu0 %v3323
  %v3359 = vpop.f32.mrb[0].mxu0
  %v3360 = vadd.f32 0.0, %v3359
  %v3361 = vpop.f32.mrb[0].mxu0
  %v3362 = vpop.f32.mrb[0].mxu0
  %v3363 = vpop.f32.mrb[0].mxu0
  %3364 = vdwg.mxu0
  %v3365 = vadd.f32 %v3287, %v3360
  %v3366 = vpack.c.bf16 %v1180, %v1180
  %s3367 = scalar_lea.vmem %s3, 896
  %v3368 = vld [vmem:[%s3367] sm:$0xf]
  %v3369 = vld [vmem:[%s3367 + $0x4] sm:$0xf]
  %v3370 = vld [vmem:[%s3367 + $0x8] sm:$0xf]
  %v3371 = vld [vmem:[%s3367 + $0xc] sm:$0xf]
  %v3372 = vld [vmem:[%s3367 + $0x10] sm:$0xf]
  %v3373 = vld [vmem:[%s3367 + $0x14] sm:$0xf]
  %v3374 = vld [vmem:[%s3367 + $0x18] sm:$0xf]
  %v3375 = vld [vmem:[%s3367 + $0x1c] sm:$0xf]
  %v3384 = vunpack.c.l.b16 %v3368
  %v3385 = vunpack.c.l.b16 %v3369
  %v3386 = vunpack.c.l.b16 %v3370
  %v3387 = vunpack.c.l.b16 %v3371
  %v3388 = vunpack.c.l.b16 %v3372
  %v3389 = vunpack.c.l.b16 %v3373
  %v3390 = vunpack.c.l.b16 %v3374
  %v3391 = vunpack.c.l.b16 %v3375
  %v3392 = vpack.c.b16 %v3385, %v3384
  %v3393 = vpack.c.b16 %v3387, %v3386
  %v3394 = vpack.c.b16 %v3389, %v3388
  %v3395 = vpack.c.b16 %v3391, %v3390
  %v3401 = vsel %vm1227, %v3366, 0
  %3403 = vmatprep.subr.bf16.mxu0 0
  %3404 = vmatpush1.bf16.msra.mxu0 %v3392
  %3405 = vmatprep.subr.bf16.mxu0 0
  %3406 = vmatpush1.bf16.msra.mxu0 %v3393
  %3407 = vmatprep.subr.bf16.mxu0 0
  %3408 = vmatpush1.bf16.msra.mxu0 %v3394
  %3409 = vmatprep.subr.bf16.mxu0 0
  %3410 = vmatpush1.bf16.msra.mxu0 %v3395
  %3411 = vmatprep.subr.bf16.mxu0 0
  %3412 = vmatpush1.bf16.msra.mxu0 0
  %3413 = vmatprep.subr.bf16.mxu0 0
  %3414 = vmatpush1.bf16.msra.mxu0 0
  %3415 = vmatprep.subr.bf16.mxu0 0
  %3416 = vmatpush1.bf16.msra.mxu0 0
  %3417 = vmatprep.subr.bf16.mxu0 0
  %3418 = vmatpush1.bf16.msra.mxu0 0
  %3419 = vmatprep.subr.bf16.mxu0 0
  %3420 = vmatpush1.bf16.msra.mxu0 0
  %3421 = vmatprep.subr.bf16.mxu0 0
  %3422 = vmatpush1.bf16.msra.mxu0 0
  %3423 = vmatprep.subr.bf16.mxu0 0
  %3424 = vmatpush1.bf16.msra.mxu0 0
  %3425 = vmatprep.subr.bf16.mxu0 0
  %3426 = vmatpush1.bf16.msra.mxu0 0
  %3427 = vmatprep.subr.bf16.mxu0 0
  %3428 = vmatpush1.bf16.msra.mxu0 0
  %3429 = vmatprep.subr.bf16.mxu0 0
  %3430 = vmatpush1.bf16.msra.mxu0 0
  %3431 = vmatprep.subr.bf16.mxu0 0
  %3432 = vmatpush1.bf16.msra.mxu0 0
  %3433 = vmatprep.subr.bf16.mxu0 0
  %3434 = vmatpush1.bf16.msra.mxu0 0
  %3435 = vmatprep.mubr.bf16.mxu0 0
  %3436 = vmatmul.mubr.bf16.gmra.mrb[0].mxu0 %v3401
  %v3437 = vpop.f32.mrb[0].mxu0
  %v3438 = vadd.f32 0.0, %v3437
  %v3439 = vpop.f32.mrb[0].mxu0
  %v3440 = vpop.f32.mrb[0].mxu0
  %v3441 = vpop.f32.mrb[0].mxu0
  %3442 = vdwg.mxu0
  %v3443 = vadd.f32 %v3365, %v3438
  %v3444 = vpack.c.bf16 %v1181, %v1181
  %s3445 = scalar_lea.vmem %s3, 928
  %v3446 = vld [vmem:[%s3445] sm:$0xf]
  %v3447 = vld [vmem:[%s3445 + $0x4] sm:$0xf]
  %v3448 = vld [vmem:[%s3445 + $0x8] sm:$0xf]
  %v3449 = vld [vmem:[%s3445 + $0xc] sm:$0xf]
  %v3450 = vld [vmem:[%s3445 + $0x10] sm:$0xf]
  %v3451 = vld [vmem:[%s3445 + $0x14] sm:$0xf]
  %v3452 = vld [vmem:[%s3445 + $0x18] sm:$0xf]
  %v3453 = vld [vmem:[%s3445 + $0x1c] sm:$0xf]
  %v3462 = vunpack.c.l.b16 %v3446
  %v3463 = vunpack.c.l.b16 %v3447
  %v3464 = vunpack.c.l.b16 %v3448
  %v3465 = vunpack.c.l.b16 %v3449
  %v3466 = vunpack.c.l.b16 %v3450
  %v3467 = vunpack.c.l.b16 %v3451
  %v3468 = vunpack.c.l.b16 %v3452
  %v3469 = vunpack.c.l.b16 %v3453
  %v3470 = vpack.c.b16 %v3463, %v3462
  %v3471 = vpack.c.b16 %v3465, %v3464
  %v3472 = vpack.c.b16 %v3467, %v3466
  %v3473 = vpack.c.b16 %v3469, %v3468
  %v3479 = vsel %vm1227, %v3444, 0
  %3481 = vmatprep.subr.bf16.mxu0 0
  %3482 = vmatpush1.bf16.msra.mxu0 %v3470
  %3483 = vmatprep.subr.bf16.mxu0 0
  %3484 = vmatpush1.bf16.msra.mxu0 %v3471
  %3485 = vmatprep.subr.bf16.mxu0 0
  %3486 = vmatpush1.bf16.msra.mxu0 %v3472
  %3487 = vmatprep.subr.bf16.mxu0 0
  %3488 = vmatpush1.bf16.msra.mxu0 %v3473
  %3489 = vmatprep.subr.bf16.mxu0 0
  %3490 = vmatpush1.bf16.msra.mxu0 0
  %3491 = vmatprep.subr.bf16.mxu0 0
  %3492 = vmatpush1.bf16.msra.mxu0 0
  %3493 = vmatprep.subr.bf16.mxu0 0
  %3494 = vmatpush1.bf16.msra.mxu0 0
  %3495 = vmatprep.subr.bf16.mxu0 0
  %3496 = vmatpush1.bf16.msra.mxu0 0
  %3497 = vmatprep.subr.bf16.mxu0 0
  %3498 = vmatpush1.bf16.msra.mxu0 0
  %3499 = vmatprep.subr.bf16.mxu0 0
  %3500 = vmatpush1.bf16.msra.mxu0 0
  %3501 = vmatprep.subr.bf16.mxu0 0
  %3502 = vmatpush1.bf16.msra.mxu0 0
  %3503 = vmatprep.subr.bf16.mxu0 0
  %3504 = vmatpush1.bf16.msra.mxu0 0
  %3505 = vmatprep.subr.bf16.mxu0 0
  %3506 = vmatpush1.bf16.msra.mxu0 0
  %3507 = vmatprep.subr.bf16.mxu0 0
  %3508 = vmatpush1.bf16.msra.mxu0 0
  %3509 = vmatprep.subr.bf16.mxu0 0
  %3510 = vmatpush1.bf16.msra.mxu0 0
  %3511 = vmatprep.subr.bf16.mxu0 0
  %3512 = vmatpush1.bf16.msra.mxu0 0
  %3513 = vmatprep.mubr.bf16.mxu0 0
  %3514 = vmatmul.mubr.bf16.gmra.mrb[0].mxu0 %v3479
  %v3515 = vpop.f32.mrb[0].mxu0
  %v3516 = vadd.f32 0.0, %v3515
  %v3517 = vpop.f32.mrb[0].mxu0
  %v3518 = vpop.f32.mrb[0].mxu0
  %v3519 = vpop.f32.mrb[0].mxu0
  %3520 = vdwg.mxu0
  %v3521 = vadd.f32 %v3443, %v3516
  %v3522 = vpack.c.bf16 %v1182, %v1182
  %s3523 = scalar_lea.vmem %s3, 960
  %v3524 = vld [vmem:[%s3523] sm:$0xf]
  %v3525 = vld [vmem:[%s3523 + $0x4] sm:$0xf]
  %v3526 = vld [vmem:[%s3523 + $0x8] sm:$0xf]
  %v3527 = vld [vmem:[%s3523 + $0xc] sm:$0xf]
  %v3528 = vld [vmem:[%s3523 + $0x10] sm:$0xf]
  %v3529 = vld [vmem:[%s3523 + $0x14] sm:$0xf]
  %v3530 = vld [vmem:[%s3523 + $0x18] sm:$0xf]
  %v3531 = vld [vmem:[%s3523 + $0x1c] sm:$0xf]
  %v3540 = vunpack.c.l.b16 %v3524
  %v3541 = vunpack.c.l.b16 %v3525
  %v3542 = vunpack.c.l.b16 %v3526
  %v3543 = vunpack.c.l.b16 %v3527
  %v3544 = vunpack.c.l.b16 %v3528
  %v3545 = vunpack.c.l.b16 %v3529
  %v3546 = vunpack.c.l.b16 %v3530
  %v3547 = vunpack.c.l.b16 %v3531
  %v3548 = vpack.c.b16 %v3541, %v3540
  %v3549 = vpack.c.b16 %v3543, %v3542
  %v3550 = vpack.c.b16 %v3545, %v3544
  %v3551 = vpack.c.b16 %v3547, %v3546
  %v3557 = vsel %vm1227, %v3522, 0
  %3559 = vmatprep.subr.bf16.mxu0 0
  %3560 = vmatpush1.bf16.msra.mxu0 %v3548
  %3561 = vmatprep.subr.bf16.mxu0 0
  %3562 = vmatpush1.bf16.msra.mxu0 %v3549
  %3563 = vmatprep.subr.bf16.mxu0 0
  %3564 = vmatpush1.bf16.msra.mxu0 %v3550
  %3565 = vmatprep.subr.bf16.mxu0 0
  %3566 = vmatpush1.bf16.msra.mxu0 %v3551
  %3567 = vmatprep.subr.bf16.mxu0 0
  %3568 = vmatpush1.bf16.msra.mxu0 0
  %3569 = vmatprep.subr.bf16.mxu0 0
  %3570 = vmatpush1.bf16.msra.mxu0 0
  %3571 = vmatprep.subr.bf16.mxu0 0
  %3572 = vmatpush1.bf16.msra.mxu0 0
  %3573 = vmatprep.subr.bf16.mxu0 0
  %3574 = vmatpush1.bf16.msra.mxu0 0
  %3575 = vmatprep.subr.bf16.mxu0 0
  %3576 = vmatpush1.bf16.msra.mxu0 0
  %3577 = vmatprep.subr.bf16.mxu0 0
  %3578 = vmatpush1.bf16.msra.mxu0 0
  %3579 = vmatprep.subr.bf16.mxu0 0
  %3580 = vmatpush1.bf16.msra.mxu0 0
  %3581 = vmatprep.subr.bf16.mxu0 0
  %3582 = vmatpush1.bf16.msra.mxu0 0
  %3583 = vmatprep.subr.bf16.mxu0 0
  %3584 = vmatpush1.bf16.msra.mxu0 0
  %3585 = vmatprep.subr.bf16.mxu0 0
  %3586 = vmatpush1.bf16.msra.mxu0 0
  %3587 = vmatprep.subr.bf16.mxu0 0
  %3588 = vmatpush1.bf16.msra.mxu0 0
  %3589 = vmatprep.subr.bf16.mxu0 0
  %3590 = vmatpush1.bf16.msra.mxu0 0
  %3591 = vmatprep.mubr.bf16.mxu0 0
  %3592 = vmatmul.mubr.bf16.gmra.mrb[0].mxu0 %v3557
  %v3593 = vpop.f32.mrb[0].mxu0
  %v3594 = vadd.f32 0.0, %v3593
  %v3595 = vpop.f32.mrb[0].mxu0
  %v3596 = vpop.f32.mrb[0].mxu0
  %v3597 = vpop.f32.mrb[0].mxu0
  %3598 = vdwg.mxu0
  %v3599 = vadd.f32 %v3521, %v3594
  %v3600 = vpack.c.bf16 %v1183, %v1183
  %s3601 = scalar_lea.vmem %s3, 992
  %v3602 = vld [vmem:[%s3601] sm:$0xf]
  %v3603 = vld [vmem:[%s3601 + $0x4] sm:$0xf]
  %v3604 = vld [vmem:[%s3601 + $0x8] sm:$0xf]
  %v3605 = vld [vmem:[%s3601 + $0xc] sm:$0xf]
  %v3606 = vld [vmem:[%s3601 + $0x10] sm:$0xf]
  %v3607 = vld [vmem:[%s3601 + $0x14] sm:$0xf]
  %v3608 = vld [vmem:[%s3601 + $0x18] sm:$0xf]
  %v3609 = vld [vmem:[%s3601 + $0x1c] sm:$0xf]
  %v3618 = vunpack.c.l.b16 %v3602
  %v3619 = vunpack.c.l.b16 %v3603
  %v3620 = vunpack.c.l.b16 %v3604
  %v3621 = vunpack.c.l.b16 %v3605
  %v3622 = vunpack.c.l.b16 %v3606
  %v3623 = vunpack.c.l.b16 %v3607
  %v3624 = vunpack.c.l.b16 %v3608
  %v3625 = vunpack.c.l.b16 %v3609
  %v3626 = vpack.c.b16 %v3619, %v3618
  %v3627 = vpack.c.b16 %v3621, %v3620
  %v3628 = vpack.c.b16 %v3623, %v3622
  %v3629 = vpack.c.b16 %v3625, %v3624
  %v3635 = vsel %vm1227, %v3600, 0
  %3637 = vmatprep.subr.bf16.mxu0 0
  %3638 = vmatpush1.bf16.msra.mxu0 %v3626
  %3639 = vmatprep.subr.bf16.mxu0 0
  %3640 = vmatpush1.bf16.msra.mxu0 %v3627
  %3641 = vmatprep.subr.bf16.mxu0 0
  %3642 = vmatpush1.bf16.msra.mxu0 %v3628
  %3643 = vmatprep.subr.bf16.mxu0 0
  %3644 = vmatpush1.bf16.msra.mxu0 %v3629
  %3645 = vmatprep.subr.bf16.mxu0 0
  %3646 = vmatpush1.bf16.msra.mxu0 0
  %3647 = vmatprep.subr.bf16.mxu0 0
  %3648 = vmatpush1.bf16.msra.mxu0 0
  %3649 = vmatprep.subr.bf16.mxu0 0
  %3650 = vmatpush1.bf16.msra.mxu0 0
  %3651 = vmatprep.subr.bf16.mxu0 0
  %3652 = vmatpush1.bf16.msra.mxu0 0
  %3653 = vmatprep.subr.bf16.mxu0 0
  %3654 = vmatpush1.bf16.msra.mxu0 0
  %3655 = vmatprep.subr.bf16.mxu0 0
  %3656 = vmatpush1.bf16.msra.mxu0 0
  %3657 = vmatprep.subr.bf16.mxu0 0
  %3658 = vmatpush1.bf16.msra.mxu0 0
  %3659 = vmatprep.subr.bf16.mxu0 0
  %3660 = vmatpush1.bf16.msra.mxu0 0
  %3661 = vmatprep.subr.bf16.mxu0 0
  %3662 = vmatpush1.bf16.msra.mxu0 0
  %3663 = vmatprep.subr.bf16.mxu0 0
  %3664 = vmatpush1.bf16.msra.mxu0 0
  %3665 = vmatprep.subr.bf16.mxu0 0
  %3666 = vmatpush1.bf16.msra.mxu0 0
  %3667 = vmatprep.subr.bf16.mxu0 0
  %3668 = vmatpush1.bf16.msra.mxu0 0
  %3669 = vmatprep.mubr.bf16.mxu0 0
  %3670 = vmatmul.mubr.bf16.gmra.mrb[0].mxu0 %v3635
  %v3671 = vpop.f32.mrb[0].mxu0
  %v3672 = vadd.f32 0.0, %v3671
  %v3673 = vpop.f32.mrb[0].mxu0
  %v3674 = vpop.f32.mrb[0].mxu0
  %v3675 = vpop.f32.mrb[0].mxu0
  %3676 = vdwg.mxu0
  %v3677 = vadd.f32 %v3599, %v3672
  %v3678 = vld [vmem:[%s4] sm:$0x1]
  %v3680 = vlaneseq
  %v3681 = vshrl.u32 %v3680, 7
  %v3682 = vsub.s32 0, %v3681
  %v3683 = vrot.slane %v3678, %v3682
  %v3685 = vadd.f32 %v3677, %v3683
  %v3686 = vmax.f32 %v3685, 0.0
  %v3687 = vld [vmem:[%s5] sm:$0x1]
  %v3688 = vld [vmem:[#allocation3] sm:$0x1]
  %3690 = vset.pattern.permute.xlu0 0
  %3691 = vperm.xlu0 %3690, %v3688
  %v3692 = vpop.permute.xlu0 %3691
  %v3694 = vlaneseq
  %v3695 = vshrl.u32 %v3694, 7
  %v3696 = vsub.s32 0, %v3695
  %v3697 = vrot.slane %v3692, %v3696
  %v3699 = vsel %vm1227, %v3687, 0
  %v3702 = vsel %vm1227, %v3686, 0
  %3704 = vmatprep.subr.mxu0 0.0
  %3705 = vmatpush1.xpose.msra.mxu0 %v3702
  %3706 = vmatprep.subr.mxu0 0.0
  %3707 = vmatpush1.xpose.msra.mxu0 0.0
  %3708 = vmatprep.subr.mxu0 0.0
  %3709 = vmatpush1.xpose.msra.mxu0 0.0
  %3710 = vmatprep.subr.mxu0 0.0
  %3711 = vmatpush1.xpose.msra.mxu0 0.0
  %3712 = vmatprep.subr.mxu0 0.0
  %3713 = vmatpush1.xpose.msra.mxu0 0.0
  %3714 = vmatprep.subr.mxu0 0.0
  %3715 = vmatpush1.xpose.msra.mxu0 0.0
  %3716 = vmatprep.subr.mxu0 0.0
  %3717 = vmatpush1.xpose.msra.mxu0 0.0
  %3718 = vmatprep.subr.mxu0 0.0
  %3719 = vmatpush1.xpose.msra.mxu0 0.0
  %3720 = vmatprep.subr.mxu0 0.0
  %3721 = vmatpush1.xpose.msra.mxu0 0.0
  %3722 = vmatprep.subr.mxu0 0.0
  %3723 = vmatpush1.xpose.msra.mxu0 0.0
  %3724 = vmatprep.subr.mxu0 0.0
  %3725 = vmatpush1.xpose.msra.mxu0 0.0
  %3726 = vmatprep.subr.mxu0 0.0
  %3727 = vmatpush1.xpose.msra.mxu0 0.0
  %3728 = vmatprep.subr.mxu0 0.0
  %3729 = vmatpush1.xpose.msra.mxu0 0.0
  %3730 = vmatprep.subr.mxu0 0.0
  %3731 = vmatpush1.xpose.msra.mxu0 0.0
  %3732 = vmatprep.subr.mxu0 0.0
  %3733 = vmatpush1.xpose.msra.mxu0 0.0
  %3734 = vmatprep.subr.mxu0 0.0
  %3735 = vmatpush1.xpose.msra.mxu0 0.0
  %3736 = vmatprep.subr.mxu0 0.0
  %3737 = vmatpush1.xpose.msra.mxu0 0.0
  %3738 = vmatprep.subr.mxu0 0.0
  %3739 = vmatpush1.xpose.msra.mxu0 0.0
  %3740 = vmatprep.subr.mxu0 0.0
  %3741 = vmatpush1.xpose.msra.mxu0 0.0
  %3742 = vmatprep.subr.mxu0 0.0
  %3743 = vmatpush1.xpose.msra.mxu0 0.0
  %3744 = vmatprep.subr.mxu0 0.0
  %3745 = vmatpush1.xpose.msra.mxu0 0.0
  %3746 = vmatprep.subr.mxu0 0.0
  %3747 = vmatpush1.xpose.msra.mxu0 0.0
  %3748 = vmatprep.subr.mxu0 0.0
  %3749 = vmatpush1.xpose.msra.mxu0 0.0
  %3750 = vmatprep.subr.mxu0 0.0
  %3751 = vmatpush1.xpose.msra.mxu0 0.0
  %3752 = vmatprep.subr.mxu0 0.0
  %3753 = vmatpush1.xpose.msra.mxu0 0.0
  %3754 = vmatprep.subr.mxu0 0.0
  %3755 = vmatpush1.xpose.msra.mxu0 0.0
  %3756 = vmatprep.subr.mxu0 0.0
  %3757 = vmatpush1.xpose.msra.mxu0 0.0
  %3758 = vmatprep.subr.mxu0 0.0
  %3759 = vmatpush1.xpose.msra.mxu0 0.0
  %3760 = vmatprep.subr.mxu0 0.0
  %3761 = vmatpush1.xpose.msra.mxu0 0.0
  %3762 = vmatprep.subr.mxu0 0.0
  %3763 = vmatpush1.xpose.msra.mxu0 0.0
  %3764 = vmatprep.subr.mxu0 0.0
  %3765 = vmatpush1.xpose.msra.mxu0 0.0
  %3766 = vmatprep.subr.mxu0 0.0
  %3767 = vmatpush1.xpose.msra.mxu0 0.0
  %3768 = vmatprep.mubr.f32.mxu0 0.0
  %3769 = vmatmul.mubr.f32.gmra.mrb[0].mxu0 %v3699
  %v3770 = vpop.f32.mrb[0].mxu0
  %v3771 = vadd.f32 %v3697, %v3770
  %v3772 = vpop.f32.mrb[0].mxu0
  %3773 = vdwg.mxu0
  %v3774 = vsub.f32 0.0, %v3771
  %v3775 = vmul.f32 %v3774, 1.442695
  %v3776 = vpow.pop %v3775
  %v3777 = vadd.f32 %v3776, 1.0
  %v3778 = vrcp.pop %v3777
  %v3779 = vmul.f32 1.0, %v3778
  %vm3780 = vcmask 57344
  %3781 = vst.msk [vmem:[%s7] sm:$0x1] %vm3780, %v3779
  // Predicated region
  $region30: #{conv1d_model_pallas.1} parent=0 // pred_check
    _
  $region31: #{conv1d_model_pallas.1} parent=0 // pred_check_branch
    %3783 = sbr.rel (0) target = $region33
  $region32: #{conv1d_model_pallas.1} parent=0 // pred_region
    _
  $region33: #{conv1d_model_pallas.1} parent=0 // pred_fallthru
    _
  // Predicated region
  $region34: #{conv1d_model_pallas.1} parent=0 // pred_check
    _
  $region35: #{conv1d_model_pallas.1} parent=0 // pred_check_branch
    %3785 = sbr.rel (0) target = $region37
  $region36: #{conv1d_model_pallas.1} parent=0 // pred_region
    _
  $region37: #{conv1d_model_pallas.1} parent=0 // pred_fallthru
    _

</llo_original>
